<compile_context>
chip_gen: v5e
topology: v5e:2x2
jax: 0.10.0
libtpu: 0.0.40
codegen_flags: <defaults>
</compile_context>

<pallas_src>
import functools

import jax
import jax.numpy as jnp
from jax.experimental import pallas as pl
from jax.experimental.pallas import tpu as pltpu

LANE = 128


def _round_up(x, m):
    return ((x + m - 1) // m) * m


def _pick_tiles(n_pad):
    """Pick (tm, tk).  tk: longest contiguous source run dividing n_pad (<=2048).
    tm: keep >= 4 even row tiles when possible (v7x 2-TensorCore sharding).
    Working set at tm=256/tk=2048 with 128-wide features is ~3 MiB including
    double buffers -- well inside the default scoped-VMEM limit everywhere."""
    tk = 256
    for cand in (2048, 1024, 512, 256):
        if n_pad % cand == 0:
            tk = cand
            break
    tm = 256 if (n_pad // 256) >= 4 else 128
    return tm, tk


# ---------------------------------------------------------------------------
# Kernel A: aggregation-first SAGEConv (used when c_in <= c_out).
#   acc[i]  = sum_k A[i, k] @ X[k]              (int8 counts -> bf16, f32 acc)
#   out[i]  = act( (acc[i] * inv_deg[i]) @ W_l + X_dst[i] @ W_r + b )
# ---------------------------------------------------------------------------
def _sage_agg_first_kernel(a_ref, xs_ref, xd_ref, inv_ref, wl_ref, wr_ref,
                           b_ref, o_ref, acc_ref, *, apply_relu):
    k = pl.program_id(1)

    @pl.when(k == 0)
    def _():
        acc_ref[...] = jnp.zeros_like(acc_ref)

    # A tile holds exact small integer edge counts (int8 in HBM); cast to the
    # feature dtype in VMEM so the big matmul runs bf16 x bf16 on the MXU.
    acc_ref[...] += jnp.dot(a_ref[...].astype(xs_ref.dtype), xs_ref[...],
                            preferred_element_type=jnp.float32)

    @pl.when(k == pl.num_programs(1) - 1)
    def _():
        agg = acc_ref[...] * inv_ref[...]            # per-row 1/deg, f32, once
        out = jnp.dot(agg, wl_ref[...], preferred_element_type=jnp.float32)
        out = out + jnp.dot(xd_ref[...].astype(jnp.float32), wr_ref[...],
                            preferred_element_type=jnp.float32)
        out = out + b_ref[...]
        if apply_relu:
            out = jnp.maximum(out, 0.0)
        o_ref[...] = out.astype(o_ref.dtype)


# ---------------------------------------------------------------------------
# Kernel B1: per-node transform (used when c_out < c_in, "transform first").
#   XL = X @ W_l   (bf16 out; root term is handled in kernel B2's epilogue)
# ---------------------------------------------------------------------------
def _node_transform_kernel(x_ref, wl_ref, xl_ref):
    xl_ref[...] = jnp.dot(x_ref[...].astype(jnp.float32), wl_ref[...],
                          preferred_element_type=jnp.float32
                          ).astype(xl_ref.dtype)


# ---------------------------------------------------------------------------
# Kernel B2: aggregation + root term.
#   acc[i] = sum_k A[i,k] @ XL[k]
#   out[i] = act( acc[i] * inv_deg[i] + X_dst[i] @ W_r + b )
# ---------------------------------------------------------------------------
def _sage_agg_root_kernel(a_ref, xl_ref, xd_ref, inv_ref, wr_ref, b_ref,
                          o_ref, acc_ref, *, apply_relu):
    k = pl.program_id(1)

    @pl.when(k == 0)
    def _():
        acc_ref[...] = jnp.zeros_like(acc_ref)

    acc_ref[...] += jnp.dot(a_ref[...].astype(xl_ref.dtype), xl_ref[...],
                            preferred_element_type=jnp.float32)

    @pl.when(k == pl.num_programs(1) - 1)
    def _():
        out = acc_ref[...] * inv_ref[...]
        out = out + jnp.dot(xd_ref[...].astype(jnp.float32), wr_ref[...],
                            preferred_element_type=jnp.float32)
        out = out + b_ref[...]
        if apply_relu:
            out = jnp.maximum(out, 0.0)
        o_ref[...] = out.astype(o_ref.dtype)


def sage_conv(a_cnt, inv_deg, x, w_l, b_l, w_r, *, c_in, c_out, apply_relu,
              out_dtype, tm, tk):
    """One SAGEConv layer, tiled over (dst-row tiles, src tiles)."""
    n_pad, c_in_p = x.shape
    c_out_p = w_l.shape[1]
    grid = (n_pad // tm, n_pad // tk)
    b2d = b_l.reshape(1, -1)
    out_bytes = jnp.dtype(out_dtype).itemsize

    if c_in <= c_out:
        # ---- aggregation first: the O(N^2) matmul runs at width c_in_p ----
        flops = 2 * n_pad * n_pad * c_in_p + 4 * n_pad * c_in_p * c_out_p
        bytes_acc = (n_pad * n_pad * 1 + 2 * n_pad * c_in_p * 2 + n_pad * 4
                     + 2 * c_in_p * c_out_p * 4 + c_out_p * 4
                     + n_pad * c_out_p * out_bytes)
        kernel = functools.partial(_sage_agg_first_kernel, apply_relu=apply_relu)
        return pl.pallas_call(
            kernel,
            out_shape=jax.ShapeDtypeStruct((n_pad, c_out_p), out_dtype),
            grid_spec=pltpu.PrefetchScalarGridSpec(
                num_scalar_prefetch=0,
                grid=grid,
                in_specs=[
                    pl.BlockSpec((tm, tk), lambda i, k: (i, k)),            # A
                    pl.BlockSpec((tk, c_in_p), lambda i, k: (k, 0)),        # X src
                    pl.BlockSpec((tm, c_in_p), lambda i, k: (i, 0)),        # X dst
                    pl.BlockSpec((tm, 1), lambda i, k: (i, 0)),             # 1/deg
                    pl.BlockSpec((c_in_p, c_out_p), lambda i, k: (0, 0)),   # W_l
                    pl.BlockSpec((c_in_p, c_out_p), lambda i, k: (0, 0)),   # W_r
                    pl.BlockSpec((1, c_out_p), lambda i, k: (0, 0)),        # b
                ],
                out_specs=pl.BlockSpec((tm, c_out_p), lambda i, k: (i, 0)),
                scratch_shapes=[pltpu.VMEM((tm, c_in_p), jnp.float32)],
            ),
            compiler_params=pltpu.CompilerParams(
                dimension_semantics=("parallel", "arbitrary")),
            cost_estimate=pl.CostEstimate(
                flops=int(flops), transcendentals=0,
                bytes_accessed=int(bytes_acc)),
        )(a_cnt, x, x, inv_deg, w_l, w_r, b2d)

    # ---- transform first: the O(N^2) matmul runs at the narrower width ----
    xl = pl.pallas_call(
        _node_transform_kernel,
        out_shape=jax.ShapeDtypeStruct((n_pad, c_out_p), jnp.bfloat16),
        grid_spec=pltpu.PrefetchScalarGridSpec(
            num_scalar_prefetch=0,
            grid=(n_pad // tm,),
            in_specs=[
                pl.BlockSpec((tm, c_in_p), lambda i: (i, 0)),
                pl.BlockSpec((c_in_p, c_out_p), lambda i: (0, 0)),
            ],
            out_specs=pl.BlockSpec((tm, c_out_p), lambda i: (i, 0)),
        ),
        compiler_params=pltpu.CompilerParams(
            dimension_semantics=("parallel",)),
    )(x, w_l)

    flops = 2 * n_pad * n_pad * c_out_p + 2 * n_pad * c_in_p * c_out_p
    bytes_acc = (n_pad * n_pad * 1 + n_pad * c_out_p * 2 + n_pad * c_in_p * 2
                 + n_pad * 4 + c_in_p * c_out_p * 4 + c_out_p * 4
                 + n_pad * c_out_p * out_bytes)
    kernel = functools.partial(_sage_agg_root_kernel, apply_relu=apply_relu)
    return pl.pallas_call(
        kernel,
        out_shape=jax.ShapeDtypeStruct((n_pad, c_out_p), out_dtype),
        grid_spec=pltpu.PrefetchScalarGridSpec(
            num_scalar_prefetch=0,
            grid=grid,
            in_specs=[
                pl.BlockSpec((tm, tk), lambda i, k: (i, k)),              # A
                pl.BlockSpec((tk, c_out_p), lambda i, k: (k, 0)),         # XL src
                pl.BlockSpec((tm, c_in_p), lambda i, k: (i, 0)),          # X dst
                pl.BlockSpec((tm, 1), lambda i, k: (i, 0)),               # 1/deg
                pl.BlockSpec((c_in_p, c_out_p), lambda i, k: (0, 0)),     # W_r
                pl.BlockSpec((1, c_out_p), lambda i, k: (0, 0)),          # b
            ],
            out_specs=pl.BlockSpec((tm, c_out_p), lambda i, k: (i, 0)),
            scratch_shapes=[pltpu.VMEM((tm, c_out_p), jnp.float32)],
        ),
        compiler_params=pltpu.CompilerParams(
            dimension_semantics=("parallel", "arbitrary")),
        cost_estimate=pl.CostEstimate(
            flops=int(flops), transcendentals=0, bytes_accessed=int(bytes_acc)),
    )(a_cnt, xl, x, inv_deg, w_r, b2d)


def build_adjacency(edge_index, num_nodes_pad):
    """Glue: densify edge_index (2, E) into
       - int8 edge-count adjacency (exact small integers; message flows src->dst)
       - f32 per-row inverse in-degree column (1/deg, 1 for isolated nodes).
    TODO(synk): build directly in compressed/CSR form instead of the transient
    f32 N^2 scatter (kept here because it is known-good glue)."""
    src, dst = edge_index[0], edge_index[1]
    cnt = jnp.zeros((num_nodes_pad, num_nodes_pad), jnp.float32)
    cnt = cnt.at[dst, src].add(1.0)
    a_cnt = cnt.astype(jnp.int8)
    deg = jnp.zeros((num_nodes_pad,), jnp.float32).at[dst].add(1.0)
    inv_deg = (1.0 / jnp.maximum(deg, 1.0)).reshape(-1, 1)
    return a_cnt, inv_deg


def _pad2(a, rows, cols):
    return jnp.pad(a, ((0, rows - a.shape[0]), (0, cols - a.shape[1])))


def graphsage_forward(x, edge_index, params):
    n, c_in = x.shape
    hid = params["conv1_bl"].shape[0]
    out = params["conv2_bl"].shape[0]

    n_pad = _round_up(n, 256)
    c_in_p = _round_up(c_in, LANE)
    c_hid_p = _round_up(hid, LANE)
    c_out_p = _round_up(out, LANE)
    tm, tk = _pick_tiles(n_pad)

    a_cnt, inv_deg = build_adjacency(edge_index, n_pad)
    x_p = _pad2(x, n_pad, c_in_p).astype(jnp.bfloat16)

    w1l = _pad2(params["conv1_wl"], c_in_p, c_hid_p)
    w1r = _pad2(params["conv1_wr"], c_in_p, c_hid_p)
    b1 = jnp.pad(params["conv1_bl"], (0, c_hid_p - hid))
    w2l = _pad2(params["conv2_wl"], c_hid_p, c_out_p)
    w2r = _pad2(params["conv2_wr"], c_hid_p, c_out_p)
    b2 = jnp.pad(params["conv2_bl"], (0, c_out_p - out))

    # conv1 + relu  (c_in <= hidden -> aggregate first); bf16 activations out.
    h = sage_conv(a_cnt, inv_deg, x_p, w1l, b1, w1r,
                  c_in=c_in, c_out=hid, apply_relu=True,
                  out_dtype=jnp.bfloat16, tm=tm, tk=tk)
    # conv2 (hidden > out -> transform first); final embedding in f32.
    z = sage_conv(a_cnt, inv_deg, h, w2l, b2, w2r,
                  c_in=hid, c_out=out, apply_relu=False,
                  out_dtype=jnp.float32, tm=tm, tk=tk)
    return z[:n, :out]


def init_linear(key, fan_in, fan_out, with_bias):
    """Deterministic Kaiming-uniform-ish init (torch.nn.Linear style)."""
    k_w, k_b = jax.random.split(key)
    bound = 1.0 / jnp.sqrt(jnp.float32(fan_in))
    w = jax.random.uniform(k_w, (fan_in, fan_out), jnp.float32, -bound, bound)
    b = (jax.random.uniform(k_b, (fan_out,), jnp.float32, -bound, bound)
         if with_bias else jnp.zeros((fan_out,), jnp.float32))
    return w, b


def reference_forward(x, edge_index, params):
    """Plain-JAX reference mirroring the kernels' bf16 quantization points
    (adjacency/1/deg are exact f32 in both implementations now)."""
    n = x.shape[0]
    src, dst = edge_index[0], edge_index[1]
    adj = jnp.zeros((n, n), jnp.float32).at[dst, src].add(1.0)
    inv = 1.0 / jnp.maximum(adj.sum(1, keepdims=True), 1.0)
    xq = x.astype(jnp.bfloat16).astype(jnp.float32)

    # conv1 (aggregate-first) + relu, bf16 activations.
    agg1 = (adj @ xq) * inv
    h = jax.nn.relu(agg1 @ params["conv1_wl"] + xq @ params["conv1_wr"]
                    + params["conv1_bl"])
    hq = h.astype(jnp.bfloat16).astype(jnp.float32)

    # conv2 (transform-first), XL quantized to bf16 as in the kernel.
    xl = (hq @ params["conv2_wl"]).astype(jnp.bfloat16).astype(jnp.float32)
    return (adj @ xl) * inv + hq @ params["conv2_wr"] + params["conv2_bl"]


if __name__ == "__main__":
    # Small synthetic graph (padded internally to 512 nodes -> 4x1 tile grid).
    N, E = 320, 1600
    IN_CH, HID_CH, OUT_CH = 8, 32, 16

    key = jax.random.PRNGKey(0)
    k_x, k_e, k_c1l, k_c1r, k_c2l, k_c2r = jax.random.split(key, 6)

    x = jax.random.normal(k_x, (N, IN_CH), dtype=jnp.float32)
    edge_index = jax.random.randint(k_e, (2, E), 0, N, dtype=jnp.int32)

    c1_wl, c1_bl = init_linear(k_c1l, IN_CH, HID_CH, with_bias=True)
    c1_wr, _ = init_linear(k_c1r, IN_CH, HID_CH, with_bias=False)
    c2_wl, c2_bl = init_linear(k_c2l, HID_CH, OUT_CH, with_bias=True)
    c2_wr, _ = init_linear(k_c2r, HID_CH, OUT_CH, with_bias=False)

    params = {
        "conv1_wl": c1_wl, "conv1_bl": c1_bl, "conv1_wr": c1_wr,
        "conv2_wl": c2_wl, "conv2_bl": c2_bl, "conv2_wr": c2_wr,
    }
    # TODO(synk): edge_decoder Linear(out*2, 1) is unused in forward(); not ported.

    z = jax.jit(graphsage_forward)(x, edge_index, params)
    jax.block_until_ready(z)
    assert z.shape == (N, OUT_CH)

    z_ref = reference_forward(x, edge_index, params)
    err = float(jnp.max(jnp.abs(z - z_ref)))
    assert jnp.allclose(z, z_ref, rtol=5e-2, atol=5e-2), f"max abs err {err}"
    print("KERNEL_OK")
</pallas_src>

<mosaic_0001>
module attributes {stable_mosaic.version = 11 : i64} {
  func.func @_sage_agg_first_kernel(%arg0: i32, %arg1: i32, %arg2: memref<128x512xi8, #tpu.memory_space<vmem>>, %arg3: memref<512x128xbf16, #tpu.memory_space<vmem>>, %arg4: memref<128x128xbf16, #tpu.memory_space<vmem>>, %arg5: memref<128x1xf32, #tpu.memory_space<vmem>>, %arg6: memref<128x128xf32, #tpu.memory_space<vmem>>, %arg7: memref<128x128xf32, #tpu.memory_space<vmem>>, %arg8: memref<1x128xf32, #tpu.memory_space<vmem>>, %arg9: memref<128x128xbf16, #tpu.memory_space<vmem>>, %arg10: memref<128x128xf32, #tpu.memory_space<vmem>>) attributes {dimension_semantics = [#tpu.dimension_semantics<parallel>, #tpu.dimension_semantics<arbitrary>], iteration_bounds = array<i64: 4, 1>, scalar_prefetch = 0 : i64, scratch_operands = 1 : i64, tpu.core_type = #tpu.core_type<tc>, window_params = [{transform_indices = @transform_0, window_bounds = array<i64: 128, 512>}, {transform_indices = @transform_1, window_bounds = array<i64: 512, 128>}, {transform_indices = @transform_2, window_bounds = array<i64: 128, 128>}, {transform_indices = @transform_3, window_bounds = array<i64: 128, 1>}, {pipeline_mode = #tpu.pipeline_mode<synchronous>, transform_indices = @transform_4, window_bounds = array<i64: 128, 128>}, {pipeline_mode = #tpu.pipeline_mode<synchronous>, transform_indices = @transform_5, window_bounds = array<i64: 128, 128>}, {pipeline_mode = #tpu.pipeline_mode<synchronous>, transform_indices = @transform_6, window_bounds = array<i64: 1, 128>}, {transform_indices = @transform_7, window_bounds = array<i64: 128, 128>}]} {
    %c0_i32 = arith.constant 0 : i32
    %0 = arith.cmpi eq, %arg1, %c0_i32 : i32
    %1 = arith.extui %0 : i1 to i32
    %c0_i32_0 = arith.constant 0 : i32
    %2 = arith.cmpi ne, %1, %c0_i32_0 : i32
    scf.if %2 {
      %cst_10 = arith.constant 0.000000e+00 : f32
      %13 = vector.broadcast %cst_10 : f32 to vector<128x128xf32>
      %c0_11 = arith.constant 0 : index
      %c0_12 = arith.constant 0 : index
      %14 = vector.load %arg10[%c0_11, %c0_12] : memref<128x128xf32, #tpu.memory_space<vmem>>, vector<128x128xf32>
      tpu.vector_store %arg10[%c0_11, %c0_12], %13 {strides = array<i32>} : memref<128x128xf32, #tpu.memory_space<vmem>>, vector<128x128xf32>,
    } else {
    }
    %c0 = arith.constant 0 : index
    %c0_1 = arith.constant 0 : index
    %3 = vector.load %arg10[%c0, %c0_1] : memref<128x128xf32, #tpu.memory_space<vmem>>, vector<128x128xf32>
    %c0_2 = arith.constant 0 : index
    %c0_3 = arith.constant 0 : index
    %4 = vector.load %arg2[%c0_2, %c0_3] : memref<128x512xi8, #tpu.memory_space<vmem>>, vector<128x512xi8>
    %5 = arith.sitofp %4 : vector<128x512xi8> to vector<128x512xbf16>
    %c0_4 = arith.constant 0 : index
    %c0_5 = arith.constant 0 : index
    %6 = vector.load %arg3[%c0_4, %c0_5] : memref<512x128xbf16, #tpu.memory_space<vmem>>, vector<512x128xbf16>
    %cst = arith.constant dense<0.000000e+00> : vector<128x128xf32>
    %7 = tpu.matmul %5, %6, %cst {dimension_numbers = #tpu.dot_dimension_numbers<[1], [0], [0], [1], [0, 0, 1, 1], [], []>} : vector<128x512xbf16>, vector<512x128xbf16>, vector<128x128xf32> -> vector<128x128xf32>
    %8 = arith.addf %3, %7 : vector<128x128xf32>
    %c0_6 = arith.constant 0 : index
    %c0_7 = arith.constant 0 : index
    %9 = vector.load %arg10[%c0_6, %c0_7] : memref<128x128xf32, #tpu.memory_space<vmem>>, vector<128x128xf32>
    tpu.vector_store %arg10[%c0_6, %c0_7], %8 {strides = array<i32>} : memref<128x128xf32, #tpu.memory_space<vmem>>, vector<128x128xf32>,
    %c0_i32_8 = arith.constant 0 : i32
    %10 = arith.cmpi eq, %arg1, %c0_i32_8 : i32
    %11 = arith.extui %10 : i1 to i32
    %c0_i32_9 = arith.constant 0 : i32
    %12 = arith.cmpi ne, %11, %c0_i32_9 : i32
    scf.if %12 {
      %c0_10 = arith.constant 0 : index
      %c0_11 = arith.constant 0 : index
      %13 = vector.load %arg10[%c0_10, %c0_11] : memref<128x128xf32, #tpu.memory_space<vmem>>, vector<128x128xf32>
      %c0_12 = arith.constant 0 : index
      %c0_13 = arith.constant 0 : index
      %14 = vector.load %arg5[%c0_12, %c0_13] : memref<128x1xf32, #tpu.memory_space<vmem>>, vector<128x1xf32>
      %15 = vector.broadcast %14 : vector<128x1xf32> to vector<128x128xf32>
      %16 = arith.mulf %13, %15 : vector<128x128xf32>
      %c0_14 = arith.constant 0 : index
      %c0_15 = arith.constant 0 : index
      %17 = vector.load %arg6[%c0_14, %c0_15] : memref<128x128xf32, #tpu.memory_space<vmem>>, vector<128x128xf32>
      %cst_16 = arith.constant dense<0.000000e+00> : vector<128x128xf32>
      %18 = tpu.matmul %16, %17, %cst_16 {dimension_numbers = #tpu.dot_dimension_numbers<[1], [0], [0], [1], [0, 0, 1, 1], [], []>} : vector<128x128xf32>, vector<128x128xf32>, vector<128x128xf32> -> vector<128x128xf32>
      %c0_17 = arith.constant 0 : index
      %c0_18 = arith.constant 0 : index
      %19 = vector.load %arg4[%c0_17, %c0_18] : memref<128x128xbf16, #tpu.memory_space<vmem>>, vector<128x128xbf16>
      %20 = arith.extf %19 : vector<128x128xbf16> to vector<128x128xf32>
      %c0_19 = arith.constant 0 : index
      %c0_20 = arith.constant 0 : index
      %21 = vector.load %arg7[%c0_19, %c0_20] : memref<128x128xf32, #tpu.memory_space<vmem>>, vector<128x128xf32>
      %cst_21 = arith.constant dense<0.000000e+00> : vector<128x128xf32>
      %22 = tpu.matmul %20, %21, %cst_21 {dimension_numbers = #tpu.dot_dimension_numbers<[1], [0], [0], [1], [0, 0, 1, 1], [], []>} : vector<128x128xf32>, vector<128x128xf32>, vector<128x128xf32> -> vector<128x128xf32>
      %23 = arith.addf %18, %22 : vector<128x128xf32>
      %c0_22 = arith.constant 0 : index
      %c0_23 = arith.constant 0 : index
      %24 = vector.load %arg8[%c0_22, %c0_23] : memref<1x128xf32, #tpu.memory_space<vmem>>, vector<1x128xf32>
      %25 = vector.broadcast %24 : vector<1x128xf32> to vector<128x128xf32>
      %26 = arith.addf %23, %25 : vector<128x128xf32>
      %cst_24 = arith.constant 0.000000e+00 : f32
      %27 = vector.broadcast %cst_24 : f32 to vector<128x128xf32>
      %28 = arith.maximumf %26, %27 : vector<128x128xf32>
      %29 = arith.truncf %28 : vector<128x128xf32> to vector<128x128xbf16>
      %c0_25 = arith.constant 0 : index
      %c0_26 = arith.constant 0 : index
      %30 = vector.load %arg9[%c0_25, %c0_26] : memref<128x128xbf16, #tpu.memory_space<vmem>>, vector<128x128xbf16>
      tpu.vector_store %arg9[%c0_25, %c0_26], %29 {strides = array<i32>} : memref<128x128xbf16, #tpu.memory_space<vmem>>, vector<128x128xbf16>,
    } else {
    }
    return
  }
  func.func @transform_0(%arg0: i32, %arg1: i32) -> (i32, i32) {
    %c0_i32 = arith.constant 0 : i32
    return %arg0, %arg1 : i32, i32
  }
  func.func @transform_1(%arg0: i32, %arg1: i32) -> (i32, i32) {
    %c0_i32 = arith.constant 0 : i32
    %c0_i32_0 = arith.constant 0 : i32
    return %arg1, %c0_i32 : i32, i32
  }
  func.func @transform_2(%arg0: i32, %arg1: i32) -> (i32, i32) {
    %c0_i32 = arith.constant 0 : i32
    %c0_i32_0 = arith.constant 0 : i32
    return %arg0, %c0_i32 : i32, i32
  }
  func.func @transform_3(%arg0: i32, %arg1: i32) -> (i32, i32) {
    %c0_i32 = arith.constant 0 : i32
    %c0_i32_0 = arith.constant 0 : i32
    return %arg0, %c0_i32 : i32, i32
  }
  func.func @transform_4(%arg0: i32, %arg1: i32) -> (i32, i32) {
    %c0_i32 = arith.constant 0 : i32
    %c0_i32_0 = arith.constant 0 : i32
    %c0_i32_1 = arith.constant 0 : i32
    return %c0_i32, %c0_i32_0 : i32, i32
  }
  func.func @transform_5(%arg0: i32, %arg1: i32) -> (i32, i32) {
    %c0_i32 = arith.constant 0 : i32
    %c0_i32_0 = arith.constant 0 : i32
    %c0_i32_1 = arith.constant 0 : i32
    return %c0_i32, %c0_i32_0 : i32, i32
  }
  func.func @transform_6(%arg0: i32, %arg1: i32) -> (i32, i32) {
    %c0_i32 = arith.constant 0 : i32
    %c0_i32_0 = arith.constant 0 : i32
    %c0_i32_1 = arith.constant 0 : i32
    return %c0_i32, %c0_i32_0 : i32, i32
  }
  func.func @transform_7(%arg0: i32, %arg1: i32) -> (i32, i32) {
    %c0_i32 = arith.constant 0 : i32
    %c0_i32_0 = arith.constant 0 : i32
    return %arg0, %c0_i32 : i32, i32
  }
}

module attributes {stable_mosaic.version = 11 : i64} {
  func.func @_node_transform_kernel(%arg0: i32, %arg1: memref<128x128xbf16, #tpu.memory_space<vmem>>, %arg2: memref<128x128xf32, #tpu.memory_space<vmem>>, %arg3: memref<128x128xbf16, #tpu.memory_space<vmem>>) attributes {dimension_semantics = [#tpu.dimension_semantics<parallel>], iteration_bounds = array<i64: 4>, scalar_prefetch = 0 : i64, scratch_operands = 0 : i64, tpu.core_type = #tpu.core_type<tc>, window_params = [{transform_indices = @transform_0, window_bounds = array<i64: 128, 128>}, {pipeline_mode = #tpu.pipeline_mode<synchronous>, transform_indices = @transform_1, window_bounds = array<i64: 128, 128>}, {transform_indices = @transform_2, window_bounds = array<i64: 128, 128>}]} {
    %c0 = arith.constant 0 : index
    %c0_0 = arith.constant 0 : index
    %0 = vector.load %arg1[%c0, %c0_0] : memref<128x128xbf16, #tpu.memory_space<vmem>>, vector<128x128xbf16>
    %1 = arith.extf %0 : vector<128x128xbf16> to vector<128x128xf32>
    %c0_1 = arith.constant 0 : index
    %c0_2 = arith.constant 0 : index
    %2 = vector.load %arg2[%c0_1, %c0_2] : memref<128x128xf32, #tpu.memory_space<vmem>>, vector<128x128xf32>
    %cst = arith.constant dense<0.000000e+00> : vector<128x128xf32>
    %3 = tpu.matmul %1, %2, %cst {dimension_numbers = #tpu.dot_dimension_numbers<[1], [0], [0], [1], [0, 0, 1, 1], [], []>} : vector<128x128xf32>, vector<128x128xf32>, vector<128x128xf32> -> vector<128x128xf32>
    %4 = arith.truncf %3 : vector<128x128xf32> to vector<128x128xbf16>
    %c0_3 = arith.constant 0 : index
    %c0_4 = arith.constant 0 : index
    %5 = vector.load %arg3[%c0_3, %c0_4] : memref<128x128xbf16, #tpu.memory_space<vmem>>, vector<128x128xbf16>
    tpu.vector_store %arg3[%c0_3, %c0_4], %4 {strides = array<i32>} : memref<128x128xbf16, #tpu.memory_space<vmem>>, vector<128x128xbf16>,
    return
  }
  func.func @transform_0(%arg0: i32) -> (i32, i32) {
    %c0_i32 = arith.constant 0 : i32
    %c0_i32_0 = arith.constant 0 : i32
    return %arg0, %c0_i32 : i32, i32
  }
  func.func @transform_1(%arg0: i32) -> (i32, i32) {
    %c0_i32 = arith.constant 0 : i32
    %c0_i32_0 = arith.constant 0 : i32
    %c0_i32_1 = arith.constant 0 : i32
    return %c0_i32, %c0_i32_0 : i32, i32
  }
  func.func @transform_2(%arg0: i32) -> (i32, i32) {
    %c0_i32 = arith.constant 0 : i32
    %c0_i32_0 = arith.constant 0 : i32
    return %arg0, %c0_i32 : i32, i32
  }
}

module attributes {stable_mosaic.version = 11 : i64} {
  func.func @_sage_agg_root_kernel(%arg0: i32, %arg1: i32, %arg2: memref<128x512xi8, #tpu.memory_space<vmem>>, %arg3: memref<512x128xbf16, #tpu.memory_space<vmem>>, %arg4: memref<128x128xbf16, #tpu.memory_space<vmem>>, %arg5: memref<128x1xf32, #tpu.memory_space<vmem>>, %arg6: memref<128x128xf32, #tpu.memory_space<vmem>>, %arg7: memref<1x128xf32, #tpu.memory_space<vmem>>, %arg8: memref<128x128xf32, #tpu.memory_space<vmem>>, %arg9: memref<128x128xf32, #tpu.memory_space<vmem>>) attributes {dimension_semantics = [#tpu.dimension_semantics<parallel>, #tpu.dimension_semantics<arbitrary>], iteration_bounds = array<i64: 4, 1>, scalar_prefetch = 0 : i64, scratch_operands = 1 : i64, tpu.core_type = #tpu.core_type<tc>, window_params = [{transform_indices = @transform_0, window_bounds = array<i64: 128, 512>}, {transform_indices = @transform_1, window_bounds = array<i64: 512, 128>}, {transform_indices = @transform_2, window_bounds = array<i64: 128, 128>}, {transform_indices = @transform_3, window_bounds = array<i64: 128, 1>}, {pipeline_mode = #tpu.pipeline_mode<synchronous>, transform_indices = @transform_4, window_bounds = array<i64: 128, 128>}, {pipeline_mode = #tpu.pipeline_mode<synchronous>, transform_indices = @transform_5, window_bounds = array<i64: 1, 128>}, {transform_indices = @transform_6, window_bounds = array<i64: 128, 128>}]} {
    %c0_i32 = arith.constant 0 : i32
    %0 = arith.cmpi eq, %arg1, %c0_i32 : i32
    %1 = arith.extui %0 : i1 to i32
    %c0_i32_0 = arith.constant 0 : i32
    %2 = arith.cmpi ne, %1, %c0_i32_0 : i32
    scf.if %2 {
      %cst_10 = arith.constant 0.000000e+00 : f32
      %13 = vector.broadcast %cst_10 : f32 to vector<128x128xf32>
      %c0_11 = arith.constant 0 : index
      %c0_12 = arith.constant 0 : index
      %14 = vector.load %arg9[%c0_11, %c0_12] : memref<128x128xf32, #tpu.memory_space<vmem>>, vector<128x128xf32>
      tpu.vector_store %arg9[%c0_11, %c0_12], %13 {strides = array<i32>} : memref<128x128xf32, #tpu.memory_space<vmem>>, vector<128x128xf32>,
    } else {
    }
    %c0 = arith.constant 0 : index
    %c0_1 = arith.constant 0 : index
    %3 = vector.load %arg9[%c0, %c0_1] : memref<128x128xf32, #tpu.memory_space<vmem>>, vector<128x128xf32>
    %c0_2 = arith.constant 0 : index
    %c0_3 = arith.constant 0 : index
    %4 = vector.load %arg2[%c0_2, %c0_3] : memref<128x512xi8, #tpu.memory_space<vmem>>, vector<128x512xi8>
    %5 = arith.sitofp %4 : vector<128x512xi8> to vector<128x512xbf16>
    %c0_4 = arith.constant 0 : index
    %c0_5 = arith.constant 0 : index
    %6 = vector.load %arg3[%c0_4, %c0_5] : memref<512x128xbf16, #tpu.memory_space<vmem>>, vector<512x128xbf16>
    %cst = arith.constant dense<0.000000e+00> : vector<128x128xf32>
    %7 = tpu.matmul %5, %6, %cst {dimension_numbers = #tpu.dot_dimension_numbers<[1], [0], [0], [1], [0, 0, 1, 1], [], []>} : vector<128x512xbf16>, vector<512x128xbf16>, vector<128x128xf32> -> vector<128x128xf32>
    %8 = arith.addf %3, %7 : vector<128x128xf32>
    %c0_6 = arith.constant 0 : index
    %c0_7 = arith.constant 0 : index
    %9 = vector.load %arg9[%c0_6, %c0_7] : memref<128x128xf32, #tpu.memory_space<vmem>>, vector<128x128xf32>
    tpu.vector_store %arg9[%c0_6, %c0_7], %8 {strides = array<i32>} : memref<128x128xf32, #tpu.memory_space<vmem>>, vector<128x128xf32>,
    %c0_i32_8 = arith.constant 0 : i32
    %10 = arith.cmpi eq, %arg1, %c0_i32_8 : i32
    %11 = arith.extui %10 : i1 to i32
    %c0_i32_9 = arith.constant 0 : i32
    %12 = arith.cmpi ne, %11, %c0_i32_9 : i32
    scf.if %12 {
      %c0_10 = arith.constant 0 : index
      %c0_11 = arith.constant 0 : index
      %13 = vector.load %arg9[%c0_10, %c0_11] : memref<128x128xf32, #tpu.memory_space<vmem>>, vector<128x128xf32>
      %c0_12 = arith.constant 0 : index
      %c0_13 = arith.constant 0 : index
      %14 = vector.load %arg5[%c0_12, %c0_13] : memref<128x1xf32, #tpu.memory_space<vmem>>, vector<128x1xf32>
      %15 = vector.broadcast %14 : vector<128x1xf32> to vector<128x128xf32>
      %16 = arith.mulf %13, %15 : vector<128x128xf32>
      %c0_14 = arith.constant 0 : index
      %c0_15 = arith.constant 0 : index
      %17 = vector.load %arg4[%c0_14, %c0_15] : memref<128x128xbf16, #tpu.memory_space<vmem>>, vector<128x128xbf16>
      %18 = arith.extf %17 : vector<128x128xbf16> to vector<128x128xf32>
      %c0_16 = arith.constant 0 : index
      %c0_17 = arith.constant 0 : index
      %19 = vector.load %arg6[%c0_16, %c0_17] : memref<128x128xf32, #tpu.memory_space<vmem>>, vector<128x128xf32>
      %cst_18 = arith.constant dense<0.000000e+00> : vector<128x128xf32>
      %20 = tpu.matmul %18, %19, %cst_18 {dimension_numbers = #tpu.dot_dimension_numbers<[1], [0], [0], [1], [0, 0, 1, 1], [], []>} : vector<128x128xf32>, vector<128x128xf32>, vector<128x128xf32> -> vector<128x128xf32>
      %21 = arith.addf %16, %20 : vector<128x128xf32>
      %c0_19 = arith.constant 0 : index
      %c0_20 = arith.constant 0 : index
      %22 = vector.load %arg7[%c0_19, %c0_20] : memref<1x128xf32, #tpu.memory_space<vmem>>, vector<1x128xf32>
      %23 = vector.broadcast %22 : vector<1x128xf32> to vector<128x128xf32>
      %24 = arith.addf %21, %23 : vector<128x128xf32>
      %c0_21 = arith.constant 0 : index
      %c0_22 = arith.constant 0 : index
      %25 = vector.load %arg8[%c0_21, %c0_22] : memref<128x128xf32, #tpu.memory_space<vmem>>, vector<128x128xf32>
      tpu.vector_store %arg8[%c0_21, %c0_22], %24 {strides = array<i32>} : memref<128x128xf32, #tpu.memory_space<vmem>>, vector<128x128xf32>,
    } else {
    }
    return
  }
  func.func @transform_0(%arg0: i32, %arg1: i32) -> (i32, i32) {
    %c0_i32 = arith.constant 0 : i32
    return %arg0, %arg1 : i32, i32
  }
  func.func @transform_1(%arg0: i32, %arg1: i32) -> (i32, i32) {
    %c0_i32 = arith.constant 0 : i32
    %c0_i32_0 = arith.constant 0 : i32
    return %arg1, %c0_i32 : i32, i32
  }
  func.func @transform_2(%arg0: i32, %arg1: i32) -> (i32, i32) {
    %c0_i32 = arith.constant 0 : i32
    %c0_i32_0 = arith.constant 0 : i32
    return %arg0, %c0_i32 : i32, i32
  }
  func.func @transform_3(%arg0: i32, %arg1: i32) -> (i32, i32) {
    %c0_i32 = arith.constant 0 : i32
    %c0_i32_0 = arith.constant 0 : i32
    return %arg0, %c0_i32 : i32, i32
  }
  func.func @transform_4(%arg0: i32, %arg1: i32) -> (i32, i32) {
    %c0_i32 = arith.constant 0 : i32
    %c0_i32_0 = arith.constant 0 : i32
    %c0_i32_1 = arith.constant 0 : i32
    return %c0_i32, %c0_i32_0 : i32, i32
  }
  func.func @transform_5(%arg0: i32, %arg1: i32) -> (i32, i32) {
    %c0_i32 = arith.constant 0 : i32
    %c0_i32_0 = arith.constant 0 : i32
    %c0_i32_1 = arith.constant 0 : i32
    return %c0_i32, %c0_i32_0 : i32, i32
  }
  func.func @transform_6(%arg0: i32, %arg1: i32) -> (i32, i32) {
    %c0_i32 = arith.constant 0 : i32
    %c0_i32_0 = arith.constant 0 : i32
    return %arg0, %c0_i32 : i32, i32
  }
}

</mosaic_0001>

<llo_original>
// kernel: graphsage_forward.3
$region0: #{graphsage_forward.3}
  #allocation0 [shape = 'u32[]', space=smem, size = 0x4, offset = 0x4, fixed_abs, tag = 'smem constant byte address 0x4 - core index']
  #allocation1 [shape = 'u32[72,128]{1,0:T(1,128)}', space=vmem, size = 0x9000, scoped, tag = 'internal scratch']
  #allocation2 [shape = 'f32[128,128]{1,0:T(8,128)}', space=vmem, size = 0x10000, scoped, tag = 'scratch operand']
  %s0 = inlined_call_operand.vmem [shape: s8[512,512], index: 0, kind: input, shape index: {}]
  %s1 = inlined_call_operand.vmem [shape: bf16[512,128], index: 1, kind: input, shape index: {}, may-alias: {1,2}]
  %s2 = inlined_call_operand.vmem [shape: bf16[512,128], index: 2, kind: input, shape index: {}, may-alias: {1,2}]
  %s3 = inlined_call_operand.vmem [shape: f32[512,1], index: 3, kind: input, shape index: {}]
  %s4 = inlined_call_operand.vmem [shape: f32[128,128], index: 4, kind: input, shape index: {}]
  %s5 = inlined_call_operand.vmem [shape: f32[128,128], index: 5, kind: input, shape index: {}]
  %s6 = inlined_call_operand.vmem [shape: f32[1,128], index: 6, kind: input, shape index: {}]
  %s7 = inlined_call_operand.vmem [shape: bf16[512,128], index: 7, kind: output, shape index: {}]
  %s8 = sld [smem:[#allocation0]]
  $region69: #{graphsage_forward.3} parent=0
    _
  %s10 = ssub.s32 1, %s8
  %s11 = scalar_select 0, %s10, %s8
  loop: start=0, step=1, limit=6
  $region2: #{graphsage_forward.3} parent=0 // loop_pre_header
    _
  $region3: #{graphsage_forward.3} parent=0 // loop_header
    %s13 = sphi 0, %s17
    %p14 = scmp.ge.s32.totalorder %s13, 6
    %s20 = sphi 0, %s32
    %s21 = sphi 0, %s28
    %s22 = sphi 0, %s20
    %s23 = sphi 0, %s21
    %s24 = sphi 0, %s22
    %s25 = sphi 0, %s23
    %s37 = sphi 0, %s39
    %s40 = sphi 0, %s37
    %s41 = sphi 0, %s40
    %s57 = sphi 0, %s41
    %s63 = sphi 0, %s65
    %s66 = sphi 0, %s63
    %s67 = sphi 0, %s66
    %s83 = sphi 0, %s67
    %s89 = sphi 0, %s91
    %s92 = sphi 0, %s89
    %s93 = sphi 0, %s92
    %s109 = sphi 0, %s93
    %s115 = sphi 0, %s117
    %s118 = sphi 0, %s115
    %s119 = sphi 0, %s118
    %s135 = sphi 0, %s119
    %s139 = sphi 0, %s139
    %s141 = sphi 0, %s139
    %s142 = sphi 0, %s141
    %s156 = sphi 0, %s142
    %s160 = sphi 0, %s160
    %s162 = sphi 0, %s160
    %s163 = sphi 0, %s162
    %s177 = sphi 0, %s163
    %s181 = sphi 0, %s181
    %s183 = sphi 0, %s181
    %s184 = sphi 0, %s183
    %s198 = sphi 0, %s184
    %s204 = sphi 0, %s206
    %s207 = sphi 0, %s204
    %s208 = sphi 0, %s207
    %s224 = sphi 0, %s208
  $region4: #{graphsage_forward.3} parent=0 // loop_header_branch
    %16 = sbr.rel (%p14) target = $region8
  $region5: #{graphsage_forward.3} parent=0 // loop_body
    %s18 = ssub.s32 %s13, 1
    %s19 = ssub.s32 %s13, 2
    %s26 = sadd.s32 1, %s21
    %p27 = scmp.ge.s32.totalorder %s26, 1
    %s28 = scalar_select %p27, 0, %s26
    %s29 = sadd.s32 1, %s20
    %s30 = scalar_select %p27, %s29, %s20
    %p31 = scmp.ge.s32.totalorder %s30, 4
    %s32 = scalar_select %p31, 0, %s30
    %s33 = ssub.s32 %s20, %s32
    %s34 = ssub.s32 %s21, %s28
    %s35 = sor.u32 %s33, %s34
    %p36 = scmp.eq.s32.totalorder %s35, 0
    %s38 = sadd.s32 %s37, 1
    %s39 = scalar_select %p36, %s37, %s38
    %p42 = pneg %p36
    %p43 = scmp.eq.s32.totalorder %s13, 3
    %p44 = por %p42, %p43
    %p45 = scmp.ne.s32.totalorder %s37, %s40
    %p46 = scmp.eq.s32.totalorder %s13, 0
    %p47 = por %p45, %p46
    %p48 = scmp.ne.s32.totalorder %s37, %s40
    %p49 = scmp.eq.s32.totalorder %s18, 3
    %p50 = por %p48, %p49
    %p51 = scmp.ne.s32.totalorder %s40, %s41
    %p52 = scmp.eq.s32.totalorder %s18, 0
    %p53 = por %p51, %p52
    %p54 = scmp.ne.s32.totalorder %s40, %s41
    %p55 = scmp.eq.s32.totalorder %s19, 3
    %p56 = por %p54, %p55
    %p58 = scmp.ne.s32.totalorder %s41, %s57
    %p59 = scmp.eq.s32.totalorder %s19, 0
    %p60 = por %p58, %p59
    %s61 = ssub.s32 %s21, %s28
    %p62 = scmp.eq.s32.totalorder %s61, 0
    %s64 = sadd.s32 %s63, 1
    %s65 = scalar_select %p62, %s63, %s64
    %p68 = pneg %p62
    %p69 = scmp.eq.s32.totalorder %s13, 3
    %p70 = por %p68, %p69
    %p71 = scmp.ne.s32.totalorder %s63, %s66
    %p72 = scmp.eq.s32.totalorder %s13, 0
    %p73 = por %p71, %p72
    %p74 = scmp.ne.s32.totalorder %s63, %s66
    %p75 = scmp.eq.s32.totalorder %s18, 3
    %p76 = por %p74, %p75
    %p77 = scmp.ne.s32.totalorder %s66, %s67
    %p78 = scmp.eq.s32.totalorder %s18, 0
    %p79 = por %p77, %p78
    %p80 = scmp.ne.s32.totalorder %s66, %s67
    %p81 = scmp.eq.s32.totalorder %s19, 3
    %p82 = por %p80, %p81
    %p84 = scmp.ne.s32.totalorder %s67, %s83
    %p85 = scmp.eq.s32.totalorder %s19, 0
    %p86 = por %p84, %p85
    %s87 = ssub.s32 %s20, %s32
    %p88 = scmp.eq.s32.totalorder %s87, 0
    %s90 = sadd.s32 %s89, 1
    %s91 = scalar_select %p88, %s89, %s90
    %p94 = pneg %p88
    %p95 = scmp.eq.s32.totalorder %s13, 3
    %p96 = por %p94, %p95
    %p97 = scmp.ne.s32.totalorder %s89, %s92
    %p98 = scmp.eq.s32.totalorder %s13, 0
    %p99 = por %p97, %p98
    %p100 = scmp.ne.s32.totalorder %s89, %s92
    %p101 = scmp.eq.s32.totalorder %s18, 3
    %p102 = por %p100, %p101
    %p103 = scmp.ne.s32.totalorder %s92, %s93
    %p104 = scmp.eq.s32.totalorder %s18, 0
    %p105 = por %p103, %p104
    %p106 = scmp.ne.s32.totalorder %s92, %s93
    %p107 = scmp.eq.s32.totalorder %s19, 3
    %p108 = por %p106, %p107
    %p110 = scmp.ne.s32.totalorder %s93, %s109
    %p111 = scmp.eq.s32.totalorder %s19, 0
    %p112 = por %p110, %p111
    %s113 = ssub.s32 %s20, %s32
    %p114 = scmp.eq.s32.totalorder %s113, 0
    %s116 = sadd.s32 %s115, 1
    %s117 = scalar_select %p114, %s115, %s116
    %p120 = pneg %p114
    %p121 = scmp.eq.s32.totalorder %s13, 3
    %p122 = por %p120, %p121
    %p123 = scmp.ne.s32.totalorder %s115, %s118
    %p124 = scmp.eq.s32.totalorder %s13, 0
    %p125 = por %p123, %p124
    %p126 = scmp.ne.s32.totalorder %s115, %s118
    %p127 = scmp.eq.s32.totalorder %s18, 3
    %p128 = por %p126, %p127
    %p129 = scmp.ne.s32.totalorder %s118, %s119
    %p130 = scmp.eq.s32.totalorder %s18, 0
    %p131 = por %p129, %p130
    %p132 = scmp.ne.s32.totalorder %s118, %s119
    %p133 = scmp.eq.s32.totalorder %s19, 3
    %p134 = por %p132, %p133
    %p136 = scmp.ne.s32.totalorder %s119, %s135
    %p137 = scmp.eq.s32.totalorder %s19, 0
    %p138 = por %p136, %p137
    %s140 = sadd.s32 %s139, 1
    %p143 = scmp.eq.s32.totalorder %s13, 3
    %p144 = scmp.ne.s32.totalorder %s139, %s141
    %p145 = scmp.eq.s32.totalorder %s13, 0
    %p146 = por %p144, %p145
    %p147 = scmp.ne.s32.totalorder %s139, %s141
    %p148 = scmp.eq.s32.totalorder %s18, 3
    %p149 = por %p147, %p148
    %p150 = scmp.ne.s32.totalorder %s141, %s142
    %p151 = scmp.eq.s32.totalorder %s18, 0
    %p152 = por %p150, %p151
    %p153 = scmp.ne.s32.totalorder %s141, %s142
    %p154 = scmp.eq.s32.totalorder %s19, 3
    %p155 = por %p153, %p154
    %p157 = scmp.ne.s32.totalorder %s142, %s156
    %p158 = scmp.eq.s32.totalorder %s19, 0
    %p159 = por %p157, %p158
    %s161 = sadd.s32 %s160, 1
    %p164 = scmp.eq.s32.totalorder %s13, 3
    %p165 = scmp.ne.s32.totalorder %s160, %s162
    %p166 = scmp.eq.s32.totalorder %s13, 0
    %p167 = por %p165, %p166
    %p168 = scmp.ne.s32.totalorder %s160, %s162
    %p169 = scmp.eq.s32.totalorder %s18, 3
    %p170 = por %p168, %p169
    %p171 = scmp.ne.s32.totalorder %s162, %s163
    %p172 = scmp.eq.s32.totalorder %s18, 0
    %p173 = por %p171, %p172
    %p174 = scmp.ne.s32.totalorder %s162, %s163
    %p175 = scmp.eq.s32.totalorder %s19, 3
    %p176 = por %p174, %p175
    %p178 = scmp.ne.s32.totalorder %s163, %s177
    %p179 = scmp.eq.s32.totalorder %s19, 0
    %p180 = por %p178, %p179
    %s182 = sadd.s32 %s181, 1
    %p185 = scmp.eq.s32.totalorder %s13, 3
    %p186 = scmp.ne.s32.totalorder %s181, %s183
    %p187 = scmp.eq.s32.totalorder %s13, 0
    %p188 = por %p186, %p187
    %p189 = scmp.ne.s32.totalorder %s181, %s183
    %p190 = scmp.eq.s32.totalorder %s18, 3
    %p191 = por %p189, %p190
    %p192 = scmp.ne.s32.totalorder %s183, %s184
    %p193 = scmp.eq.s32.totalorder %s18, 0
    %p194 = por %p192, %p193
    %p195 = scmp.ne.s32.totalorder %s183, %s184
    %p196 = scmp.eq.s32.totalorder %s19, 3
    %p197 = por %p195, %p196
    %p199 = scmp.ne.s32.totalorder %s184, %s198
    %p200 = scmp.eq.s32.totalorder %s19, 0
    %p201 = por %p199, %p200
    %s202 = ssub.s32 %s20, %s32
    %p203 = scmp.eq.s32.totalorder %s202, 0
    %s205 = sadd.s32 %s204, 1
    %s206 = scalar_select %p203, %s204, %s205
    %p209 = pneg %p203
    %p210 = scmp.eq.s32.totalorder %s13, 3
    %p211 = por %p209, %p210
    %p212 = scmp.ne.s32.totalorder %s204, %s207
    %p213 = scmp.eq.s32.totalorder %s13, 0
    %p214 = por %p212, %p213
    %p215 = scmp.ne.s32.totalorder %s204, %s207
    %p216 = scmp.eq.s32.totalorder %s18, 3
    %p217 = por %p215, %p216
    %p218 = scmp.ne.s32.totalorder %s207, %s208
    %p219 = scmp.eq.s32.totalorder %s18, 0
    %p220 = por %p218, %p219
    %p221 = scmp.ne.s32.totalorder %s207, %s208
    %p222 = scmp.eq.s32.totalorder %s19, 3
    %p223 = por %p221, %p222
    %p225 = scmp.ne.s32.totalorder %s208, %s224
    %p226 = scmp.eq.s32.totalorder %s19, 0
    %p227 = por %p225, %p226
    %p228 = scmp.le.s32.totalorder 1, %s13
    %p229 = scmp.lt.s32.totalorder %s13, 5
    %p230 = pnand %p228, %p229
    %p231 = pneg %p230
    // Predicated region
    $region9: #{graphsage_forward.3} parent=5 // pred_check
      _
    $region10: #{graphsage_forward.3} parent=5 // pred_check_branch
      %233 = sbr.rel (%p230) target = $region12
    $region11: #{graphsage_forward.3} parent=5 // pred_region
      %s234 = ssub.s32 %s13, 1
      // Predicated region
      $region13: #{graphsage_forward.3} parent=11 // pred_check
        %p235 = pneg %p79
      $region14: #{graphsage_forward.3} parent=11 // pred_check_branch
        %237 = sbr.rel (%p235) target = $region16
      $region15: #{graphsage_forward.3} parent=11 // pred_region
        %s238 = smul.u32 64, %s23
        %p239 = scmp.lt.s32.totalorder %s238, 63
        %s240 = scalar_select %p239, %s238, 63
        %s241 = smul.addr %s240, 4
        %s242 = scalar_lea.vmem %s1, %s241
        %s243 = smul.u32 64, %s23
      $region16: #{graphsage_forward.3} parent=11 // pred_fallthru
        _
      // Predicated region
      $region17: #{graphsage_forward.3} parent=11 // pred_check
        %p244 = pneg %p152
      $region18: #{graphsage_forward.3} parent=11 // pred_check_branch
        %246 = sbr.rel (%p244) target = $region20
      $region19: #{graphsage_forward.3} parent=11 // pred_region
        _
      $region20: #{graphsage_forward.3} parent=11 // pred_fallthru
        _
      // Predicated region
      $region21: #{graphsage_forward.3} parent=11 // pred_check
        %p247 = pneg %p173
      $region22: #{graphsage_forward.3} parent=11 // pred_check_branch
        %249 = sbr.rel (%p247) target = $region24
      $region23: #{graphsage_forward.3} parent=11 // pred_region
        _
      $region24: #{graphsage_forward.3} parent=11 // pred_fallthru
        _
      // Predicated region
      $region25: #{graphsage_forward.3} parent=11 // pred_check
        %p250 = pneg %p194
      $region26: #{graphsage_forward.3} parent=11 // pred_check_branch
        %252 = sbr.rel (%p250) target = $region28
      $region27: #{graphsage_forward.3} parent=11 // pred_region
        _
      $region28: #{graphsage_forward.3} parent=11 // pred_fallthru
        _
    $region12: #{graphsage_forward.3} parent=5 // pred_fallthru
      _
    %p253 = scmp.lt.s32.totalorder %s13, 4
    // Predicated region
    $region29: #{graphsage_forward.3} parent=5 // pred_check
      %p254 = pneg %p253
    $region30: #{graphsage_forward.3} parent=5 // pred_check_branch
      %256 = sbr.rel (%p254) target = $region32
    $region31: #{graphsage_forward.3} parent=5 // pred_region
      // Predicated region
      $region33: #{graphsage_forward.3} parent=31 // pred_check
        %p257 = pneg %p47
      $region34: #{graphsage_forward.3} parent=31 // pred_check_branch
        %259 = sbr.rel (%p257) target = $region36
      $region35: #{graphsage_forward.3} parent=31 // pred_region
        %s260 = smul.u32 4, %s20
        %s261 = smul.u32 4, %s21
        %p262 = scmp.lt.s32.totalorder %s260, 15
        %s263 = scalar_select %p262, %s260, 15
        %p264 = scmp.lt.s32.totalorder %s261, 3
        %s265 = scalar_select %p264, %s261, 3
        %s266 = smul.addr %s263, 4
        %s267 = sadd.s32 %s265, %s266
        %s268 = smul.addr %s267, 8
        %s269 = scalar_lea.vmem %s0, %s268
        %s270 = smul.u32 4, %s20
        %s271 = smul.u32 4, %s21
      $region36: #{graphsage_forward.3} parent=31 // pred_fallthru
        _
      // Predicated region
      $region37: #{graphsage_forward.3} parent=31 // pred_check
        %p272 = pneg %p99
      $region38: #{graphsage_forward.3} parent=31 // pred_check_branch
        %274 = sbr.rel (%p272) target = $region40
      $region39: #{graphsage_forward.3} parent=31 // pred_region
        %s275 = smul.u32 16, %s20
        %p276 = scmp.lt.s32.totalorder %s275, 63
        %s277 = scalar_select %p276, %s275, 63
        %s278 = smul.addr %s277, 4
        %s279 = scalar_lea.vmem %s2, %s278
        %s280 = smul.u32 16, %s20
      $region40: #{graphsage_forward.3} parent=31 // pred_fallthru
        _
      // Predicated region
      $region41: #{graphsage_forward.3} parent=31 // pred_check
        %p281 = pneg %p125
      $region42: #{graphsage_forward.3} parent=31 // pred_check_branch
        %283 = sbr.rel (%p281) target = $region44
      $region43: #{graphsage_forward.3} parent=31 // pred_region
        %s284 = smul.u32 16, %s20
        %p285 = scmp.lt.s32.totalorder %s284, 63
        %s286 = scalar_select %p285, %s284, 63
        %s287 = smul.addr %s286, 8
        %s288 = scalar_lea.vmem %s3, %s287
        %s289 = smul.u32 16, %s20
      $region44: #{graphsage_forward.3} parent=31 // pred_fallthru
        _
    $region32: #{graphsage_forward.3} parent=5 // pred_fallthru
      _
    %p290 = scmp.le.s32.totalorder 1, %s13
    %p291 = scmp.lt.s32.totalorder %s13, 5
    %p292 = pnand %p290, %p291
    %p293 = pneg %p292
    // Predicated region
    $region45: #{graphsage_forward.3} parent=5 // pred_check
      _
    $region46: #{graphsage_forward.3} parent=5 // pred_check_branch
      %295 = sbr.rel (%p292) target = $region48
    $region47: #{graphsage_forward.3} parent=5 // pred_region
      %s296 = ssub.s32 %s13, 1
      %s297 = smul.u32 4, %s22
      %s298 = smul.u32 4, %s23
      %p299 = scmp.lt.s32.totalorder %s297, 15
      %s300 = scalar_select %p299, %s297, 15
      %p301 = scmp.lt.s32.totalorder %s298, 3
      %s302 = scalar_select %p301, %s298, 3
      %s303 = smul.addr %s300, 4
      %s304 = sadd.s32 %s302, %s303
      %s305 = smul.addr %s304, 8
      %s306 = scalar_lea.vmem %s0, %s305
      %p307 = pneg %p53
      %p308 = pneg %p50
      %s309 = smul.u32 64, %s23
      %p310 = scmp.lt.s32.totalorder %s309, 63
      %s311 = scalar_select %p310, %s309, 63
      %s312 = smul.addr %s311, 4
      %s313 = scalar_lea.vmem %s1, %s312
      %p314 = pneg %p79
      %p315 = pneg %p76
      %s316 = smul.u32 16, %s22
      %p317 = scmp.lt.s32.totalorder %s316, 63
      %s318 = scalar_select %p317, %s316, 63
      %s319 = smul.addr %s318, 4
      %s320 = scalar_lea.vmem %s2, %s319
      %p321 = pneg %p105
      %p322 = pneg %p102
      %s323 = smul.u32 16, %s22
      %p324 = scmp.lt.s32.totalorder %s323, 63
      %s325 = scalar_select %p324, %s323, 63
      %s326 = smul.addr %s325, 8
      %s327 = scalar_lea.vmem %s3, %s326
      %p328 = pneg %p131
      %p329 = pneg %p128
      %p330 = pneg %p152
      %p331 = pneg %p149
      %p332 = pneg %p173
      %p333 = pneg %p170
      %p334 = pneg %p194
      %p335 = pneg %p191
      %p336 = pneg %p220
      %p337 = pneg %p217
      %s338 = smul.u32 16, %s22
      %p339 = scmp.lt.s32.totalorder %s338, 63
      %s340 = scalar_select %p339, %s338, 63
      %s341 = smul.addr %s340, 4
      %s342 = scalar_lea.vmem %s7, %s341
      %s343 = smul.u32 4, %s22
      %s344 = smul.u32 4, %s23
      %p345 = scmp.lt.s32.totalorder %s343, 15
      %s346 = scalar_select %p345, %s343, 15
      %p347 = scmp.lt.s32.totalorder %s344, 3
      %s348 = scalar_select %p347, %s344, 3
      %s349 = smul.addr %s346, 4
      %s350 = sadd.s32 %s348, %s349
      %s351 = smul.addr %s350, 8
      %s352 = scalar_lea.vmem %s0, %s351
      %s353 = smul.u32 4, %s22
      %s354 = smul.u32 4, %s23
      %s355 = smul.u32 64, %s23
      %p356 = scmp.lt.s32.totalorder %s355, 63
      %s357 = scalar_select %p356, %s355, 63
      %s358 = smul.addr %s357, 4
      %s359 = scalar_lea.vmem %s1, %s358
      %s360 = smul.u32 64, %s23
      %s361 = smul.u32 16, %s22
      %p362 = scmp.lt.s32.totalorder %s361, 63
      %s363 = scalar_select %p362, %s361, 63
      %s364 = smul.addr %s363, 4
      %s365 = scalar_lea.vmem %s2, %s364
      %s366 = smul.u32 16, %s22
      %s367 = smul.u32 16, %s22
      %p368 = scmp.lt.s32.totalorder %s367, 63
      %s369 = scalar_select %p368, %s367, 63
      %s370 = smul.addr %s369, 8
      %s371 = scalar_lea.vmem %s3, %s370
      %s372 = smul.u32 16, %s22
      %s373 = smul.u32 16, %s22
      %p374 = scmp.lt.s32.totalorder %s373, 63
      %s375 = scalar_select %p374, %s373, 63
      %s376 = smul.addr %s375, 4
      %s377 = scalar_lea.vmem %s7, %s376
      %s378 = smul.u32 16, %s22
      %p379 = scmp.eq.s32.totalorder %s23, 0
      // Predicated region
      $region49: #{graphsage_forward.3} parent=47 // pred_check
        %p380 = pneg %p379
      $region50: #{graphsage_forward.3} parent=47 // pred_check_branch
        %382 = sbr.rel (%p380) target = $region52
      $region51: #{graphsage_forward.3} parent=47 // pred_region
        %383 = vst [vmem:[#allocation2] sm:$0xff] 0.0
        %384 = vst [vmem:[#allocation2 + $0x8] sm:$0xff] 0.0
        %385 = vst [vmem:[#allocation2 + $0x10] sm:$0xff] 0.0
        %386 = vst [vmem:[#allocation2 + $0x18] sm:$0xff] 0.0
        %387 = vst [vmem:[#allocation2 + $0x20] sm:$0xff] 0.0
        %388 = vst [vmem:[#allocation2 + $0x28] sm:$0xff] 0.0
        %389 = vst [vmem:[#allocation2 + $0x30] sm:$0xff] 0.0
        %390 = vst [vmem:[#allocation2 + $0x38] sm:$0xff] 0.0
        %391 = vst [vmem:[#allocation2 + $0x40] sm:$0xff] 0.0
        %392 = vst [vmem:[#allocation2 + $0x48] sm:$0xff] 0.0
        %393 = vst [vmem:[#allocation2 + $0x50] sm:$0xff] 0.0
        %394 = vst [vmem:[#allocation2 + $0x58] sm:$0xff] 0.0
        %395 = vst [vmem:[#allocation2 + $0x60] sm:$0xff] 0.0
        %396 = vst [vmem:[#allocation2 + $0x68] sm:$0xff] 0.0
        %397 = vst [vmem:[#allocation2 + $0x70] sm:$0xff] 0.0
        %398 = vst [vmem:[#allocation2 + $0x78] sm:$0xff] 0.0
      $region52: #{graphsage_forward.3} parent=47 // pred_fallthru
        _
      %v399 = vld [vmem:[#allocation2] sm:$0xff]
      %v400 = vld [vmem:[#allocation2 + $0x8] sm:$0xff]
      %v401 = vld [vmem:[#allocation2 + $0x10] sm:$0xff]
      %v402 = vld [vmem:[#allocation2 + $0x18] sm:$0xff]
      %v403 = vld [vmem:[#allocation2 + $0x20] sm:$0xff]
      %v404 = vld [vmem:[#allocation2 + $0x28] sm:$0xff]
      %v405 = vld [vmem:[#allocation2 + $0x30] sm:$0xff]
      %v406 = vld [vmem:[#allocation2 + $0x38] sm:$0xff]
      %v407 = vld [vmem:[#allocation2 + $0x40] sm:$0xff]
      %v408 = vld [vmem:[#allocation2 + $0x48] sm:$0xff]
      %v409 = vld [vmem:[#allocation2 + $0x50] sm:$0xff]
      %v410 = vld [vmem:[#allocation2 + $0x58] sm:$0xff]
      %v411 = vld [vmem:[#allocation2 + $0x60] sm:$0xff]
      %v412 = vld [vmem:[#allocation2 + $0x68] sm:$0xff]
      %v413 = vld [vmem:[#allocation2 + $0x70] sm:$0xff]
      %v414 = vld [vmem:[#allocation2 + $0x78] sm:$0xff]
      %v415 = vld [vmem:[%s352] sm:$0xff]
      %v416 = vld [vmem:[%s352 + $0x8] sm:$0xff]
      %v417 = vld [vmem:[%s352 + $0x10] sm:$0xff]
      %v418 = vld [vmem:[%s352 + $0x18] sm:$0xff]
      %v419 = vld [vmem:[%s352 + $0x20] sm:$0xff]
      %v420 = vld [vmem:[%s352 + $0x28] sm:$0xff]
      %v421 = vld [vmem:[%s352 + $0x30] sm:$0xff]
      %v422 = vld [vmem:[%s352 + $0x38] sm:$0xff]
      %v423 = vld [vmem:[%s352 + $0x40] sm:$0xff]
      %v424 = vld [vmem:[%s352 + $0x48] sm:$0xff]
      %v425 = vld [vmem:[%s352 + $0x50] sm:$0xff]
      %v426 = vld [vmem:[%s352 + $0x58] sm:$0xff]
      %v427 = vld [vmem:[%s352 + $0x60] sm:$0xff]
      %v428 = vld [vmem:[%s352 + $0x68] sm:$0xff]
      %v429 = vld [vmem:[%s352 + $0x70] sm:$0xff]
      %v430 = vld [vmem:[%s352 + $0x78] sm:$0xff]
      %v431 = vunpack.c.0.s8 %v415
      %v432 = vunpack.c.0.s8 %v416
      %v433 = vunpack.c.0.s8 %v417
      %v434 = vunpack.c.0.s8 %v418
      %v435 = vunpack.c.1.s8 %v415
      %v436 = vunpack.c.1.s8 %v416
      %v437 = vunpack.c.1.s8 %v417
      %v438 = vunpack.c.1.s8 %v418
      %v439 = vunpack.c.2.s8 %v415
      %v440 = vunpack.c.2.s8 %v416
      %v441 = vunpack.c.2.s8 %v417
      %v442 = vunpack.c.2.s8 %v418
      %v443 = vunpack.c.3.s8 %v415
      %v444 = vunpack.c.3.s8 %v416
      %v445 = vunpack.c.3.s8 %v417
      %v446 = vunpack.c.3.s8 %v418
      %v447 = vunpack.c.0.s8 %v419
      %v448 = vunpack.c.0.s8 %v420
      %v449 = vunpack.c.0.s8 %v421
      %v450 = vunpack.c.0.s8 %v422
      %v451 = vunpack.c.1.s8 %v419
      %v452 = vunpack.c.1.s8 %v420
      %v453 = vunpack.c.1.s8 %v421
      %v454 = vunpack.c.1.s8 %v422
      %v455 = vunpack.c.2.s8 %v419
      %v456 = vunpack.c.2.s8 %v420
      %v457 = vunpack.c.2.s8 %v421
      %v458 = vunpack.c.2.s8 %v422
      %v459 = vunpack.c.3.s8 %v419
      %v460 = vunpack.c.3.s8 %v420
      %v461 = vunpack.c.3.s8 %v421
      %v462 = vunpack.c.3.s8 %v422
      %v463 = vunpack.c.0.s8 %v423
      %v464 = vunpack.c.0.s8 %v424
      %v465 = vunpack.c.0.s8 %v425
      %v466 = vunpack.c.0.s8 %v426
      %v467 = vunpack.c.1.s8 %v423
      %v468 = vunpack.c.1.s8 %v424
      %v469 = vunpack.c.1.s8 %v425
      %v470 = vunpack.c.1.s8 %v426
      %v471 = vunpack.c.2.s8 %v423
      %v472 = vunpack.c.2.s8 %v424
      %v473 = vunpack.c.2.s8 %v425
      %v474 = vunpack.c.2.s8 %v426
      %v475 = vunpack.c.3.s8 %v423
      %v476 = vunpack.c.3.s8 %v424
      %v477 = vunpack.c.3.s8 %v425
      %v478 = vunpack.c.3.s8 %v426
      %v479 = vunpack.c.0.s8 %v427
      %v480 = vunpack.c.0.s8 %v428
      %v481 = vunpack.c.0.s8 %v429
      %v482 = vunpack.c.0.s8 %v430
      %v483 = vunpack.c.1.s8 %v427
      %v484 = vunpack.c.1.s8 %v428
      %v485 = vunpack.c.1.s8 %v429
      %v486 = vunpack.c.1.s8 %v430
      %v487 = vunpack.c.2.s8 %v427
      %v488 = vunpack.c.2.s8 %v428
      %v489 = vunpack.c.2.s8 %v429
      %v490 = vunpack.c.2.s8 %v430
      %v491 = vunpack.c.3.s8 %v427
      %v492 = vunpack.c.3.s8 %v428
      %v493 = vunpack.c.3.s8 %v429
      %v494 = vunpack.c.3.s8 %v430
      %v495 = vcvt.s32.f32 %v431
      %v496 = vcvt.s32.f32 %v432
      %v497 = vcvt.s32.f32 %v433
      %v498 = vcvt.s32.f32 %v434
      %v499 = vcvt.s32.f32 %v435
      %v500 = vcvt.s32.f32 %v436
      %v501 = vcvt.s32.f32 %v437
      %v502 = vcvt.s32.f32 %v438
      %v503 = vcvt.s32.f32 %v439
      %v504 = vcvt.s32.f32 %v440
      %v505 = vcvt.s32.f32 %v441
      %v506 = vcvt.s32.f32 %v442
      %v507 = vcvt.s32.f32 %v443
      %v508 = vcvt.s32.f32 %v444
      %v509 = vcvt.s32.f32 %v445
      %v510 = vcvt.s32.f32 %v446
      %v511 = vcvt.s32.f32 %v447
      %v512 = vcvt.s32.f32 %v448
      %v513 = vcvt.s32.f32 %v449
      %v514 = vcvt.s32.f32 %v450
      %v515 = vcvt.s32.f32 %v451
      %v516 = vcvt.s32.f32 %v452
      %v517 = vcvt.s32.f32 %v453
      %v518 = vcvt.s32.f32 %v454
      %v519 = vcvt.s32.f32 %v455
      %v520 = vcvt.s32.f32 %v456
      %v521 = vcvt.s32.f32 %v457
      %v522 = vcvt.s32.f32 %v458
      %v523 = vcvt.s32.f32 %v459
      %v524 = vcvt.s32.f32 %v460
      %v525 = vcvt.s32.f32 %v461
      %v526 = vcvt.s32.f32 %v462
      %v527 = vcvt.s32.f32 %v463
      %v528 = vcvt.s32.f32 %v464
      %v529 = vcvt.s32.f32 %v465
      %v530 = vcvt.s32.f32 %v466
      %v531 = vcvt.s32.f32 %v467
      %v532 = vcvt.s32.f32 %v468
      %v533 = vcvt.s32.f32 %v469
      %v534 = vcvt.s32.f32 %v470
      %v535 = vcvt.s32.f32 %v471
      %v536 = vcvt.s32.f32 %v472
      %v537 = vcvt.s32.f32 %v473
      %v538 = vcvt.s32.f32 %v474
      %v539 = vcvt.s32.f32 %v475
      %v540 = vcvt.s32.f32 %v476
      %v541 = vcvt.s32.f32 %v477
      %v542 = vcvt.s32.f32 %v478
      %v543 = vcvt.s32.f32 %v479
      %v544 = vcvt.s32.f32 %v480
      %v545 = vcvt.s32.f32 %v481
      %v546 = vcvt.s32.f32 %v482
      %v547 = vcvt.s32.f32 %v483
      %v548 = vcvt.s32.f32 %v484
      %v549 = vcvt.s32.f32 %v485
      %v550 = vcvt.s32.f32 %v486
      %v551 = vcvt.s32.f32 %v487
      %v552 = vcvt.s32.f32 %v488
      %v553 = vcvt.s32.f32 %v489
      %v554 = vcvt.s32.f32 %v490
      %v555 = vcvt.s32.f32 %v491
      %v556 = vcvt.s32.f32 %v492
      %v557 = vcvt.s32.f32 %v493
      %v558 = vcvt.s32.f32 %v494
      %v559 = vpack.c.bf16 %v499, %v495
      %v560 = vpack.c.bf16 %v500, %v496
      %v561 = vpack.c.bf16 %v501, %v497
      %v562 = vpack.c.bf16 %v502, %v498
      %v563 = vpack.c.bf16 %v507, %v503
      %v564 = vpack.c.bf16 %v508, %v504
      %v565 = vpack.c.bf16 %v509, %v505
      %v566 = vpack.c.bf16 %v510, %v506
      %v567 = vpack.c.bf16 %v515, %v511
      %v568 = vpack.c.bf16 %v516, %v512
      %v569 = vpack.c.bf16 %v517, %v513
      %v570 = vpack.c.bf16 %v518, %v514
      %v571 = vpack.c.bf16 %v523, %v519
      %v572 = vpack.c.bf16 %v524, %v520
      %v573 = vpack.c.bf16 %v525, %v521
      %v574 = vpack.c.bf16 %v526, %v522
      %v575 = vpack.c.bf16 %v531, %v527
      %v576 = vpack.c.bf16 %v532, %v528
      %v577 = vpack.c.bf16 %v533, %v529
      %v578 = vpack.c.bf16 %v534, %v530
      %v579 = vpack.c.bf16 %v539, %v535
      %v580 = vpack.c.bf16 %v540, %v536
      %v581 = vpack.c.bf16 %v541, %v537
      %v582 = vpack.c.bf16 %v542, %v538
      %v583 = vpack.c.bf16 %v547, %v543
      %v584 = vpack.c.bf16 %v548, %v544
      %v585 = vpack.c.bf16 %v549, %v545
      %v586 = vpack.c.bf16 %v550, %v546
      %v587 = vpack.c.bf16 %v555, %v551
      %v588 = vpack.c.bf16 %v556, %v552
      %v589 = vpack.c.bf16 %v557, %v553
      %v590 = vpack.c.bf16 %v558, %v554
      %v591 = vld [vmem:[%s359] sm:$0xf]
      %v592 = vld [vmem:[%s359 + $0x4] sm:$0xf]
      %v593 = vld [vmem:[%s359 + $0x8] sm:$0xf]
      %v594 = vld [vmem:[%s359 + $0xc] sm:$0xf]
      %v595 = vld [vmem:[%s359 + $0x10] sm:$0xf]
      %v596 = vld [vmem:[%s359 + $0x14] sm:$0xf]
      %v597 = vld [vmem:[%s359 + $0x18] sm:$0xf]
      %v598 = vld [vmem:[%s359 + $0x1c] sm:$0xf]
      %v599 = vld [vmem:[%s359 + $0x20] sm:$0xf]
      %v600 = vld [vmem:[%s359 + $0x24] sm:$0xf]
      %v601 = vld [vmem:[%s359 + $0x28] sm:$0xf]
      %v602 = vld [vmem:[%s359 + $0x2c] sm:$0xf]
      %v603 = vld [vmem:[%s359 + $0x30] sm:$0xf]
      %v604 = vld [vmem:[%s359 + $0x34] sm:$0xf]
      %v605 = vld [vmem:[%s359 + $0x38] sm:$0xf]
      %v606 = vld [vmem:[%s359 + $0x3c] sm:$0xf]
      %v607 = vld [vmem:[%s359 + $0x40] sm:$0xf]
      %v608 = vld [vmem:[%s359 + $0x44] sm:$0xf]
      %v609 = vld [vmem:[%s359 + $0x48] sm:$0xf]
      %v610 = vld [vmem:[%s359 + $0x4c] sm:$0xf]
      %v611 = vld [vmem:[%s359 + $0x50] sm:$0xf]
      %v612 = vld [vmem:[%s359 + $0x54] sm:$0xf]
      %v613 = vld [vmem:[%s359 + $0x58] sm:$0xf]
      %v614 = vld [vmem:[%s359 + $0x5c] sm:$0xf]
      %v615 = vld [vmem:[%s359 + $0x60] sm:$0xf]
      %v616 = vld [vmem:[%s359 + $0x64] sm:$0xf]
      %v617 = vld [vmem:[%s359 + $0x68] sm:$0xf]
      %v618 = vld [vmem:[%s359 + $0x6c] sm:$0xf]
      %v619 = vld [vmem:[%s359 + $0x70] sm:$0xf]
      %v620 = vld [vmem:[%s359 + $0x74] sm:$0xf]
      %v621 = vld [vmem:[%s359 + $0x78] sm:$0xf]
      %v622 = vld [vmem:[%s359 + $0x7c] sm:$0xf]
      %v623 = vld [vmem:[%s359 + $0x80] sm:$0xf]
      %v624 = vld [vmem:[%s359 + $0x84] sm:$0xf]
      %v625 = vld [vmem:[%s359 + $0x88] sm:$0xf]
      %v626 = vld [vmem:[%s359 + $0x8c] sm:$0xf]
      %v627 = vld [vmem:[%s359 + $0x90] sm:$0xf]
      %v628 = vld [vmem:[%s359 + $0x94] sm:$0xf]
      %v629 = vld [vmem:[%s359 + $0x98] sm:$0xf]
      %v630 = vld [vmem:[%s359 + $0x9c] sm:$0xf]
      %v631 = vld [vmem:[%s359 + $0xa0] sm:$0xf]
      %v632 = vld [vmem:[%s359 + $0xa4] sm:$0xf]
      %v633 = vld [vmem:[%s359 + $0xa8] sm:$0xf]
      %v634 = vld [vmem:[%s359 + $0xac] sm:$0xf]
      %v635 = vld [vmem:[%s359 + $0xb0] sm:$0xf]
      %v636 = vld [vmem:[%s359 + $0xb4] sm:$0xf]
      %v637 = vld [vmem:[%s359 + $0xb8] sm:$0xf]
      %v638 = vld [vmem:[%s359 + $0xbc] sm:$0xf]
      %v639 = vld [vmem:[%s359 + $0xc0] sm:$0xf]
      %v640 = vld [vmem:[%s359 + $0xc4] sm:$0xf]
      %v641 = vld [vmem:[%s359 + $0xc8] sm:$0xf]
      %v642 = vld [vmem:[%s359 + $0xcc] sm:$0xf]
      %v643 = vld [vmem:[%s359 + $0xd0] sm:$0xf]
      %v644 = vld [vmem:[%s359 + $0xd4] sm:$0xf]
      %v645 = vld [vmem:[%s359 + $0xd8] sm:$0xf]
      %v646 = vld [vmem:[%s359 + $0xdc] sm:$0xf]
      %v647 = vld [vmem:[%s359 + $0xe0] sm:$0xf]
      %v648 = vld [vmem:[%s359 + $0xe4] sm:$0xf]
      %v649 = vld [vmem:[%s359 + $0xe8] sm:$0xf]
      %v650 = vld [vmem:[%s359 + $0xec] sm:$0xf]
      %v651 = vld [vmem:[%s359 + $0xf0] sm:$0xf]
      %v652 = vld [vmem:[%s359 + $0xf4] sm:$0xf]
      %v653 = vld [vmem:[%s359 + $0xf8] sm:$0xf]
      %v654 = vld [vmem:[%s359 + $0xfc] sm:$0xf]
      %v719 = vunpack.c.l.b16 %v591
      %v720 = vunpack.c.l.b16 %v592
      %v721 = vunpack.c.l.b16 %v593
      %v722 = vunpack.c.l.b16 %v594
      %v723 = vunpack.c.l.b16 %v595
      %v724 = vunpack.c.l.b16 %v596
      %v725 = vunpack.c.l.b16 %v597
      %v726 = vunpack.c.l.b16 %v598
      %v727 = vunpack.c.l.b16 %v599
      %v728 = vunpack.c.l.b16 %v600
      %v729 = vunpack.c.l.b16 %v601
      %v730 = vunpack.c.l.b16 %v602
      %v731 = vunpack.c.l.b16 %v603
      %v732 = vunpack.c.l.b16 %v604
      %v733 = vunpack.c.l.b16 %v605
      %v734 = vunpack.c.l.b16 %v606
      %v735 = vunpack.c.l.b16 %v607
      %v736 = vunpack.c.l.b16 %v608
      %v737 = vunpack.c.l.b16 %v609
      %v738 = vunpack.c.l.b16 %v610
      %v739 = vunpack.c.l.b16 %v611
      %v740 = vunpack.c.l.b16 %v612
      %v741 = vunpack.c.l.b16 %v613
      %v742 = vunpack.c.l.b16 %v614
      %v743 = vunpack.c.l.b16 %v615
      %v744 = vunpack.c.l.b16 %v616
      %v745 = vunpack.c.l.b16 %v617
      %v746 = vunpack.c.l.b16 %v618
      %v747 = vunpack.c.l.b16 %v619
      %v748 = vunpack.c.l.b16 %v620
      %v749 = vunpack.c.l.b16 %v621
      %v750 = vunpack.c.l.b16 %v622
      %v751 = vunpack.c.l.b16 %v623
      %v752 = vunpack.c.l.b16 %v624
      %v753 = vunpack.c.l.b16 %v625
      %v754 = vunpack.c.l.b16 %v626
      %v755 = vunpack.c.l.b16 %v627
      %v756 = vunpack.c.l.b16 %v628
      %v757 = vunpack.c.l.b16 %v629
      %v758 = vunpack.c.l.b16 %v630
      %v759 = vunpack.c.l.b16 %v631
      %v760 = vunpack.c.l.b16 %v632
      %v761 = vunpack.c.l.b16 %v633
      %v762 = vunpack.c.l.b16 %v634
      %v763 = vunpack.c.l.b16 %v635
      %v764 = vunpack.c.l.b16 %v636
      %v765 = vunpack.c.l.b16 %v637
      %v766 = vunpack.c.l.b16 %v638
      %v767 = vunpack.c.l.b16 %v639
      %v768 = vunpack.c.l.b16 %v640
      %v769 = vunpack.c.l.b16 %v641
      %v770 = vunpack.c.l.b16 %v642
      %v771 = vunpack.c.l.b16 %v643
      %v772 = vunpack.c.l.b16 %v644
      %v773 = vunpack.c.l.b16 %v645
      %v774 = vunpack.c.l.b16 %v646
      %v775 = vunpack.c.l.b16 %v647
      %v776 = vunpack.c.l.b16 %v648
      %v777 = vunpack.c.l.b16 %v649
      %v778 = vunpack.c.l.b16 %v650
      %v779 = vunpack.c.l.b16 %v651
      %v780 = vunpack.c.l.b16 %v652
      %v781 = vunpack.c.l.b16 %v653
      %v782 = vunpack.c.l.b16 %v654
      %v783 = vpack.c.b16 %v720, %v719
      %v784 = vpack.c.b16 %v722, %v721
      %v785 = vpack.c.b16 %v724, %v723
      %v786 = vpack.c.b16 %v726, %v725
      %v787 = vpack.c.b16 %v728, %v727
      %v788 = vpack.c.b16 %v730, %v729
      %v789 = vpack.c.b16 %v732, %v731
      %v790 = vpack.c.b16 %v734, %v733
      %v791 = vpack.c.b16 %v736, %v735
      %v792 = vpack.c.b16 %v738, %v737
      %v793 = vpack.c.b16 %v740, %v739
      %v794 = vpack.c.b16 %v742, %v741
      %v795 = vpack.c.b16 %v744, %v743
      %v796 = vpack.c.b16 %v746, %v745
      %v797 = vpack.c.b16 %v748, %v747
      %v798 = vpack.c.b16 %v750, %v749
      %v799 = vpack.c.b16 %v752, %v751
      %v800 = vpack.c.b16 %v754, %v753
      %v801 = vpack.c.b16 %v756, %v755
      %v802 = vpack.c.b16 %v758, %v757
      %v803 = vpack.c.b16 %v760, %v759
      %v804 = vpack.c.b16 %v762, %v761
      %v805 = vpack.c.b16 %v764, %v763
      %v806 = vpack.c.b16 %v766, %v765
      %v807 = vpack.c.b16 %v768, %v767
      %v808 = vpack.c.b16 %v770, %v769
      %v809 = vpack.c.b16 %v772, %v771
      %v810 = vpack.c.b16 %v774, %v773
      %v811 = vpack.c.b16 %v776, %v775
      %v812 = vpack.c.b16 %v778, %v777
      %v813 = vpack.c.b16 %v780, %v779
      %v814 = vpack.c.b16 %v782, %v781
      %847 = vmatpush.bf16.msra.mxu0 %v790
      %848 = vmatpush.bf16.msra.mxu0 %v789
      %849 = vmatpush.bf16.msra.mxu0 %v788
      %850 = vmatpush.bf16.msra.mxu0 %v787
      %851 = vmatpush.bf16.msra.mxu0 %v786
      %852 = vmatpush.bf16.msra.mxu0 %v785
      %853 = vmatpush.bf16.msra.mxu0 %v784
      %854 = vmatpush.bf16.msra.mxu0 %v783
      %855 = vmatmul.bf16.gmra.mxu0 %v559
      %v856 = vpop.f32.mrf.mxu0
      %v857 = vadd.f32 0.0, %v856
      %v858 = vpop.f32.mrf.mxu0
      %v859 = vadd.f32 0.0, %v858
      %860 = vmatmul.bf16.gmra.mxu0 %v563
      %v861 = vpop.f32.mrf.mxu0
      %v862 = vadd.f32 0.0, %v861
      %v863 = vpop.f32.mrf.mxu0
      %v864 = vadd.f32 0.0, %v863
      %865 = vmatmul.bf16.gmra.mxu0 %v567
      %v866 = vpop.f32.mrf.mxu0
      %v867 = vadd.f32 0.0, %v866
      %v868 = vpop.f32.mrf.mxu0
      %v869 = vadd.f32 0.0, %v868
      %870 = vmatmul.bf16.gmra.mxu0 %v571
      %v871 = vpop.f32.mrf.mxu0
      %v872 = vadd.f32 0.0, %v871
      %v873 = vpop.f32.mrf.mxu0
      %v874 = vadd.f32 0.0, %v873
      %875 = vmatmul.bf16.gmra.mxu0 %v575
      %v876 = vpop.f32.mrf.mxu0
      %v877 = vadd.f32 0.0, %v876
      %v878 = vpop.f32.mrf.mxu0
      %v879 = vadd.f32 0.0, %v878
      %880 = vmatmul.bf16.gmra.mxu0 %v579
      %v881 = vpop.f32.mrf.mxu0
      %v882 = vadd.f32 0.0, %v881
      %v883 = vpop.f32.mrf.mxu0
      %v884 = vadd.f32 0.0, %v883
      %885 = vmatmul.bf16.gmra.mxu0 %v583
      %v886 = vpop.f32.mrf.mxu0
      %v887 = vadd.f32 0.0, %v886
      %v888 = vpop.f32.mrf.mxu0
      %v889 = vadd.f32 0.0, %v888
      %890 = vmatmul.bf16.gmra.mxu0 %v587
      %v891 = vpop.f32.mrf.mxu0
      %v892 = vadd.f32 0.0, %v891
      %v893 = vpop.f32.mrf.mxu0
      %v894 = vadd.f32 0.0, %v893
      %895 = vdwg.mxu0
      %896 = vmatpush.bf16.msra.mxu0 %v798
      %897 = vmatpush.bf16.msra.mxu0 %v797
      %898 = vmatpush.bf16.msra.mxu0 %v796
      %899 = vmatpush.bf16.msra.mxu0 %v795
      %900 = vmatpush.bf16.msra.mxu0 %v794
      %901 = vmatpush.bf16.msra.mxu0 %v793
      %902 = vmatpush.bf16.msra.mxu0 %v792
      %903 = vmatpush.bf16.msra.mxu0 %v791
      %904 = vmatmul.bf16.gmra.mxu0 %v560
      %v905 = vpop.f32.mrf.mxu0
      %v906 = vadd.f32 %v857, %v905
      %v907 = vpop.f32.mrf.mxu0
      %v908 = vadd.f32 %v859, %v907
      %909 = vmatmul.bf16.gmra.mxu0 %v564
      %v910 = vpop.f32.mrf.mxu0
      %v911 = vadd.f32 %v862, %v910
      %v912 = vpop.f32.mrf.mxu0
      %v913 = vadd.f32 %v864, %v912
      %914 = vmatmul.bf16.gmra.mxu0 %v568
      %v915 = vpop.f32.mrf.mxu0
      %v916 = vadd.f32 %v867, %v915
      %v917 = vpop.f32.mrf.mxu0
      %v918 = vadd.f32 %v869, %v917
      %919 = vmatmul.bf16.gmra.mxu0 %v572
      %v920 = vpop.f32.mrf.mxu0
      %v921 = vadd.f32 %v872, %v920
      %v922 = vpop.f32.mrf.mxu0
      %v923 = vadd.f32 %v874, %v922
      %924 = vmatmul.bf16.gmra.mxu0 %v576
      %v925 = vpop.f32.mrf.mxu0
      %v926 = vadd.f32 %v877, %v925
      %v927 = vpop.f32.mrf.mxu0
      %v928 = vadd.f32 %v879, %v927
      %929 = vmatmul.bf16.gmra.mxu0 %v580
      %v930 = vpop.f32.mrf.mxu0
      %v931 = vadd.f32 %v882, %v930
      %v932 = vpop.f32.mrf.mxu0
      %v933 = vadd.f32 %v884, %v932
      %934 = vmatmul.bf16.gmra.mxu0 %v584
      %v935 = vpop.f32.mrf.mxu0
      %v936 = vadd.f32 %v887, %v935
      %v937 = vpop.f32.mrf.mxu0
      %v938 = vadd.f32 %v889, %v937
      %939 = vmatmul.bf16.gmra.mxu0 %v588
      %v940 = vpop.f32.mrf.mxu0
      %v941 = vadd.f32 %v892, %v940
      %v942 = vpop.f32.mrf.mxu0
      %v943 = vadd.f32 %v894, %v942
      %944 = vdwg.mxu0
      %945 = vmatpush.bf16.msra.mxu0 %v806
      %946 = vmatpush.bf16.msra.mxu0 %v805
      %947 = vmatpush.bf16.msra.mxu0 %v804
      %948 = vmatpush.bf16.msra.mxu0 %v803
      %949 = vmatpush.bf16.msra.mxu0 %v802
      %950 = vmatpush.bf16.msra.mxu0 %v801
      %951 = vmatpush.bf16.msra.mxu0 %v800
      %952 = vmatpush.bf16.msra.mxu0 %v799
      %953 = vmatmul.bf16.gmra.mxu0 %v561
      %v954 = vpop.f32.mrf.mxu0
      %v955 = vadd.f32 %v906, %v954
      %v956 = vpop.f32.mrf.mxu0
      %v957 = vadd.f32 %v908, %v956
      %958 = vmatmul.bf16.gmra.mxu0 %v565
      %v959 = vpop.f32.mrf.mxu0
      %v960 = vadd.f32 %v911, %v959
      %v961 = vpop.f32.mrf.mxu0
      %v962 = vadd.f32 %v913, %v961
      %963 = vmatmul.bf16.gmra.mxu0 %v569
      %v964 = vpop.f32.mrf.mxu0
      %v965 = vadd.f32 %v916, %v964
      %v966 = vpop.f32.mrf.mxu0
      %v967 = vadd.f32 %v918, %v966
      %968 = vmatmul.bf16.gmra.mxu0 %v573
      %v969 = vpop.f32.mrf.mxu0
      %v970 = vadd.f32 %v921, %v969
      %v971 = vpop.f32.mrf.mxu0
      %v972 = vadd.f32 %v923, %v971
      %973 = vmatmul.bf16.gmra.mxu0 %v577
      %v974 = vpop.f32.mrf.mxu0
      %v975 = vadd.f32 %v926, %v974
      %v976 = vpop.f32.mrf.mxu0
      %v977 = vadd.f32 %v928, %v976
      %978 = vmatmul.bf16.gmra.mxu0 %v581
      %v979 = vpop.f32.mrf.mxu0
      %v980 = vadd.f32 %v931, %v979
      %v981 = vpop.f32.mrf.mxu0
      %v982 = vadd.f32 %v933, %v981
      %983 = vmatmul.bf16.gmra.mxu0 %v585
      %v984 = vpop.f32.mrf.mxu0
      %v985 = vadd.f32 %v936, %v984
      %v986 = vpop.f32.mrf.mxu0
      %v987 = vadd.f32 %v938, %v986
      %988 = vmatmul.bf16.gmra.mxu0 %v589
      %v989 = vpop.f32.mrf.mxu0
      %v990 = vadd.f32 %v941, %v989
      %v991 = vpop.f32.mrf.mxu0
      %v992 = vadd.f32 %v943, %v991
      %993 = vdwg.mxu0
      %994 = vmatpush.bf16.msra.mxu0 %v814
      %995 = vmatpush.bf16.msra.mxu0 %v813
      %996 = vmatpush.bf16.msra.mxu0 %v812
      %997 = vmatpush.bf16.msra.mxu0 %v811
      %998 = vmatpush.bf16.msra.mxu0 %v810
      %999 = vmatpush.bf16.msra.mxu0 %v809
      %1000 = vmatpush.bf16.msra.mxu0 %v808
      %1001 = vmatpush.bf16.msra.mxu0 %v807
      %1002 = vmatmul.bf16.gmra.mxu0 %v562
      %v1003 = vpop.f32.mrf.mxu0
      %v1004 = vadd.f32 %v955, %v1003
      %v1005 = vpop.f32.mrf.mxu0
      %v1006 = vadd.f32 %v957, %v1005
      %1007 = vmatmul.bf16.gmra.mxu0 %v566
      %v1008 = vpop.f32.mrf.mxu0
      %v1009 = vadd.f32 %v960, %v1008
      %v1010 = vpop.f32.mrf.mxu0
      %v1011 = vadd.f32 %v962, %v1010
      %1012 = vmatmul.bf16.gmra.mxu0 %v570
      %v1013 = vpop.f32.mrf.mxu0
      %v1014 = vadd.f32 %v965, %v1013
      %v1015 = vpop.f32.mrf.mxu0
      %v1016 = vadd.f32 %v967, %v1015
      %1017 = vmatmul.bf16.gmra.mxu0 %v574
      %v1018 = vpop.f32.mrf.mxu0
      %v1019 = vadd.f32 %v970, %v1018
      %v1020 = vpop.f32.mrf.mxu0
      %v1021 = vadd.f32 %v972, %v1020
      %1022 = vmatmul.bf16.gmra.mxu0 %v578
      %v1023 = vpop.f32.mrf.mxu0
      %v1024 = vadd.f32 %v975, %v1023
      %v1025 = vpop.f32.mrf.mxu0
      %v1026 = vadd.f32 %v977, %v1025
      %1027 = vmatmul.bf16.gmra.mxu0 %v582
      %v1028 = vpop.f32.mrf.mxu0
      %v1029 = vadd.f32 %v980, %v1028
      %v1030 = vpop.f32.mrf.mxu0
      %v1031 = vadd.f32 %v982, %v1030
      %1032 = vmatmul.bf16.gmra.mxu0 %v586
      %v1033 = vpop.f32.mrf.mxu0
      %v1034 = vadd.f32 %v985, %v1033
      %v1035 = vpop.f32.mrf.mxu0
      %v1036 = vadd.f32 %v987, %v1035
      %1037 = vmatmul.bf16.gmra.mxu0 %v590
      %v1038 = vpop.f32.mrf.mxu0
      %v1039 = vadd.f32 %v990, %v1038
      %v1040 = vpop.f32.mrf.mxu0
      %v1041 = vadd.f32 %v992, %v1040
      %1042 = vdwg.mxu0
      %v1043 = vadd.f32 %v399, %v1004
      %v1044 = vadd.f32 %v400, %v1006
      %v1045 = vadd.f32 %v401, %v1009
      %v1046 = vadd.f32 %v402, %v1011
      %v1047 = vadd.f32 %v403, %v1014
      %v1048 = vadd.f32 %v404, %v1016
      %v1049 = vadd.f32 %v405, %v1019
      %v1050 = vadd.f32 %v406, %v1021
      %v1051 = vadd.f32 %v407, %v1024
      %v1052 = vadd.f32 %v408, %v1026
      %v1053 = vadd.f32 %v409, %v1029
      %v1054 = vadd.f32 %v410, %v1031
      %v1055 = vadd.f32 %v411, %v1034
      %v1056 = vadd.f32 %v412, %v1036
      %v1057 = vadd.f32 %v413, %v1039
      %v1058 = vadd.f32 %v414, %v1041
      %1059 = vst [vmem:[#allocation2] sm:$0xff] %v1043
      %1060 = vst [vmem:[#allocation2 + $0x8] sm:$0xff] %v1044
      %1061 = vst [vmem:[#allocation2 + $0x10] sm:$0xff] %v1045
      %1062 = vst [vmem:[#allocation2 + $0x18] sm:$0xff] %v1046
      %1063 = vst [vmem:[#allocation2 + $0x20] sm:$0xff] %v1047
      %1064 = vst [vmem:[#allocation2 + $0x28] sm:$0xff] %v1048
      %1065 = vst [vmem:[#allocation2 + $0x30] sm:$0xff] %v1049
      %1066 = vst [vmem:[#allocation2 + $0x38] sm:$0xff] %v1050
      %1067 = vst [vmem:[#allocation2 + $0x40] sm:$0xff] %v1051
      %1068 = vst [vmem:[#allocation2 + $0x48] sm:$0xff] %v1052
      %1069 = vst [vmem:[#allocation2 + $0x50] sm:$0xff] %v1053
      %1070 = vst [vmem:[#allocation2 + $0x58] sm:$0xff] %v1054
      %1071 = vst [vmem:[#allocation2 + $0x60] sm:$0xff] %v1055
      %1072 = vst [vmem:[#allocation2 + $0x68] sm:$0xff] %v1056
      %1073 = vst [vmem:[#allocation2 + $0x70] sm:$0xff] %v1057
      %1074 = vst [vmem:[#allocation2 + $0x78] sm:$0xff] %v1058
      // Predicated region
      $region53: #{graphsage_forward.3} parent=47 // pred_check
        %p1075 = pneg %p379
      $region54: #{graphsage_forward.3} parent=47 // pred_check_branch
        %1077 = sbr.rel (%p1075) target = $region56
      $region55: #{graphsage_forward.3} parent=47 // pred_region
        %v1078 = vld [vmem:[#allocation2] sm:$0xff]
        %v1079 = vld [vmem:[#allocation2 + $0x8] sm:$0xff]
        %v1080 = vld [vmem:[#allocation2 + $0x10] sm:$0xff]
        %v1081 = vld [vmem:[#allocation2 + $0x18] sm:$0xff]
        %v1082 = vld [vmem:[#allocation2 + $0x20] sm:$0xff]
        %v1083 = vld [vmem:[#allocation2 + $0x28] sm:$0xff]
        %v1084 = vld [vmem:[#allocation2 + $0x30] sm:$0xff]
        %v1085 = vld [vmem:[#allocation2 + $0x38] sm:$0xff]
        %v1086 = vld [vmem:[#allocation2 + $0x40] sm:$0xff]
        %v1087 = vld [vmem:[#allocation2 + $0x48] sm:$0xff]
        %v1088 = vld [vmem:[#allocation2 + $0x50] sm:$0xff]
        %v1089 = vld [vmem:[#allocation2 + $0x58] sm:$0xff]
        %v1090 = vld [vmem:[#allocation2 + $0x60] sm:$0xff]
        %v1091 = vld [vmem:[#allocation2 + $0x68] sm:$0xff]
        %v1092 = vld [vmem:[#allocation2 + $0x70] sm:$0xff]
        %v1093 = vld [vmem:[#allocation2 + $0x78] sm:$0xff]
        %v1094 = vld [vmem:[%s371] sm:$0xff]
        %v1095 = vld [vmem:[%s371 + $0x8] sm:$0xff]
        %v1096 = vld [vmem:[%s371 + $0x10] sm:$0xff]
        %v1097 = vld [vmem:[%s371 + $0x18] sm:$0xff]
        %v1098 = vld [vmem:[%s371 + $0x20] sm:$0xff]
        %v1099 = vld [vmem:[%s371 + $0x28] sm:$0xff]
        %v1100 = vld [vmem:[%s371 + $0x30] sm:$0xff]
        %v1101 = vld [vmem:[%s371 + $0x38] sm:$0xff]
        %v1102 = vld [vmem:[%s371 + $0x40] sm:$0xff]
        %v1103 = vld [vmem:[%s371 + $0x48] sm:$0xff]
        %v1104 = vld [vmem:[%s371 + $0x50] sm:$0xff]
        %v1105 = vld [vmem:[%s371 + $0x58] sm:$0xff]
        %v1106 = vld [vmem:[%s371 + $0x60] sm:$0xff]
        %v1107 = vld [vmem:[%s371 + $0x68] sm:$0xff]
        %v1108 = vld [vmem:[%s371 + $0x70] sm:$0xff]
        %v1109 = vld [vmem:[%s371 + $0x78] sm:$0xff]
        %1111 = vset.pattern.permute.xlu0 0
        %1112 = vperm.xlu0 %1111, %v1094
        %v1113 = vpop.permute.xlu0 %1112
        %1116 = vset.pattern.permute.xlu0 0
        %1117 = vperm.xlu0 %1116, %v1095
        %v1118 = vpop.permute.xlu0 %1117
        %1121 = vset.pattern.permute.xlu0 0
        %1122 = vperm.xlu0 %1121, %v1096
        %v1123 = vpop.permute.xlu0 %1122
        %1126 = vset.pattern.permute.xlu0 0
        %1127 = vperm.xlu0 %1126, %v1097
        %v1128 = vpop.permute.xlu0 %1127
        %1131 = vset.pattern.permute.xlu0 0
        %1132 = vperm.xlu0 %1131, %v1098
        %v1133 = vpop.permute.xlu0 %1132
        %1136 = vset.pattern.permute.xlu0 0
        %1137 = vperm.xlu0 %1136, %v1099
        %v1138 = vpop.permute.xlu0 %1137
        %1141 = vset.pattern.permute.xlu0 0
        %1142 = vperm.xlu0 %1141, %v1100
        %v1143 = vpop.permute.xlu0 %1142
        %1146 = vset.pattern.permute.xlu0 0
        %1147 = vperm.xlu0 %1146, %v1101
        %v1148 = vpop.permute.xlu0 %1147
        %1151 = vset.pattern.permute.xlu0 0
        %1152 = vperm.xlu0 %1151, %v1102
        %v1153 = vpop.permute.xlu0 %1152
        %1156 = vset.pattern.permute.xlu0 0
        %1157 = vperm.xlu0 %1156, %v1103
        %v1158 = vpop.permute.xlu0 %1157
        %1161 = vset.pattern.permute.xlu0 0
        %1162 = vperm.xlu0 %1161, %v1104
        %v1163 = vpop.permute.xlu0 %1162
        %1166 = vset.pattern.permute.xlu0 0
        %1167 = vperm.xlu0 %1166, %v1105
        %v1168 = vpop.permute.xlu0 %1167
        %1171 = vset.pattern.permute.xlu0 0
        %1172 = vperm.xlu0 %1171, %v1106
        %v1173 = vpop.permute.xlu0 %1172
        %1176 = vset.pattern.permute.xlu0 0
        %1177 = vperm.xlu0 %1176, %v1107
        %v1178 = vpop.permute.xlu0 %1177
        %1181 = vset.pattern.permute.xlu0 0
        %1182 = vperm.xlu0 %1181, %v1108
        %v1183 = vpop.permute.xlu0 %1182
        %1186 = vset.pattern.permute.xlu0 0
        %1187 = vperm.xlu0 %1186, %v1109
        %v1188 = vpop.permute.xlu0 %1187
        %v1190 = vmul.f32 %v1078, %v1113
        %v1191 = vmul.f32 %v1079, %v1118
        %v1192 = vmul.f32 %v1080, %v1123
        %v1193 = vmul.f32 %v1081, %v1128
        %v1194 = vmul.f32 %v1082, %v1133
        %v1195 = vmul.f32 %v1083, %v1138
        %v1196 = vmul.f32 %v1084, %v1143
        %v1197 = vmul.f32 %v1085, %v1148
        %v1198 = vmul.f32 %v1086, %v1153
        %v1199 = vmul.f32 %v1087, %v1158
        %v1200 = vmul.f32 %v1088, %v1163
        %v1201 = vmul.f32 %v1089, %v1168
        %v1202 = vmul.f32 %v1090, %v1173
        %v1203 = vmul.f32 %v1091, %v1178
        %v1204 = vmul.f32 %v1092, %v1183
        %v1205 = vmul.f32 %v1093, %v1188
        %v1206 = vld [vmem:[%s4] sm:$0xff]
        %v1207 = vld [vmem:[%s4 + $0x8] sm:$0xff]
        %v1208 = vld [vmem:[%s4 + $0x10] sm:$0xff]
        %v1209 = vld [vmem:[%s4 + $0x18] sm:$0xff]
        %v1210 = vld [vmem:[%s4 + $0x20] sm:$0xff]
        %v1211 = vld [vmem:[%s4 + $0x28] sm:$0xff]
        %v1212 = vld [vmem:[%s4 + $0x30] sm:$0xff]
        %v1213 = vld [vmem:[%s4 + $0x38] sm:$0xff]
        %v1214 = vld [vmem:[%s4 + $0x40] sm:$0xff]
        %v1215 = vld [vmem:[%s4 + $0x48] sm:$0xff]
        %v1216 = vld [vmem:[%s4 + $0x50] sm:$0xff]
        %v1217 = vld [vmem:[%s4 + $0x58] sm:$0xff]
        %v1218 = vld [vmem:[%s4 + $0x60] sm:$0xff]
        %v1219 = vld [vmem:[%s4 + $0x68] sm:$0xff]
        %v1220 = vld [vmem:[%s4 + $0x70] sm:$0xff]
        %v1221 = vld [vmem:[%s4 + $0x78] sm:$0xff]
        %v1222 = vld [vmem:[%s365] sm:$0xf]
        %v1223 = vld [vmem:[%s365 + $0x4] sm:$0xf]
        %v1224 = vld [vmem:[%s365 + $0x8] sm:$0xf]
        %v1225 = vld [vmem:[%s365 + $0xc] sm:$0xf]
        %v1226 = vld [vmem:[%s365 + $0x10] sm:$0xf]
        %v1227 = vld [vmem:[%s365 + $0x14] sm:$0xf]
        %v1228 = vld [vmem:[%s365 + $0x18] sm:$0xf]
        %v1229 = vld [vmem:[%s365 + $0x1c] sm:$0xf]
        %v1230 = vld [vmem:[%s365 + $0x20] sm:$0xf]
        %v1231 = vld [vmem:[%s365 + $0x24] sm:$0xf]
        %v1232 = vld [vmem:[%s365 + $0x28] sm:$0xf]
        %v1233 = vld [vmem:[%s365 + $0x2c] sm:$0xf]
        %v1234 = vld [vmem:[%s365 + $0x30] sm:$0xf]
        %v1235 = vld [vmem:[%s365 + $0x34] sm:$0xf]
        %v1236 = vld [vmem:[%s365 + $0x38] sm:$0xf]
        %v1237 = vld [vmem:[%s365 + $0x3c] sm:$0xf]
        %v1238 = vunpack.c.l.bf16 %v1222
        %v1239 = vunpack.c.l.bf16 %v1223
        %v1240 = vunpack.c.l.bf16 %v1224
        %v1241 = vunpack.c.l.bf16 %v1225
        %v1242 = vunpack.c.l.bf16 %v1226
        %v1243 = vunpack.c.l.bf16 %v1227
        %v1244 = vunpack.c.l.bf16 %v1228
        %v1245 = vunpack.c.l.bf16 %v1229
        %v1246 = vunpack.c.l.bf16 %v1230
        %v1247 = vunpack.c.l.bf16 %v1231
        %v1248 = vunpack.c.l.bf16 %v1232
        %v1249 = vunpack.c.l.bf16 %v1233
        %v1250 = vunpack.c.l.bf16 %v1234
        %v1251 = vunpack.c.l.bf16 %v1235
        %v1252 = vunpack.c.l.bf16 %v1236
        %v1253 = vunpack.c.l.bf16 %v1237
        %v1254 = vld [vmem:[%s5] sm:$0xff]
        %v1255 = vld [vmem:[%s5 + $0x8] sm:$0xff]
        %v1256 = vld [vmem:[%s5 + $0x10] sm:$0xff]
        %v1257 = vld [vmem:[%s5 + $0x18] sm:$0xff]
        %v1258 = vld [vmem:[%s5 + $0x20] sm:$0xff]
        %v1259 = vld [vmem:[%s5 + $0x28] sm:$0xff]
        %v1260 = vld [vmem:[%s5 + $0x30] sm:$0xff]
        %v1261 = vld [vmem:[%s5 + $0x38] sm:$0xff]
        %v1262 = vld [vmem:[%s5 + $0x40] sm:$0xff]
        %v1263 = vld [vmem:[%s5 + $0x48] sm:$0xff]
        %v1264 = vld [vmem:[%s5 + $0x50] sm:$0xff]
        %v1265 = vld [vmem:[%s5 + $0x58] sm:$0xff]
        %v1266 = vld [vmem:[%s5 + $0x60] sm:$0xff]
        %v1267 = vld [vmem:[%s5 + $0x68] sm:$0xff]
        %v1268 = vld [vmem:[%s5 + $0x70] sm:$0xff]
        %v1269 = vld [vmem:[%s5 + $0x78] sm:$0xff]
        %1270 = vmatpush.msra.mxu0 %v1269
        %1271 = vmatpush.msra.mxu0 %v1268
        %1272 = vmatpush.msra.mxu0 %v1267
        %1273 = vmatpush.msra.mxu0 %v1266
        %1274 = vmatpush.msra.mxu0 %v1265
        %1275 = vmatpush.msra.mxu0 %v1264
        %1276 = vmatpush.msra.mxu0 %v1263
        %1277 = vmatpush.msra.mxu0 %v1262
        %1278 = vmatpush.msra.mxu0 %v1261
        %1279 = vmatpush.msra.mxu0 %v1260
        %1280 = vmatpush.msra.mxu0 %v1259
        %1281 = vmatpush.msra.mxu0 %v1258
        %1282 = vmatpush.msra.mxu0 %v1257
        %1283 = vmatpush.msra.mxu0 %v1256
        %1284 = vmatpush.msra.mxu0 %v1255
        %1285 = vmatpush.msra.mxu0 %v1254
        %1286 = vmatmul.f32.gmra.mxu0 %v1238
        %v1287 = vpop.f32.mrf.mxu0
        %v1288 = vadd.f32 0.0, %v1287
        %1289 = vmatmul.f32.gmra.mxu0 %v1239
        %v1290 = vpop.f32.mrf.mxu0
        %v1291 = vadd.f32 0.0, %v1290
        %1292 = vmatmul.f32.gmra.mxu0 %v1240
        %v1293 = vpop.f32.mrf.mxu0
        %v1294 = vadd.f32 0.0, %v1293
        %1295 = vmatmul.f32.gmra.mxu0 %v1241
        %v1296 = vpop.f32.mrf.mxu0
        %v1297 = vadd.f32 0.0, %v1296
        %1298 = vmatmul.f32.gmra.mxu0 %v1242
        %v1299 = vpop.f32.mrf.mxu0
        %v1300 = vadd.f32 0.0, %v1299
        %1301 = vmatmul.f32.gmra.mxu0 %v1243
        %v1302 = vpop.f32.mrf.mxu0
        %v1303 = vadd.f32 0.0, %v1302
        %1304 = vmatmul.f32.gmra.mxu0 %v1244
        %v1305 = vpop.f32.mrf.mxu0
        %v1306 = vadd.f32 0.0, %v1305
        %1307 = vmatmul.f32.gmra.mxu0 %v1245
        %v1308 = vpop.f32.mrf.mxu0
        %v1309 = vadd.f32 0.0, %v1308
        %1310 = vmatmul.f32.gmra.mxu0 %v1246
        %v1311 = vpop.f32.mrf.mxu0
        %v1312 = vadd.f32 0.0, %v1311
        %1313 = vmatmul.f32.gmra.mxu0 %v1247
        %v1314 = vpop.f32.mrf.mxu0
        %v1315 = vadd.f32 0.0, %v1314
        %1316 = vmatmul.f32.gmra.mxu0 %v1248
        %v1317 = vpop.f32.mrf.mxu0
        %v1318 = vadd.f32 0.0, %v1317
        %1319 = vmatmul.f32.gmra.mxu0 %v1249
        %v1320 = vpop.f32.mrf.mxu0
        %v1321 = vadd.f32 0.0, %v1320
        %1322 = vmatmul.f32.gmra.mxu0 %v1250
        %v1323 = vpop.f32.mrf.mxu0
        %v1324 = vadd.f32 0.0, %v1323
        %1325 = vmatmul.f32.gmra.mxu0 %v1251
        %v1326 = vpop.f32.mrf.mxu0
        %v1327 = vadd.f32 0.0, %v1326
        %1328 = vmatmul.f32.gmra.mxu0 %v1252
        %v1329 = vpop.f32.mrf.mxu0
        %v1330 = vadd.f32 0.0, %v1329
        %1331 = vmatmul.f32.gmra.mxu0 %v1253
        %v1332 = vpop.f32.mrf.mxu0
        %v1333 = vadd.f32 0.0, %v1332
        %1334 = vdwg.mxu0
        %1335 = vmatpush.msra.mxu0 %v1221
        %1336 = vmatpush.msra.mxu0 %v1220
        %1337 = vmatpush.msra.mxu0 %v1219
        %1338 = vmatpush.msra.mxu0 %v1218
        %1339 = vmatpush.msra.mxu0 %v1217
        %1340 = vmatpush.msra.mxu0 %v1216
        %1341 = vmatpush.msra.mxu0 %v1215
        %1342 = vmatpush.msra.mxu0 %v1214
        %1343 = vmatpush.msra.mxu0 %v1213
        %1344 = vmatpush.msra.mxu0 %v1212
        %1345 = vmatpush.msra.mxu0 %v1211
        %1346 = vmatpush.msra.mxu0 %v1210
        %1347 = vmatpush.msra.mxu0 %v1209
        %1348 = vmatpush.msra.mxu0 %v1208
        %1349 = vmatpush.msra.mxu0 %v1207
        %1350 = vmatpush.msra.mxu0 %v1206
        %1351 = vmatmul.f32.gmra.mxu0 %v1190
        %v1352 = vpop.f32.mrf.mxu0
        %v1353 = vadd.f32 %v1288, %v1352
        %1354 = vmatmul.f32.gmra.mxu0 %v1191
        %v1355 = vpop.f32.mrf.mxu0
        %v1356 = vadd.f32 %v1291, %v1355
        %1357 = vmatmul.f32.gmra.mxu0 %v1192
        %v1358 = vpop.f32.mrf.mxu0
        %v1359 = vadd.f32 %v1294, %v1358
        %1360 = vmatmul.f32.gmra.mxu0 %v1193
        %v1361 = vpop.f32.mrf.mxu0
        %v1362 = vadd.f32 %v1297, %v1361
        %1363 = vmatmul.f32.gmra.mxu0 %v1194
        %v1364 = vpop.f32.mrf.mxu0
        %v1365 = vadd.f32 %v1300, %v1364
        %1366 = vmatmul.f32.gmra.mxu0 %v1195
        %v1367 = vpop.f32.mrf.mxu0
        %v1368 = vadd.f32 %v1303, %v1367
        %1369 = vmatmul.f32.gmra.mxu0 %v1196
        %v1370 = vpop.f32.mrf.mxu0
        %v1371 = vadd.f32 %v1306, %v1370
        %1372 = vmatmul.f32.gmra.mxu0 %v1197
        %v1373 = vpop.f32.mrf.mxu0
        %v1374 = vadd.f32 %v1309, %v1373
        %1375 = vmatmul.f32.gmra.mxu0 %v1198
        %v1376 = vpop.f32.mrf.mxu0
        %v1377 = vadd.f32 %v1312, %v1376
        %1378 = vmatmul.f32.gmra.mxu0 %v1199
        %v1379 = vpop.f32.mrf.mxu0
        %v1380 = vadd.f32 %v1315, %v1379
        %1381 = vmatmul.f32.gmra.mxu0 %v1200
        %v1382 = vpop.f32.mrf.mxu0
        %v1383 = vadd.f32 %v1318, %v1382
        %1384 = vmatmul.f32.gmra.mxu0 %v1201
        %v1385 = vpop.f32.mrf.mxu0
        %v1386 = vadd.f32 %v1321, %v1385
        %1387 = vmatmul.f32.gmra.mxu0 %v1202
        %v1388 = vpop.f32.mrf.mxu0
        %v1389 = vadd.f32 %v1324, %v1388
        %1390 = vmatmul.f32.gmra.mxu0 %v1203
        %v1391 = vpop.f32.mrf.mxu0
        %v1392 = vadd.f32 %v1327, %v1391
        %1393 = vmatmul.f32.gmra.mxu0 %v1204
        %v1394 = vpop.f32.mrf.mxu0
        %v1395 = vadd.f32 %v1330, %v1394
        %1396 = vmatmul.f32.gmra.mxu0 %v1205
        %v1397 = vpop.f32.mrf.mxu0
        %v1398 = vadd.f32 %v1333, %v1397
        %1399 = vdwg.mxu0
        %v1400 = vld [vmem:[%s6] sm:$0x1]
        %v1402 = vperm.slane %v1400, 0
        %v1404 = vadd.f32 %v1353, %v1402
        %v1405 = vadd.f32 %v1356, %v1402
        %v1406 = vadd.f32 %v1359, %v1402
        %v1407 = vadd.f32 %v1362, %v1402
        %v1408 = vadd.f32 %v1365, %v1402
        %v1409 = vadd.f32 %v1368, %v1402
        %v1410 = vadd.f32 %v1371, %v1402
        %v1411 = vadd.f32 %v1374, %v1402
        %v1412 = vadd.f32 %v1377, %v1402
        %v1413 = vadd.f32 %v1380, %v1402
        %v1414 = vadd.f32 %v1383, %v1402
        %v1415 = vadd.f32 %v1386, %v1402
        %v1416 = vadd.f32 %v1389, %v1402
        %v1417 = vadd.f32 %v1392, %v1402
        %v1418 = vadd.f32 %v1395, %v1402
        %v1419 = vadd.f32 %v1398, %v1402
        %v1420 = vmax.f32 %v1404, 0.0
        %v1421 = vmax.f32 %v1405, 0.0
        %v1422 = vmax.f32 %v1406, 0.0
        %v1423 = vmax.f32 %v1407, 0.0
        %v1424 = vmax.f32 %v1408, 0.0
        %v1425 = vmax.f32 %v1409, 0.0
        %v1426 = vmax.f32 %v1410, 0.0
        %v1427 = vmax.f32 %v1411, 0.0
        %v1428 = vmax.f32 %v1412, 0.0
        %v1429 = vmax.f32 %v1413, 0.0
        %v1430 = vmax.f32 %v1414, 0.0
        %v1431 = vmax.f32 %v1415, 0.0
        %v1432 = vmax.f32 %v1416, 0.0
        %v1433 = vmax.f32 %v1417, 0.0
        %v1434 = vmax.f32 %v1418, 0.0
        %v1435 = vmax.f32 %v1419, 0.0
        %v1436 = vpack.c.bf16 %v1420, %v1420
        %v1437 = vpack.c.bf16 %v1421, %v1421
        %v1438 = vpack.c.bf16 %v1422, %v1422
        %v1439 = vpack.c.bf16 %v1423, %v1423
        %v1440 = vpack.c.bf16 %v1424, %v1424
        %v1441 = vpack.c.bf16 %v1425, %v1425
        %v1442 = vpack.c.bf16 %v1426, %v1426
        %v1443 = vpack.c.bf16 %v1427, %v1427
        %v1444 = vpack.c.bf16 %v1428, %v1428
        %v1445 = vpack.c.bf16 %v1429, %v1429
        %v1446 = vpack.c.bf16 %v1430, %v1430
        %v1447 = vpack.c.bf16 %v1431, %v1431
        %v1448 = vpack.c.bf16 %v1432, %v1432
        %v1449 = vpack.c.bf16 %v1433, %v1433
        %v1450 = vpack.c.bf16 %v1434, %v1434
        %v1451 = vpack.c.bf16 %v1435, %v1435
        %1452 = vst [vmem:[%s377] sm:$0xf] %v1436
        %1453 = vst [vmem:[%s377 + $0x4] sm:$0xf] %v1437
        %1454 = vst [vmem:[%s377 + $0x8] sm:$0xf] %v1438
        %1455 = vst [vmem:[%s377 + $0xc] sm:$0xf] %v1439
        %1456 = vst [vmem:[%s377 + $0x10] sm:$0xf] %v1440
        %1457 = vst [vmem:[%s377 + $0x14] sm:$0xf] %v1441
        %1458 = vst [vmem:[%s377 + $0x18] sm:$0xf] %v1442
        %1459 = vst [vmem:[%s377 + $0x1c] sm:$0xf] %v1443
        %1460 = vst [vmem:[%s377 + $0x20] sm:$0xf] %v1444
        %1461 = vst [vmem:[%s377 + $0x24] sm:$0xf] %v1445
        %1462 = vst [vmem:[%s377 + $0x28] sm:$0xf] %v1446
        %1463 = vst [vmem:[%s377 + $0x2c] sm:$0xf] %v1447
        %1464 = vst [vmem:[%s377 + $0x30] sm:$0xf] %v1448
        %1465 = vst [vmem:[%s377 + $0x34] sm:$0xf] %v1449
        %1466 = vst [vmem:[%s377 + $0x38] sm:$0xf] %v1450
        %1467 = vst [vmem:[%s377 + $0x3c] sm:$0xf] %v1451
      $region56: #{graphsage_forward.3} parent=47 // pred_fallthru
        _
      %s1468 = smul.u32 16, %s22
      %p1469 = scmp.lt.s32.totalorder %s1468, 63
      %s1470 = scalar_select %p1469, %s1468, 63
      %s1471 = smul.addr %s1470, 4
      %s1472 = scalar_lea.vmem %s7, %s1471
      // Predicated region
      $region57: #{graphsage_forward.3} parent=47 // pred_check
        %p1473 = pneg %p217
      $region58: #{graphsage_forward.3} parent=47 // pred_check_branch
        %1475 = sbr.rel (%p1473) target = $region60
      $region59: #{graphsage_forward.3} parent=47 // pred_region
        %s1476 = smul.u32 16, %s22
      $region60: #{graphsage_forward.3} parent=47 // pred_fallthru
        _
    $region48: #{graphsage_forward.3} parent=5 // pred_fallthru
      _
    %p1477 = scmp.le.s32.totalorder 2, %s13
    // Predicated region
    $region61: #{graphsage_forward.3} parent=5 // pred_check
      %p1478 = pneg %p1477
    $region62: #{graphsage_forward.3} parent=5 // pred_check_branch
      %1480 = sbr.rel (%p1478) target = $region64
    $region63: #{graphsage_forward.3} parent=5 // pred_region
      %s1481 = ssub.s32 %s13, 2
      // Predicated region
      $region65: #{graphsage_forward.3} parent=63 // pred_check
        %p1482 = pneg %p223
      $region66: #{graphsage_forward.3} parent=63 // pred_check_branch
        %1484 = sbr.rel (%p1482) target = $region68
      $region67: #{graphsage_forward.3} parent=63 // pred_region
        %s1485 = smul.u32 16, %s24
        %p1486 = scmp.lt.s32.totalorder %s1485, 63
        %s1487 = scalar_select %p1486, %s1485, 63
        %s1488 = smul.addr %s1487, 4
        %s1489 = scalar_lea.vmem %s7, %s1488
      $region68: #{graphsage_forward.3} parent=63 // pred_fallthru
        _
    $region64: #{graphsage_forward.3} parent=5 // pred_fallthru
      _
  $region6: #{graphsage_forward.3} parent=0 // loop_footer
    %s17 = sadd.s32 1, %s13
  $region7: #{graphsage_forward.3} parent=0 // loop_footer_branch
    %12 = sbr.rel target = $region3
  $region8: #{graphsage_forward.3} parent=0 // loop_exit
    _

// kernel: graphsage_forward.4
$region0: #{graphsage_forward.4}
  #allocation0 [shape = 'u32[]', space=smem, size = 0x4, offset = 0x4, fixed_abs, tag = 'smem constant byte address 0x4 - core index']
  #allocation1 [shape = 'u32[72,128]{1,0:T(1,128)}', space=vmem, size = 0x9000, scoped, tag = 'internal scratch']
  %s0 = inlined_call_operand.vmem [shape: bf16[512,128], index: 0, kind: input, shape index: {}]
  %s1 = inlined_call_operand.vmem [shape: f32[128,128], index: 1, kind: input, shape index: {}]
  %s2 = inlined_call_operand.vmem [shape: bf16[512,128], index: 2, kind: output, shape index: {}]
  %s3 = sld [smem:[#allocation0]]
  $region41: #{graphsage_forward.4} parent=0
    _
  %s5 = ssub.s32 1, %s3
  %s6 = scalar_select 0, %s5, %s3
  loop: start=0, step=1, limit=6
  $region2: #{graphsage_forward.4} parent=0 // loop_pre_header
    _
  $region3: #{graphsage_forward.4} parent=0 // loop_header
    %s8 = sphi 0, %s12
    %p9 = scmp.ge.s32.totalorder %s8, 6
    %s18 = sphi 0, %s20
    %s21 = sphi 0, %s18
    %s22 = sphi 0, %s21
    %s38 = sphi 0, %s22
    %s42 = sphi 0, %s42
    %s44 = sphi 0, %s42
    %s45 = sphi 0, %s44
    %s59 = sphi 0, %s45
    %s65 = sphi 0, %s67
    %s68 = sphi 0, %s65
    %s69 = sphi 0, %s68
    %s85 = sphi 0, %s69
  $region4: #{graphsage_forward.4} parent=0 // loop_header_branch
    %11 = sbr.rel (%p9) target = $region8
  $region5: #{graphsage_forward.4} parent=0 // loop_body
    %s13 = ssub.s32 %s8, 1
    %s14 = ssub.s32 %s8, 2
    %s15 = sadd.s32 %s8, 1
    %s16 = ssub.s32 %s8, %s15
    %p17 = scmp.eq.s32.totalorder %s16, 0
    %s19 = sadd.s32 %s18, 1
    %s20 = scalar_select %p17, %s18, %s19
    %p23 = pneg %p17
    %p24 = scmp.eq.s32.totalorder %s8, 3
    %p25 = por %p23, %p24
    %p26 = scmp.ne.s32.totalorder %s18, %s21
    %p27 = scmp.eq.s32.totalorder %s8, 0
    %p28 = por %p26, %p27
    %p29 = scmp.ne.s32.totalorder %s18, %s21
    %p30 = scmp.eq.s32.totalorder %s13, 3
    %p31 = por %p29, %p30
    %p32 = scmp.ne.s32.totalorder %s21, %s22
    %p33 = scmp.eq.s32.totalorder %s13, 0
    %p34 = por %p32, %p33
    %p35 = scmp.ne.s32.totalorder %s21, %s22
    %p36 = scmp.eq.s32.totalorder %s14, 3
    %p37 = por %p35, %p36
    %p39 = scmp.ne.s32.totalorder %s22, %s38
    %p40 = scmp.eq.s32.totalorder %s14, 0
    %p41 = por %p39, %p40
    %s43 = sadd.s32 %s42, 1
    %p46 = scmp.eq.s32.totalorder %s8, 3
    %p47 = scmp.ne.s32.totalorder %s42, %s44
    %p48 = scmp.eq.s32.totalorder %s8, 0
    %p49 = por %p47, %p48
    %p50 = scmp.ne.s32.totalorder %s42, %s44
    %p51 = scmp.eq.s32.totalorder %s13, 3
    %p52 = por %p50, %p51
    %p53 = scmp.ne.s32.totalorder %s44, %s45
    %p54 = scmp.eq.s32.totalorder %s13, 0
    %p55 = por %p53, %p54
    %p56 = scmp.ne.s32.totalorder %s44, %s45
    %p57 = scmp.eq.s32.totalorder %s14, 3
    %p58 = por %p56, %p57
    %p60 = scmp.ne.s32.totalorder %s45, %s59
    %p61 = scmp.eq.s32.totalorder %s14, 0
    %p62 = por %p60, %p61
    %s63 = ssub.s32 %s8, %s15
    %p64 = scmp.eq.s32.totalorder %s63, 0
    %s66 = sadd.s32 %s65, 1
    %s67 = scalar_select %p64, %s65, %s66
    %p70 = pneg %p64
    %p71 = scmp.eq.s32.totalorder %s8, 3
    %p72 = por %p70, %p71
    %p73 = scmp.ne.s32.totalorder %s65, %s68
    %p74 = scmp.eq.s32.totalorder %s8, 0
    %p75 = por %p73, %p74
    %p76 = scmp.ne.s32.totalorder %s65, %s68
    %p77 = scmp.eq.s32.totalorder %s13, 3
    %p78 = por %p76, %p77
    %p79 = scmp.ne.s32.totalorder %s68, %s69
    %p80 = scmp.eq.s32.totalorder %s13, 0
    %p81 = por %p79, %p80
    %p82 = scmp.ne.s32.totalorder %s68, %s69
    %p83 = scmp.eq.s32.totalorder %s14, 3
    %p84 = por %p82, %p83
    %p86 = scmp.ne.s32.totalorder %s69, %s85
    %p87 = scmp.eq.s32.totalorder %s14, 0
    %p88 = por %p86, %p87
    %p89 = scmp.le.s32.totalorder 1, %s8
    %p90 = scmp.lt.s32.totalorder %s8, 5
    %p91 = pnand %p89, %p90
    %p92 = pneg %p91
    // Predicated region
    $region9: #{graphsage_forward.4} parent=5 // pred_check
      _
    $region10: #{graphsage_forward.4} parent=5 // pred_check_branch
      %94 = sbr.rel (%p91) target = $region12
    $region11: #{graphsage_forward.4} parent=5 // pred_region
      %s95 = ssub.s32 %s8, 1
      // Predicated region
      $region13: #{graphsage_forward.4} parent=11 // pred_check
        %p96 = pneg %p55
      $region14: #{graphsage_forward.4} parent=11 // pred_check_branch
        %98 = sbr.rel (%p96) target = $region16
      $region15: #{graphsage_forward.4} parent=11 // pred_region
        _
      $region16: #{graphsage_forward.4} parent=11 // pred_fallthru
        _
    $region12: #{graphsage_forward.4} parent=5 // pred_fallthru
      _
    %p99 = scmp.lt.s32.totalorder %s8, 4
    // Predicated region
    $region17: #{graphsage_forward.4} parent=5 // pred_check
      %p100 = pneg %p99
    $region18: #{graphsage_forward.4} parent=5 // pred_check_branch
      %102 = sbr.rel (%p100) target = $region20
    $region19: #{graphsage_forward.4} parent=5 // pred_region
      // Predicated region
      $region21: #{graphsage_forward.4} parent=19 // pred_check
        %p103 = pneg %p28
      $region22: #{graphsage_forward.4} parent=19 // pred_check_branch
        %105 = sbr.rel (%p103) target = $region24
      $region23: #{graphsage_forward.4} parent=19 // pred_region
        %s106 = smul.u32 16, %s8
        %p107 = scmp.lt.s32.totalorder %s106, 63
        %s108 = scalar_select %p107, %s106, 63
        %s109 = smul.addr %s108, 4
        %s110 = scalar_lea.vmem %s0, %s109
        %s111 = smul.u32 16, %s8
      $region24: #{graphsage_forward.4} parent=19 // pred_fallthru
        _
    $region20: #{graphsage_forward.4} parent=5 // pred_fallthru
      _
    %p112 = scmp.le.s32.totalorder 1, %s8
    %p113 = scmp.lt.s32.totalorder %s8, 5
    %p114 = pnand %p112, %p113
    %p115 = pneg %p114
    // Predicated region
    $region25: #{graphsage_forward.4} parent=5 // pred_check
      _
    $region26: #{graphsage_forward.4} parent=5 // pred_check_branch
      %117 = sbr.rel (%p114) target = $region28
    $region27: #{graphsage_forward.4} parent=5 // pred_region
      %s118 = ssub.s32 %s8, 1
      %s119 = smul.u32 16, %s13
      %p120 = scmp.lt.s32.totalorder %s119, 63
      %s121 = scalar_select %p120, %s119, 63
      %s122 = smul.addr %s121, 4
      %s123 = scalar_lea.vmem %s0, %s122
      %p124 = pneg %p34
      %p125 = pneg %p31
      %p126 = pneg %p55
      %p127 = pneg %p52
      %p128 = pneg %p81
      %p129 = pneg %p78
      %s130 = smul.u32 16, %s13
      %p131 = scmp.lt.s32.totalorder %s130, 63
      %s132 = scalar_select %p131, %s130, 63
      %s133 = smul.addr %s132, 4
      %s134 = scalar_lea.vmem %s2, %s133
      %s135 = smul.u32 16, %s13
      %p136 = scmp.lt.s32.totalorder %s135, 63
      %s137 = scalar_select %p136, %s135, 63
      %s138 = smul.addr %s137, 4
      %s139 = scalar_lea.vmem %s0, %s138
      %s140 = smul.u32 16, %s13
      %s141 = smul.u32 16, %s13
      %p142 = scmp.lt.s32.totalorder %s141, 63
      %s143 = scalar_select %p142, %s141, 63
      %s144 = smul.addr %s143, 4
      %s145 = scalar_lea.vmem %s2, %s144
      %s146 = smul.u32 16, %s13
      %v147 = vld [vmem:[%s139] sm:$0xf]
      %v148 = vld [vmem:[%s139 + $0x4] sm:$0xf]
      %v149 = vld [vmem:[%s139 + $0x8] sm:$0xf]
      %v150 = vld [vmem:[%s139 + $0xc] sm:$0xf]
      %v151 = vld [vmem:[%s139 + $0x10] sm:$0xf]
      %v152 = vld [vmem:[%s139 + $0x14] sm:$0xf]
      %v153 = vld [vmem:[%s139 + $0x18] sm:$0xf]
      %v154 = vld [vmem:[%s139 + $0x1c] sm:$0xf]
      %v155 = vld [vmem:[%s139 + $0x20] sm:$0xf]
      %v156 = vld [vmem:[%s139 + $0x24] sm:$0xf]
      %v157 = vld [vmem:[%s139 + $0x28] sm:$0xf]
      %v158 = vld [vmem:[%s139 + $0x2c] sm:$0xf]
      %v159 = vld [vmem:[%s139 + $0x30] sm:$0xf]
      %v160 = vld [vmem:[%s139 + $0x34] sm:$0xf]
      %v161 = vld [vmem:[%s139 + $0x38] sm:$0xf]
      %v162 = vld [vmem:[%s139 + $0x3c] sm:$0xf]
      %v163 = vunpack.c.l.bf16 %v147
      %v164 = vunpack.c.l.bf16 %v148
      %v165 = vunpack.c.l.bf16 %v149
      %v166 = vunpack.c.l.bf16 %v150
      %v167 = vunpack.c.l.bf16 %v151
      %v168 = vunpack.c.l.bf16 %v152
      %v169 = vunpack.c.l.bf16 %v153
      %v170 = vunpack.c.l.bf16 %v154
      %v171 = vunpack.c.l.bf16 %v155
      %v172 = vunpack.c.l.bf16 %v156
      %v173 = vunpack.c.l.bf16 %v157
      %v174 = vunpack.c.l.bf16 %v158
      %v175 = vunpack.c.l.bf16 %v159
      %v176 = vunpack.c.l.bf16 %v160
      %v177 = vunpack.c.l.bf16 %v161
      %v178 = vunpack.c.l.bf16 %v162
      %v179 = vld [vmem:[%s1] sm:$0xff]
      %v180 = vld [vmem:[%s1 + $0x8] sm:$0xff]
      %v181 = vld [vmem:[%s1 + $0x10] sm:$0xff]
      %v182 = vld [vmem:[%s1 + $0x18] sm:$0xff]
      %v183 = vld [vmem:[%s1 + $0x20] sm:$0xff]
      %v184 = vld [vmem:[%s1 + $0x28] sm:$0xff]
      %v185 = vld [vmem:[%s1 + $0x30] sm:$0xff]
      %v186 = vld [vmem:[%s1 + $0x38] sm:$0xff]
      %v187 = vld [vmem:[%s1 + $0x40] sm:$0xff]
      %v188 = vld [vmem:[%s1 + $0x48] sm:$0xff]
      %v189 = vld [vmem:[%s1 + $0x50] sm:$0xff]
      %v190 = vld [vmem:[%s1 + $0x58] sm:$0xff]
      %v191 = vld [vmem:[%s1 + $0x60] sm:$0xff]
      %v192 = vld [vmem:[%s1 + $0x68] sm:$0xff]
      %v193 = vld [vmem:[%s1 + $0x70] sm:$0xff]
      %v194 = vld [vmem:[%s1 + $0x78] sm:$0xff]
      %195 = vmatpush.msra.mxu0 %v194
      %196 = vmatpush.msra.mxu0 %v193
      %197 = vmatpush.msra.mxu0 %v192
      %198 = vmatpush.msra.mxu0 %v191
      %199 = vmatpush.msra.mxu0 %v190
      %200 = vmatpush.msra.mxu0 %v189
      %201 = vmatpush.msra.mxu0 %v188
      %202 = vmatpush.msra.mxu0 %v187
      %203 = vmatpush.msra.mxu0 %v186
      %204 = vmatpush.msra.mxu0 %v185
      %205 = vmatpush.msra.mxu0 %v184
      %206 = vmatpush.msra.mxu0 %v183
      %207 = vmatpush.msra.mxu0 %v182
      %208 = vmatpush.msra.mxu0 %v181
      %209 = vmatpush.msra.mxu0 %v180
      %210 = vmatpush.msra.mxu0 %v179
      %211 = vmatmul.f32.gmra.mxu0 %v163
      %v212 = vpop.f32.mrf.mxu0
      %v213 = vadd.f32 0.0, %v212
      %214 = vmatmul.f32.gmra.mxu0 %v164
      %v215 = vpop.f32.mrf.mxu0
      %v216 = vadd.f32 0.0, %v215
      %217 = vmatmul.f32.gmra.mxu0 %v165
      %v218 = vpop.f32.mrf.mxu0
      %v219 = vadd.f32 0.0, %v218
      %220 = vmatmul.f32.gmra.mxu0 %v166
      %v221 = vpop.f32.mrf.mxu0
      %v222 = vadd.f32 0.0, %v221
      %223 = vmatmul.f32.gmra.mxu0 %v167
      %v224 = vpop.f32.mrf.mxu0
      %v225 = vadd.f32 0.0, %v224
      %226 = vmatmul.f32.gmra.mxu0 %v168
      %v227 = vpop.f32.mrf.mxu0
      %v228 = vadd.f32 0.0, %v227
      %229 = vmatmul.f32.gmra.mxu0 %v169
      %v230 = vpop.f32.mrf.mxu0
      %v231 = vadd.f32 0.0, %v230
      %232 = vmatmul.f32.gmra.mxu0 %v170
      %v233 = vpop.f32.mrf.mxu0
      %v234 = vadd.f32 0.0, %v233
      %235 = vmatmul.f32.gmra.mxu0 %v171
      %v236 = vpop.f32.mrf.mxu0
      %v237 = vadd.f32 0.0, %v236
      %238 = vmatmul.f32.gmra.mxu0 %v172
      %v239 = vpop.f32.mrf.mxu0
      %v240 = vadd.f32 0.0, %v239
      %241 = vmatmul.f32.gmra.mxu0 %v173
      %v242 = vpop.f32.mrf.mxu0
      %v243 = vadd.f32 0.0, %v242
      %244 = vmatmul.f32.gmra.mxu0 %v174
      %v245 = vpop.f32.mrf.mxu0
      %v246 = vadd.f32 0.0, %v245
      %247 = vmatmul.f32.gmra.mxu0 %v175
      %v248 = vpop.f32.mrf.mxu0
      %v249 = vadd.f32 0.0, %v248
      %250 = vmatmul.f32.gmra.mxu0 %v176
      %v251 = vpop.f32.mrf.mxu0
      %v252 = vadd.f32 0.0, %v251
      %253 = vmatmul.f32.gmra.mxu0 %v177
      %v254 = vpop.f32.mrf.mxu0
      %v255 = vadd.f32 0.0, %v254
      %256 = vmatmul.f32.gmra.mxu0 %v178
      %v257 = vpop.f32.mrf.mxu0
      %v258 = vadd.f32 0.0, %v257
      %259 = vdwg.mxu0
      %v260 = vpack.c.bf16 %v213, %v213
      %v261 = vpack.c.bf16 %v216, %v216
      %v262 = vpack.c.bf16 %v219, %v219
      %v263 = vpack.c.bf16 %v222, %v222
      %v264 = vpack.c.bf16 %v225, %v225
      %v265 = vpack.c.bf16 %v228, %v228
      %v266 = vpack.c.bf16 %v231, %v231
      %v267 = vpack.c.bf16 %v234, %v234
      %v268 = vpack.c.bf16 %v237, %v237
      %v269 = vpack.c.bf16 %v240, %v240
      %v270 = vpack.c.bf16 %v243, %v243
      %v271 = vpack.c.bf16 %v246, %v246
      %v272 = vpack.c.bf16 %v249, %v249
      %v273 = vpack.c.bf16 %v252, %v252
      %v274 = vpack.c.bf16 %v255, %v255
      %v275 = vpack.c.bf16 %v258, %v258
      %276 = vst [vmem:[%s145] sm:$0xf] %v260
      %277 = vst [vmem:[%s145 + $0x4] sm:$0xf] %v261
      %278 = vst [vmem:[%s145 + $0x8] sm:$0xf] %v262
      %279 = vst [vmem:[%s145 + $0xc] sm:$0xf] %v263
      %280 = vst [vmem:[%s145 + $0x10] sm:$0xf] %v264
      %281 = vst [vmem:[%s145 + $0x14] sm:$0xf] %v265
      %282 = vst [vmem:[%s145 + $0x18] sm:$0xf] %v266
      %283 = vst [vmem:[%s145 + $0x1c] sm:$0xf] %v267
      %284 = vst [vmem:[%s145 + $0x20] sm:$0xf] %v268
      %285 = vst [vmem:[%s145 + $0x24] sm:$0xf] %v269
      %286 = vst [vmem:[%s145 + $0x28] sm:$0xf] %v270
      %287 = vst [vmem:[%s145 + $0x2c] sm:$0xf] %v271
      %288 = vst [vmem:[%s145 + $0x30] sm:$0xf] %v272
      %289 = vst [vmem:[%s145 + $0x34] sm:$0xf] %v273
      %290 = vst [vmem:[%s145 + $0x38] sm:$0xf] %v274
      %291 = vst [vmem:[%s145 + $0x3c] sm:$0xf] %v275
      %s292 = smul.u32 16, %s13
      %p293 = scmp.lt.s32.totalorder %s292, 63
      %s294 = scalar_select %p293, %s292, 63
      %s295 = smul.addr %s294, 4
      %s296 = scalar_lea.vmem %s2, %s295
      // Predicated region
      $region29: #{graphsage_forward.4} parent=27 // pred_check
        %p297 = pneg %p78
      $region30: #{graphsage_forward.4} parent=27 // pred_check_branch
        %299 = sbr.rel (%p297) target = $region32
      $region31: #{graphsage_forward.4} parent=27 // pred_region
        %s300 = smul.u32 16, %s13
      $region32: #{graphsage_forward.4} parent=27 // pred_fallthru
        _
    $region28: #{graphsage_forward.4} parent=5 // pred_fallthru
      _
    %p301 = scmp.le.s32.totalorder 2, %s8
    // Predicated region
    $region33: #{graphsage_forward.4} parent=5 // pred_check
      %p302 = pneg %p301
    $region34: #{graphsage_forward.4} parent=5 // pred_check_branch
      %304 = sbr.rel (%p302) target = $region36
    $region35: #{graphsage_forward.4} parent=5 // pred_region
      %s305 = ssub.s32 %s8, 2
      // Predicated region
      $region37: #{graphsage_forward.4} parent=35 // pred_check
        %p306 = pneg %p84
      $region38: #{graphsage_forward.4} parent=35 // pred_check_branch
        %308 = sbr.rel (%p306) target = $region40
      $region39: #{graphsage_forward.4} parent=35 // pred_region
        %s309 = smul.u32 16, %s14
        %p310 = scmp.lt.s32.totalorder %s309, 63
        %s311 = scalar_select %p310, %s309, 63
        %s312 = smul.addr %s311, 4
        %s313 = scalar_lea.vmem %s2, %s312
      $region40: #{graphsage_forward.4} parent=35 // pred_fallthru
        _
    $region36: #{graphsage_forward.4} parent=5 // pred_fallthru
      _
  $region6: #{graphsage_forward.4} parent=0 // loop_footer
    %s12 = sadd.s32 1, %s8
  $region7: #{graphsage_forward.4} parent=0 // loop_footer_branch
    %7 = sbr.rel target = $region3
  $region8: #{graphsage_forward.4} parent=0 // loop_exit
    _

// kernel: graphsage_forward.5
$region0: #{graphsage_forward.5}
  #allocation0 [shape = 'u32[]', space=smem, size = 0x4, offset = 0x4, fixed_abs, tag = 'smem constant byte address 0x4 - core index']
  #allocation1 [shape = 'u32[72,128]{1,0:T(1,128)}', space=vmem, size = 0x9000, scoped, tag = 'internal scratch']
  #allocation2 [shape = 'f32[128,128]{1,0:T(8,128)}', space=vmem, size = 0x10000, scoped, tag = 'scratch operand']
  %s0 = inlined_call_operand.vmem [shape: s8[512,512], index: 0, kind: input, shape index: {}]
  %s1 = inlined_call_operand.vmem [shape: bf16[512,128], index: 1, kind: input, shape index: {}]
  %s2 = inlined_call_operand.vmem [shape: bf16[512,128], index: 2, kind: input, shape index: {}]
  %s3 = inlined_call_operand.vmem [shape: f32[512,1], index: 3, kind: input, shape index: {}]
  %s4 = inlined_call_operand.vmem [shape: f32[128,128], index: 4, kind: input, shape index: {}]
  %s5 = inlined_call_operand.vmem [shape: f32[1,128], index: 5, kind: input, shape index: {}]
  %s6 = inlined_call_operand.vmem [shape: f32[512,128], index: 6, kind: output, shape index: {}]
  %s7 = sld [smem:[#allocation0]]
  $region65: #{graphsage_forward.5} parent=0
    _
  %s9 = ssub.s32 1, %s7
  %s10 = scalar_select 0, %s9, %s7
  loop: start=0, step=1, limit=6
  $region2: #{graphsage_forward.5} parent=0 // loop_pre_header
    _
  $region3: #{graphsage_forward.5} parent=0 // loop_header
    %s12 = sphi 0, %s16
    %p13 = scmp.ge.s32.totalorder %s12, 6
    %s19 = sphi 0, %s31
    %s20 = sphi 0, %s27
    %s21 = sphi 0, %s19
    %s22 = sphi 0, %s20
    %s23 = sphi 0, %s21
    %s24 = sphi 0, %s22
    %s36 = sphi 0, %s38
    %s39 = sphi 0, %s36
    %s40 = sphi 0, %s39
    %s56 = sphi 0, %s40
    %s62 = sphi 0, %s64
    %s65 = sphi 0, %s62
    %s66 = sphi 0, %s65
    %s82 = sphi 0, %s66
    %s88 = sphi 0, %s90
    %s91 = sphi 0, %s88
    %s92 = sphi 0, %s91
    %s108 = sphi 0, %s92
    %s114 = sphi 0, %s116
    %s117 = sphi 0, %s114
    %s118 = sphi 0, %s117
    %s134 = sphi 0, %s118
    %s138 = sphi 0, %s138
    %s140 = sphi 0, %s138
    %s141 = sphi 0, %s140
    %s155 = sphi 0, %s141
    %s159 = sphi 0, %s159
    %s161 = sphi 0, %s159
    %s162 = sphi 0, %s161
    %s176 = sphi 0, %s162
    %s182 = sphi 0, %s184
    %s185 = sphi 0, %s182
    %s186 = sphi 0, %s185
    %s202 = sphi 0, %s186
  $region4: #{graphsage_forward.5} parent=0 // loop_header_branch
    %15 = sbr.rel (%p13) target = $region8
  $region5: #{graphsage_forward.5} parent=0 // loop_body
    %s17 = ssub.s32 %s12, 1
    %s18 = ssub.s32 %s12, 2
    %s25 = sadd.s32 1, %s20
    %p26 = scmp.ge.s32.totalorder %s25, 1
    %s27 = scalar_select %p26, 0, %s25
    %s28 = sadd.s32 1, %s19
    %s29 = scalar_select %p26, %s28, %s19
    %p30 = scmp.ge.s32.totalorder %s29, 4
    %s31 = scalar_select %p30, 0, %s29
    %s32 = ssub.s32 %s19, %s31
    %s33 = ssub.s32 %s20, %s27
    %s34 = sor.u32 %s32, %s33
    %p35 = scmp.eq.s32.totalorder %s34, 0
    %s37 = sadd.s32 %s36, 1
    %s38 = scalar_select %p35, %s36, %s37
    %p41 = pneg %p35
    %p42 = scmp.eq.s32.totalorder %s12, 3
    %p43 = por %p41, %p42
    %p44 = scmp.ne.s32.totalorder %s36, %s39
    %p45 = scmp.eq.s32.totalorder %s12, 0
    %p46 = por %p44, %p45
    %p47 = scmp.ne.s32.totalorder %s36, %s39
    %p48 = scmp.eq.s32.totalorder %s17, 3
    %p49 = por %p47, %p48
    %p50 = scmp.ne.s32.totalorder %s39, %s40
    %p51 = scmp.eq.s32.totalorder %s17, 0
    %p52 = por %p50, %p51
    %p53 = scmp.ne.s32.totalorder %s39, %s40
    %p54 = scmp.eq.s32.totalorder %s18, 3
    %p55 = por %p53, %p54
    %p57 = scmp.ne.s32.totalorder %s40, %s56
    %p58 = scmp.eq.s32.totalorder %s18, 0
    %p59 = por %p57, %p58
    %s60 = ssub.s32 %s20, %s27
    %p61 = scmp.eq.s32.totalorder %s60, 0
    %s63 = sadd.s32 %s62, 1
    %s64 = scalar_select %p61, %s62, %s63
    %p67 = pneg %p61
    %p68 = scmp.eq.s32.totalorder %s12, 3
    %p69 = por %p67, %p68
    %p70 = scmp.ne.s32.totalorder %s62, %s65
    %p71 = scmp.eq.s32.totalorder %s12, 0
    %p72 = por %p70, %p71
    %p73 = scmp.ne.s32.totalorder %s62, %s65
    %p74 = scmp.eq.s32.totalorder %s17, 3
    %p75 = por %p73, %p74
    %p76 = scmp.ne.s32.totalorder %s65, %s66
    %p77 = scmp.eq.s32.totalorder %s17, 0
    %p78 = por %p76, %p77
    %p79 = scmp.ne.s32.totalorder %s65, %s66
    %p80 = scmp.eq.s32.totalorder %s18, 3
    %p81 = por %p79, %p80
    %p83 = scmp.ne.s32.totalorder %s66, %s82
    %p84 = scmp.eq.s32.totalorder %s18, 0
    %p85 = por %p83, %p84
    %s86 = ssub.s32 %s19, %s31
    %p87 = scmp.eq.s32.totalorder %s86, 0
    %s89 = sadd.s32 %s88, 1
    %s90 = scalar_select %p87, %s88, %s89
    %p93 = pneg %p87
    %p94 = scmp.eq.s32.totalorder %s12, 3
    %p95 = por %p93, %p94
    %p96 = scmp.ne.s32.totalorder %s88, %s91
    %p97 = scmp.eq.s32.totalorder %s12, 0
    %p98 = por %p96, %p97
    %p99 = scmp.ne.s32.totalorder %s88, %s91
    %p100 = scmp.eq.s32.totalorder %s17, 3
    %p101 = por %p99, %p100
    %p102 = scmp.ne.s32.totalorder %s91, %s92
    %p103 = scmp.eq.s32.totalorder %s17, 0
    %p104 = por %p102, %p103
    %p105 = scmp.ne.s32.totalorder %s91, %s92
    %p106 = scmp.eq.s32.totalorder %s18, 3
    %p107 = por %p105, %p106
    %p109 = scmp.ne.s32.totalorder %s92, %s108
    %p110 = scmp.eq.s32.totalorder %s18, 0
    %p111 = por %p109, %p110
    %s112 = ssub.s32 %s19, %s31
    %p113 = scmp.eq.s32.totalorder %s112, 0
    %s115 = sadd.s32 %s114, 1
    %s116 = scalar_select %p113, %s114, %s115
    %p119 = pneg %p113
    %p120 = scmp.eq.s32.totalorder %s12, 3
    %p121 = por %p119, %p120
    %p122 = scmp.ne.s32.totalorder %s114, %s117
    %p123 = scmp.eq.s32.totalorder %s12, 0
    %p124 = por %p122, %p123
    %p125 = scmp.ne.s32.totalorder %s114, %s117
    %p126 = scmp.eq.s32.totalorder %s17, 3
    %p127 = por %p125, %p126
    %p128 = scmp.ne.s32.totalorder %s117, %s118
    %p129 = scmp.eq.s32.totalorder %s17, 0
    %p130 = por %p128, %p129
    %p131 = scmp.ne.s32.totalorder %s117, %s118
    %p132 = scmp.eq.s32.totalorder %s18, 3
    %p133 = por %p131, %p132
    %p135 = scmp.ne.s32.totalorder %s118, %s134
    %p136 = scmp.eq.s32.totalorder %s18, 0
    %p137 = por %p135, %p136
    %s139 = sadd.s32 %s138, 1
    %p142 = scmp.eq.s32.totalorder %s12, 3
    %p143 = scmp.ne.s32.totalorder %s138, %s140
    %p144 = scmp.eq.s32.totalorder %s12, 0
    %p145 = por %p143, %p144
    %p146 = scmp.ne.s32.totalorder %s138, %s140
    %p147 = scmp.eq.s32.totalorder %s17, 3
    %p148 = por %p146, %p147
    %p149 = scmp.ne.s32.totalorder %s140, %s141
    %p150 = scmp.eq.s32.totalorder %s17, 0
    %p151 = por %p149, %p150
    %p152 = scmp.ne.s32.totalorder %s140, %s141
    %p153 = scmp.eq.s32.totalorder %s18, 3
    %p154 = por %p152, %p153
    %p156 = scmp.ne.s32.totalorder %s141, %s155
    %p157 = scmp.eq.s32.totalorder %s18, 0
    %p158 = por %p156, %p157
    %s160 = sadd.s32 %s159, 1
    %p163 = scmp.eq.s32.totalorder %s12, 3
    %p164 = scmp.ne.s32.totalorder %s159, %s161
    %p165 = scmp.eq.s32.totalorder %s12, 0
    %p166 = por %p164, %p165
    %p167 = scmp.ne.s32.totalorder %s159, %s161
    %p168 = scmp.eq.s32.totalorder %s17, 3
    %p169 = por %p167, %p168
    %p170 = scmp.ne.s32.totalorder %s161, %s162
    %p171 = scmp.eq.s32.totalorder %s17, 0
    %p172 = por %p170, %p171
    %p173 = scmp.ne.s32.totalorder %s161, %s162
    %p174 = scmp.eq.s32.totalorder %s18, 3
    %p175 = por %p173, %p174
    %p177 = scmp.ne.s32.totalorder %s162, %s176
    %p178 = scmp.eq.s32.totalorder %s18, 0
    %p179 = por %p177, %p178
    %s180 = ssub.s32 %s19, %s31
    %p181 = scmp.eq.s32.totalorder %s180, 0
    %s183 = sadd.s32 %s182, 1
    %s184 = scalar_select %p181, %s182, %s183
    %p187 = pneg %p181
    %p188 = scmp.eq.s32.totalorder %s12, 3
    %p189 = por %p187, %p188
    %p190 = scmp.ne.s32.totalorder %s182, %s185
    %p191 = scmp.eq.s32.totalorder %s12, 0
    %p192 = por %p190, %p191
    %p193 = scmp.ne.s32.totalorder %s182, %s185
    %p194 = scmp.eq.s32.totalorder %s17, 3
    %p195 = por %p193, %p194
    %p196 = scmp.ne.s32.totalorder %s185, %s186
    %p197 = scmp.eq.s32.totalorder %s17, 0
    %p198 = por %p196, %p197
    %p199 = scmp.ne.s32.totalorder %s185, %s186
    %p200 = scmp.eq.s32.totalorder %s18, 3
    %p201 = por %p199, %p200
    %p203 = scmp.ne.s32.totalorder %s186, %s202
    %p204 = scmp.eq.s32.totalorder %s18, 0
    %p205 = por %p203, %p204
    %p206 = scmp.le.s32.totalorder 1, %s12
    %p207 = scmp.lt.s32.totalorder %s12, 5
    %p208 = pnand %p206, %p207
    %p209 = pneg %p208
    // Predicated region
    $region9: #{graphsage_forward.5} parent=5 // pred_check
      _
    $region10: #{graphsage_forward.5} parent=5 // pred_check_branch
      %211 = sbr.rel (%p208) target = $region12
    $region11: #{graphsage_forward.5} parent=5 // pred_region
      %s212 = ssub.s32 %s12, 1
      // Predicated region
      $region13: #{graphsage_forward.5} parent=11 // pred_check
        %p213 = pneg %p78
      $region14: #{graphsage_forward.5} parent=11 // pred_check_branch
        %215 = sbr.rel (%p213) target = $region16
      $region15: #{graphsage_forward.5} parent=11 // pred_region
        %s216 = smul.u32 64, %s22
        %p217 = scmp.lt.s32.totalorder %s216, 63
        %s218 = scalar_select %p217, %s216, 63
        %s219 = smul.addr %s218, 4
        %s220 = scalar_lea.vmem %s1, %s219
        %s221 = smul.u32 64, %s22
      $region16: #{graphsage_forward.5} parent=11 // pred_fallthru
        _
      // Predicated region
      $region17: #{graphsage_forward.5} parent=11 // pred_check
        %p222 = pneg %p151
      $region18: #{graphsage_forward.5} parent=11 // pred_check_branch
        %224 = sbr.rel (%p222) target = $region20
      $region19: #{graphsage_forward.5} parent=11 // pred_region
        _
      $region20: #{graphsage_forward.5} parent=11 // pred_fallthru
        _
      // Predicated region
      $region21: #{graphsage_forward.5} parent=11 // pred_check
        %p225 = pneg %p172
      $region22: #{graphsage_forward.5} parent=11 // pred_check_branch
        %227 = sbr.rel (%p225) target = $region24
      $region23: #{graphsage_forward.5} parent=11 // pred_region
        _
      $region24: #{graphsage_forward.5} parent=11 // pred_fallthru
        _
    $region12: #{graphsage_forward.5} parent=5 // pred_fallthru
      _
    %p228 = scmp.lt.s32.totalorder %s12, 4
    // Predicated region
    $region25: #{graphsage_forward.5} parent=5 // pred_check
      %p229 = pneg %p228
    $region26: #{graphsage_forward.5} parent=5 // pred_check_branch
      %231 = sbr.rel (%p229) target = $region28
    $region27: #{graphsage_forward.5} parent=5 // pred_region
      // Predicated region
      $region29: #{graphsage_forward.5} parent=27 // pred_check
        %p232 = pneg %p46
      $region30: #{graphsage_forward.5} parent=27 // pred_check_branch
        %234 = sbr.rel (%p232) target = $region32
      $region31: #{graphsage_forward.5} parent=27 // pred_region
        %s235 = smul.u32 4, %s19
        %s236 = smul.u32 4, %s20
        %p237 = scmp.lt.s32.totalorder %s235, 15
        %s238 = scalar_select %p237, %s235, 15
        %p239 = scmp.lt.s32.totalorder %s236, 3
        %s240 = scalar_select %p239, %s236, 3
        %s241 = smul.addr %s238, 4
        %s242 = sadd.s32 %s240, %s241
        %s243 = smul.addr %s242, 8
        %s244 = scalar_lea.vmem %s0, %s243
        %s245 = smul.u32 4, %s19
        %s246 = smul.u32 4, %s20
      $region32: #{graphsage_forward.5} parent=27 // pred_fallthru
        _
      // Predicated region
      $region33: #{graphsage_forward.5} parent=27 // pred_check
        %p247 = pneg %p98
      $region34: #{graphsage_forward.5} parent=27 // pred_check_branch
        %249 = sbr.rel (%p247) target = $region36
      $region35: #{graphsage_forward.5} parent=27 // pred_region
        %s250 = smul.u32 16, %s19
        %p251 = scmp.lt.s32.totalorder %s250, 63
        %s252 = scalar_select %p251, %s250, 63
        %s253 = smul.addr %s252, 4
        %s254 = scalar_lea.vmem %s2, %s253
        %s255 = smul.u32 16, %s19
      $region36: #{graphsage_forward.5} parent=27 // pred_fallthru
        _
      // Predicated region
      $region37: #{graphsage_forward.5} parent=27 // pred_check
        %p256 = pneg %p124
      $region38: #{graphsage_forward.5} parent=27 // pred_check_branch
        %258 = sbr.rel (%p256) target = $region40
      $region39: #{graphsage_forward.5} parent=27 // pred_region
        %s259 = smul.u32 16, %s19
        %p260 = scmp.lt.s32.totalorder %s259, 63
        %s261 = scalar_select %p260, %s259, 63
        %s262 = smul.addr %s261, 8
        %s263 = scalar_lea.vmem %s3, %s262
        %s264 = smul.u32 16, %s19
      $region40: #{graphsage_forward.5} parent=27 // pred_fallthru
        _
    $region28: #{graphsage_forward.5} parent=5 // pred_fallthru
      _
    %p265 = scmp.le.s32.totalorder 1, %s12
    %p266 = scmp.lt.s32.totalorder %s12, 5
    %p267 = pnand %p265, %p266
    %p268 = pneg %p267
    // Predicated region
    $region41: #{graphsage_forward.5} parent=5 // pred_check
      _
    $region42: #{graphsage_forward.5} parent=5 // pred_check_branch
      %270 = sbr.rel (%p267) target = $region44
    $region43: #{graphsage_forward.5} parent=5 // pred_region
      %s271 = ssub.s32 %s12, 1
      %s272 = smul.u32 4, %s21
      %s273 = smul.u32 4, %s22
      %p274 = scmp.lt.s32.totalorder %s272, 15
      %s275 = scalar_select %p274, %s272, 15
      %p276 = scmp.lt.s32.totalorder %s273, 3
      %s277 = scalar_select %p276, %s273, 3
      %s278 = smul.addr %s275, 4
      %s279 = sadd.s32 %s277, %s278
      %s280 = smul.addr %s279, 8
      %s281 = scalar_lea.vmem %s0, %s280
      %p282 = pneg %p52
      %p283 = pneg %p49
      %s284 = smul.u32 64, %s22
      %p285 = scmp.lt.s32.totalorder %s284, 63
      %s286 = scalar_select %p285, %s284, 63
      %s287 = smul.addr %s286, 4
      %s288 = scalar_lea.vmem %s1, %s287
      %p289 = pneg %p78
      %p290 = pneg %p75
      %s291 = smul.u32 16, %s21
      %p292 = scmp.lt.s32.totalorder %s291, 63
      %s293 = scalar_select %p292, %s291, 63
      %s294 = smul.addr %s293, 4
      %s295 = scalar_lea.vmem %s2, %s294
      %p296 = pneg %p104
      %p297 = pneg %p101
      %s298 = smul.u32 16, %s21
      %p299 = scmp.lt.s32.totalorder %s298, 63
      %s300 = scalar_select %p299, %s298, 63
      %s301 = smul.addr %s300, 8
      %s302 = scalar_lea.vmem %s3, %s301
      %p303 = pneg %p130
      %p304 = pneg %p127
      %p305 = pneg %p151
      %p306 = pneg %p148
      %p307 = pneg %p172
      %p308 = pneg %p169
      %p309 = pneg %p198
      %p310 = pneg %p195
      %s311 = smul.u32 16, %s21
      %p312 = scmp.lt.s32.totalorder %s311, 63
      %s313 = scalar_select %p312, %s311, 63
      %s314 = smul.addr %s313, 8
      %s315 = scalar_lea.vmem %s6, %s314
      %s316 = smul.u32 4, %s21
      %s317 = smul.u32 4, %s22
      %p318 = scmp.lt.s32.totalorder %s316, 15
      %s319 = scalar_select %p318, %s316, 15
      %p320 = scmp.lt.s32.totalorder %s317, 3
      %s321 = scalar_select %p320, %s317, 3
      %s322 = smul.addr %s319, 4
      %s323 = sadd.s32 %s321, %s322
      %s324 = smul.addr %s323, 8
      %s325 = scalar_lea.vmem %s0, %s324
      %s326 = smul.u32 4, %s21
      %s327 = smul.u32 4, %s22
      %s328 = smul.u32 64, %s22
      %p329 = scmp.lt.s32.totalorder %s328, 63
      %s330 = scalar_select %p329, %s328, 63
      %s331 = smul.addr %s330, 4
      %s332 = scalar_lea.vmem %s1, %s331
      %s333 = smul.u32 64, %s22
      %s334 = smul.u32 16, %s21
      %p335 = scmp.lt.s32.totalorder %s334, 63
      %s336 = scalar_select %p335, %s334, 63
      %s337 = smul.addr %s336, 4
      %s338 = scalar_lea.vmem %s2, %s337
      %s339 = smul.u32 16, %s21
      %s340 = smul.u32 16, %s21
      %p341 = scmp.lt.s32.totalorder %s340, 63
      %s342 = scalar_select %p341, %s340, 63
      %s343 = smul.addr %s342, 8
      %s344 = scalar_lea.vmem %s3, %s343
      %s345 = smul.u32 16, %s21
      %s346 = smul.u32 16, %s21
      %p347 = scmp.lt.s32.totalorder %s346, 63
      %s348 = scalar_select %p347, %s346, 63
      %s349 = smul.addr %s348, 8
      %s350 = scalar_lea.vmem %s6, %s349
      %s351 = smul.u32 16, %s21
      %p352 = scmp.eq.s32.totalorder %s22, 0
      // Predicated region
      $region45: #{graphsage_forward.5} parent=43 // pred_check
        %p353 = pneg %p352
      $region46: #{graphsage_forward.5} parent=43 // pred_check_branch
        %355 = sbr.rel (%p353) target = $region48
      $region47: #{graphsage_forward.5} parent=43 // pred_region
        %356 = vst [vmem:[#allocation2] sm:$0xff] 0.0
        %357 = vst [vmem:[#allocation2 + $0x8] sm:$0xff] 0.0
        %358 = vst [vmem:[#allocation2 + $0x10] sm:$0xff] 0.0
        %359 = vst [vmem:[#allocation2 + $0x18] sm:$0xff] 0.0
        %360 = vst [vmem:[#allocation2 + $0x20] sm:$0xff] 0.0
        %361 = vst [vmem:[#allocation2 + $0x28] sm:$0xff] 0.0
        %362 = vst [vmem:[#allocation2 + $0x30] sm:$0xff] 0.0
        %363 = vst [vmem:[#allocation2 + $0x38] sm:$0xff] 0.0
        %364 = vst [vmem:[#allocation2 + $0x40] sm:$0xff] 0.0
        %365 = vst [vmem:[#allocation2 + $0x48] sm:$0xff] 0.0
        %366 = vst [vmem:[#allocation2 + $0x50] sm:$0xff] 0.0
        %367 = vst [vmem:[#allocation2 + $0x58] sm:$0xff] 0.0
        %368 = vst [vmem:[#allocation2 + $0x60] sm:$0xff] 0.0
        %369 = vst [vmem:[#allocation2 + $0x68] sm:$0xff] 0.0
        %370 = vst [vmem:[#allocation2 + $0x70] sm:$0xff] 0.0
        %371 = vst [vmem:[#allocation2 + $0x78] sm:$0xff] 0.0
      $region48: #{graphsage_forward.5} parent=43 // pred_fallthru
        _
      %v372 = vld [vmem:[#allocation2] sm:$0xff]
      %v373 = vld [vmem:[#allocation2 + $0x8] sm:$0xff]
      %v374 = vld [vmem:[#allocation2 + $0x10] sm:$0xff]
      %v375 = vld [vmem:[#allocation2 + $0x18] sm:$0xff]
      %v376 = vld [vmem:[#allocation2 + $0x20] sm:$0xff]
      %v377 = vld [vmem:[#allocation2 + $0x28] sm:$0xff]
      %v378 = vld [vmem:[#allocation2 + $0x30] sm:$0xff]
      %v379 = vld [vmem:[#allocation2 + $0x38] sm:$0xff]
      %v380 = vld [vmem:[#allocation2 + $0x40] sm:$0xff]
      %v381 = vld [vmem:[#allocation2 + $0x48] sm:$0xff]
      %v382 = vld [vmem:[#allocation2 + $0x50] sm:$0xff]
      %v383 = vld [vmem:[#allocation2 + $0x58] sm:$0xff]
      %v384 = vld [vmem:[#allocation2 + $0x60] sm:$0xff]
      %v385 = vld [vmem:[#allocation2 + $0x68] sm:$0xff]
      %v386 = vld [vmem:[#allocation2 + $0x70] sm:$0xff]
      %v387 = vld [vmem:[#allocation2 + $0x78] sm:$0xff]
      %v388 = vld [vmem:[%s325] sm:$0xff]
      %v389 = vld [vmem:[%s325 + $0x8] sm:$0xff]
      %v390 = vld [vmem:[%s325 + $0x10] sm:$0xff]
      %v391 = vld [vmem:[%s325 + $0x18] sm:$0xff]
      %v392 = vld [vmem:[%s325 + $0x20] sm:$0xff]
      %v393 = vld [vmem:[%s325 + $0x28] sm:$0xff]
      %v394 = vld [vmem:[%s325 + $0x30] sm:$0xff]
      %v395 = vld [vmem:[%s325 + $0x38] sm:$0xff]
      %v396 = vld [vmem:[%s325 + $0x40] sm:$0xff]
      %v397 = vld [vmem:[%s325 + $0x48] sm:$0xff]
      %v398 = vld [vmem:[%s325 + $0x50] sm:$0xff]
      %v399 = vld [vmem:[%s325 + $0x58] sm:$0xff]
      %v400 = vld [vmem:[%s325 + $0x60] sm:$0xff]
      %v401 = vld [vmem:[%s325 + $0x68] sm:$0xff]
      %v402 = vld [vmem:[%s325 + $0x70] sm:$0xff]
      %v403 = vld [vmem:[%s325 + $0x78] sm:$0xff]
      %v404 = vunpack.c.0.s8 %v388
      %v405 = vunpack.c.0.s8 %v389
      %v406 = vunpack.c.0.s8 %v390
      %v407 = vunpack.c.0.s8 %v391
      %v408 = vunpack.c.1.s8 %v388
      %v409 = vunpack.c.1.s8 %v389
      %v410 = vunpack.c.1.s8 %v390
      %v411 = vunpack.c.1.s8 %v391
      %v412 = vunpack.c.2.s8 %v388
      %v413 = vunpack.c.2.s8 %v389
      %v414 = vunpack.c.2.s8 %v390
      %v415 = vunpack.c.2.s8 %v391
      %v416 = vunpack.c.3.s8 %v388
      %v417 = vunpack.c.3.s8 %v389
      %v418 = vunpack.c.3.s8 %v390
      %v419 = vunpack.c.3.s8 %v391
      %v420 = vunpack.c.0.s8 %v392
      %v421 = vunpack.c.0.s8 %v393
      %v422 = vunpack.c.0.s8 %v394
      %v423 = vunpack.c.0.s8 %v395
      %v424 = vunpack.c.1.s8 %v392
      %v425 = vunpack.c.1.s8 %v393
      %v426 = vunpack.c.1.s8 %v394
      %v427 = vunpack.c.1.s8 %v395
      %v428 = vunpack.c.2.s8 %v392
      %v429 = vunpack.c.2.s8 %v393
      %v430 = vunpack.c.2.s8 %v394
      %v431 = vunpack.c.2.s8 %v395
      %v432 = vunpack.c.3.s8 %v392
      %v433 = vunpack.c.3.s8 %v393
      %v434 = vunpack.c.3.s8 %v394
      %v435 = vunpack.c.3.s8 %v395
      %v436 = vunpack.c.0.s8 %v396
      %v437 = vunpack.c.0.s8 %v397
      %v438 = vunpack.c.0.s8 %v398
      %v439 = vunpack.c.0.s8 %v399
      %v440 = vunpack.c.1.s8 %v396
      %v441 = vunpack.c.1.s8 %v397
      %v442 = vunpack.c.1.s8 %v398
      %v443 = vunpack.c.1.s8 %v399
      %v444 = vunpack.c.2.s8 %v396
      %v445 = vunpack.c.2.s8 %v397
      %v446 = vunpack.c.2.s8 %v398
      %v447 = vunpack.c.2.s8 %v399
      %v448 = vunpack.c.3.s8 %v396
      %v449 = vunpack.c.3.s8 %v397
      %v450 = vunpack.c.3.s8 %v398
      %v451 = vunpack.c.3.s8 %v399
      %v452 = vunpack.c.0.s8 %v400
      %v453 = vunpack.c.0.s8 %v401
      %v454 = vunpack.c.0.s8 %v402
      %v455 = vunpack.c.0.s8 %v403
      %v456 = vunpack.c.1.s8 %v400
      %v457 = vunpack.c.1.s8 %v401
      %v458 = vunpack.c.1.s8 %v402
      %v459 = vunpack.c.1.s8 %v403
      %v460 = vunpack.c.2.s8 %v400
      %v461 = vunpack.c.2.s8 %v401
      %v462 = vunpack.c.2.s8 %v402
      %v463 = vunpack.c.2.s8 %v403
      %v464 = vunpack.c.3.s8 %v400
      %v465 = vunpack.c.3.s8 %v401
      %v466 = vunpack.c.3.s8 %v402
      %v467 = vunpack.c.3.s8 %v403
      %v468 = vcvt.s32.f32 %v404
      %v469 = vcvt.s32.f32 %v405
      %v470 = vcvt.s32.f32 %v406
      %v471 = vcvt.s32.f32 %v407
      %v472 = vcvt.s32.f32 %v408
      %v473 = vcvt.s32.f32 %v409
      %v474 = vcvt.s32.f32 %v410
      %v475 = vcvt.s32.f32 %v411
      %v476 = vcvt.s32.f32 %v412
      %v477 = vcvt.s32.f32 %v413
      %v478 = vcvt.s32.f32 %v414
      %v479 = vcvt.s32.f32 %v415
      %v480 = vcvt.s32.f32 %v416
      %v481 = vcvt.s32.f32 %v417
      %v482 = vcvt.s32.f32 %v418
      %v483 = vcvt.s32.f32 %v419
      %v484 = vcvt.s32.f32 %v420
      %v485 = vcvt.s32.f32 %v421
      %v486 = vcvt.s32.f32 %v422
      %v487 = vcvt.s32.f32 %v423
      %v488 = vcvt.s32.f32 %v424
      %v489 = vcvt.s32.f32 %v425
      %v490 = vcvt.s32.f32 %v426
      %v491 = vcvt.s32.f32 %v427
      %v492 = vcvt.s32.f32 %v428
      %v493 = vcvt.s32.f32 %v429
      %v494 = vcvt.s32.f32 %v430
      %v495 = vcvt.s32.f32 %v431
      %v496 = vcvt.s32.f32 %v432
      %v497 = vcvt.s32.f32 %v433
      %v498 = vcvt.s32.f32 %v434
      %v499 = vcvt.s32.f32 %v435
      %v500 = vcvt.s32.f32 %v436
      %v501 = vcvt.s32.f32 %v437
      %v502 = vcvt.s32.f32 %v438
      %v503 = vcvt.s32.f32 %v439
      %v504 = vcvt.s32.f32 %v440
      %v505 = vcvt.s32.f32 %v441
      %v506 = vcvt.s32.f32 %v442
      %v507 = vcvt.s32.f32 %v443
      %v508 = vcvt.s32.f32 %v444
      %v509 = vcvt.s32.f32 %v445
      %v510 = vcvt.s32.f32 %v446
      %v511 = vcvt.s32.f32 %v447
      %v512 = vcvt.s32.f32 %v448
      %v513 = vcvt.s32.f32 %v449
      %v514 = vcvt.s32.f32 %v450
      %v515 = vcvt.s32.f32 %v451
      %v516 = vcvt.s32.f32 %v452
      %v517 = vcvt.s32.f32 %v453
      %v518 = vcvt.s32.f32 %v454
      %v519 = vcvt.s32.f32 %v455
      %v520 = vcvt.s32.f32 %v456
      %v521 = vcvt.s32.f32 %v457
      %v522 = vcvt.s32.f32 %v458
      %v523 = vcvt.s32.f32 %v459
      %v524 = vcvt.s32.f32 %v460
      %v525 = vcvt.s32.f32 %v461
      %v526 = vcvt.s32.f32 %v462
      %v527 = vcvt.s32.f32 %v463
      %v528 = vcvt.s32.f32 %v464
      %v529 = vcvt.s32.f32 %v465
      %v530 = vcvt.s32.f32 %v466
      %v531 = vcvt.s32.f32 %v467
      %v532 = vpack.c.bf16 %v472, %v468
      %v533 = vpack.c.bf16 %v473, %v469
      %v534 = vpack.c.bf16 %v474, %v470
      %v535 = vpack.c.bf16 %v475, %v471
      %v536 = vpack.c.bf16 %v480, %v476
      %v537 = vpack.c.bf16 %v481, %v477
      %v538 = vpack.c.bf16 %v482, %v478
      %v539 = vpack.c.bf16 %v483, %v479
      %v540 = vpack.c.bf16 %v488, %v484
      %v541 = vpack.c.bf16 %v489, %v485
      %v542 = vpack.c.bf16 %v490, %v486
      %v543 = vpack.c.bf16 %v491, %v487
      %v544 = vpack.c.bf16 %v496, %v492
      %v545 = vpack.c.bf16 %v497, %v493
      %v546 = vpack.c.bf16 %v498, %v494
      %v547 = vpack.c.bf16 %v499, %v495
      %v548 = vpack.c.bf16 %v504, %v500
      %v549 = vpack.c.bf16 %v505, %v501
      %v550 = vpack.c.bf16 %v506, %v502
      %v551 = vpack.c.bf16 %v507, %v503
      %v552 = vpack.c.bf16 %v512, %v508
      %v553 = vpack.c.bf16 %v513, %v509
      %v554 = vpack.c.bf16 %v514, %v510
      %v555 = vpack.c.bf16 %v515, %v511
      %v556 = vpack.c.bf16 %v520, %v516
      %v557 = vpack.c.bf16 %v521, %v517
      %v558 = vpack.c.bf16 %v522, %v518
      %v559 = vpack.c.bf16 %v523, %v519
      %v560 = vpack.c.bf16 %v528, %v524
      %v561 = vpack.c.bf16 %v529, %v525
      %v562 = vpack.c.bf16 %v530, %v526
      %v563 = vpack.c.bf16 %v531, %v527
      %v564 = vld [vmem:[%s332] sm:$0xf]
      %v565 = vld [vmem:[%s332 + $0x4] sm:$0xf]
      %v566 = vld [vmem:[%s332 + $0x8] sm:$0xf]
      %v567 = vld [vmem:[%s332 + $0xc] sm:$0xf]
      %v568 = vld [vmem:[%s332 + $0x10] sm:$0xf]
      %v569 = vld [vmem:[%s332 + $0x14] sm:$0xf]
      %v570 = vld [vmem:[%s332 + $0x18] sm:$0xf]
      %v571 = vld [vmem:[%s332 + $0x1c] sm:$0xf]
      %v572 = vld [vmem:[%s332 + $0x20] sm:$0xf]
      %v573 = vld [vmem:[%s332 + $0x24] sm:$0xf]
      %v574 = vld [vmem:[%s332 + $0x28] sm:$0xf]
      %v575 = vld [vmem:[%s332 + $0x2c] sm:$0xf]
      %v576 = vld [vmem:[%s332 + $0x30] sm:$0xf]
      %v577 = vld [vmem:[%s332 + $0x34] sm:$0xf]
      %v578 = vld [vmem:[%s332 + $0x38] sm:$0xf]
      %v579 = vld [vmem:[%s332 + $0x3c] sm:$0xf]
      %v580 = vld [vmem:[%s332 + $0x40] sm:$0xf]
      %v581 = vld [vmem:[%s332 + $0x44] sm:$0xf]
      %v582 = vld [vmem:[%s332 + $0x48] sm:$0xf]
      %v583 = vld [vmem:[%s332 + $0x4c] sm:$0xf]
      %v584 = vld [vmem:[%s332 + $0x50] sm:$0xf]
      %v585 = vld [vmem:[%s332 + $0x54] sm:$0xf]
      %v586 = vld [vmem:[%s332 + $0x58] sm:$0xf]
      %v587 = vld [vmem:[%s332 + $0x5c] sm:$0xf]
      %v588 = vld [vmem:[%s332 + $0x60] sm:$0xf]
      %v589 = vld [vmem:[%s332 + $0x64] sm:$0xf]
      %v590 = vld [vmem:[%s332 + $0x68] sm:$0xf]
      %v591 = vld [vmem:[%s332 + $0x6c] sm:$0xf]
      %v592 = vld [vmem:[%s332 + $0x70] sm:$0xf]
      %v593 = vld [vmem:[%s332 + $0x74] sm:$0xf]
      %v594 = vld [vmem:[%s332 + $0x78] sm:$0xf]
      %v595 = vld [vmem:[%s332 + $0x7c] sm:$0xf]
      %v596 = vld [vmem:[%s332 + $0x80] sm:$0xf]
      %v597 = vld [vmem:[%s332 + $0x84] sm:$0xf]
      %v598 = vld [vmem:[%s332 + $0x88] sm:$0xf]
      %v599 = vld [vmem:[%s332 + $0x8c] sm:$0xf]
      %v600 = vld [vmem:[%s332 + $0x90] sm:$0xf]
      %v601 = vld [vmem:[%s332 + $0x94] sm:$0xf]
      %v602 = vld [vmem:[%s332 + $0x98] sm:$0xf]
      %v603 = vld [vmem:[%s332 + $0x9c] sm:$0xf]
      %v604 = vld [vmem:[%s332 + $0xa0] sm:$0xf]
      %v605 = vld [vmem:[%s332 + $0xa4] sm:$0xf]
      %v606 = vld [vmem:[%s332 + $0xa8] sm:$0xf]
      %v607 = vld [vmem:[%s332 + $0xac] sm:$0xf]
      %v608 = vld [vmem:[%s332 + $0xb0] sm:$0xf]
      %v609 = vld [vmem:[%s332 + $0xb4] sm:$0xf]
      %v610 = vld [vmem:[%s332 + $0xb8] sm:$0xf]
      %v611 = vld [vmem:[%s332 + $0xbc] sm:$0xf]
      %v612 = vld [vmem:[%s332 + $0xc0] sm:$0xf]
      %v613 = vld [vmem:[%s332 + $0xc4] sm:$0xf]
      %v614 = vld [vmem:[%s332 + $0xc8] sm:$0xf]
      %v615 = vld [vmem:[%s332 + $0xcc] sm:$0xf]
      %v616 = vld [vmem:[%s332 + $0xd0] sm:$0xf]
      %v617 = vld [vmem:[%s332 + $0xd4] sm:$0xf]
      %v618 = vld [vmem:[%s332 + $0xd8] sm:$0xf]
      %v619 = vld [vmem:[%s332 + $0xdc] sm:$0xf]
      %v620 = vld [vmem:[%s332 + $0xe0] sm:$0xf]
      %v621 = vld [vmem:[%s332 + $0xe4] sm:$0xf]
      %v622 = vld [vmem:[%s332 + $0xe8] sm:$0xf]
      %v623 = vld [vmem:[%s332 + $0xec] sm:$0xf]
      %v624 = vld [vmem:[%s332 + $0xf0] sm:$0xf]
      %v625 = vld [vmem:[%s332 + $0xf4] sm:$0xf]
      %v626 = vld [vmem:[%s332 + $0xf8] sm:$0xf]
      %v627 = vld [vmem:[%s332 + $0xfc] sm:$0xf]
      %v692 = vunpack.c.l.b16 %v564
      %v693 = vunpack.c.l.b16 %v565
      %v694 = vunpack.c.l.b16 %v566
      %v695 = vunpack.c.l.b16 %v567
      %v696 = vunpack.c.l.b16 %v568
      %v697 = vunpack.c.l.b16 %v569
      %v698 = vunpack.c.l.b16 %v570
      %v699 = vunpack.c.l.b16 %v571
      %v700 = vunpack.c.l.b16 %v572
      %v701 = vunpack.c.l.b16 %v573
      %v702 = vunpack.c.l.b16 %v574
      %v703 = vunpack.c.l.b16 %v575
      %v704 = vunpack.c.l.b16 %v576
      %v705 = vunpack.c.l.b16 %v577
      %v706 = vunpack.c.l.b16 %v578
      %v707 = vunpack.c.l.b16 %v579
      %v708 = vunpack.c.l.b16 %v580
      %v709 = vunpack.c.l.b16 %v581
      %v710 = vunpack.c.l.b16 %v582
      %v711 = vunpack.c.l.b16 %v583
      %v712 = vunpack.c.l.b16 %v584
      %v713 = vunpack.c.l.b16 %v585
      %v714 = vunpack.c.l.b16 %v586
      %v715 = vunpack.c.l.b16 %v587
      %v716 = vunpack.c.l.b16 %v588
      %v717 = vunpack.c.l.b16 %v589
      %v718 = vunpack.c.l.b16 %v590
      %v719 = vunpack.c.l.b16 %v591
      %v720 = vunpack.c.l.b16 %v592
      %v721 = vunpack.c.l.b16 %v593
      %v722 = vunpack.c.l.b16 %v594
      %v723 = vunpack.c.l.b16 %v595
      %v724 = vunpack.c.l.b16 %v596
      %v725 = vunpack.c.l.b16 %v597
      %v726 = vunpack.c.l.b16 %v598
      %v727 = vunpack.c.l.b16 %v599
      %v728 = vunpack.c.l.b16 %v600
      %v729 = vunpack.c.l.b16 %v601
      %v730 = vunpack.c.l.b16 %v602
      %v731 = vunpack.c.l.b16 %v603
      %v732 = vunpack.c.l.b16 %v604
      %v733 = vunpack.c.l.b16 %v605
      %v734 = vunpack.c.l.b16 %v606
      %v735 = vunpack.c.l.b16 %v607
      %v736 = vunpack.c.l.b16 %v608
      %v737 = vunpack.c.l.b16 %v609
      %v738 = vunpack.c.l.b16 %v610
      %v739 = vunpack.c.l.b16 %v611
      %v740 = vunpack.c.l.b16 %v612
      %v741 = vunpack.c.l.b16 %v613
      %v742 = vunpack.c.l.b16 %v614
      %v743 = vunpack.c.l.b16 %v615
      %v744 = vunpack.c.l.b16 %v616
      %v745 = vunpack.c.l.b16 %v617
      %v746 = vunpack.c.l.b16 %v618
      %v747 = vunpack.c.l.b16 %v619
      %v748 = vunpack.c.l.b16 %v620
      %v749 = vunpack.c.l.b16 %v621
      %v750 = vunpack.c.l.b16 %v622
      %v751 = vunpack.c.l.b16 %v623
      %v752 = vunpack.c.l.b16 %v624
      %v753 = vunpack.c.l.b16 %v625
      %v754 = vunpack.c.l.b16 %v626
      %v755 = vunpack.c.l.b16 %v627
      %v756 = vpack.c.b16 %v693, %v692
      %v757 = vpack.c.b16 %v695, %v694
      %v758 = vpack.c.b16 %v697, %v696
      %v759 = vpack.c.b16 %v699, %v698
      %v760 = vpack.c.b16 %v701, %v700
      %v761 = vpack.c.b16 %v703, %v702
      %v762 = vpack.c.b16 %v705, %v704
      %v763 = vpack.c.b16 %v707, %v706
      %v764 = vpack.c.b16 %v709, %v708
      %v765 = vpack.c.b16 %v711, %v710
      %v766 = vpack.c.b16 %v713, %v712
      %v767 = vpack.c.b16 %v715, %v714
      %v768 = vpack.c.b16 %v717, %v716
      %v769 = vpack.c.b16 %v719, %v718
      %v770 = vpack.c.b16 %v721, %v720
      %v771 = vpack.c.b16 %v723, %v722
      %v772 = vpack.c.b16 %v725, %v724
      %v773 = vpack.c.b16 %v727, %v726
      %v774 = vpack.c.b16 %v729, %v728
      %v775 = vpack.c.b16 %v731, %v730
      %v776 = vpack.c.b16 %v733, %v732
      %v777 = vpack.c.b16 %v735, %v734
      %v778 = vpack.c.b16 %v737, %v736
      %v779 = vpack.c.b16 %v739, %v738
      %v780 = vpack.c.b16 %v741, %v740
      %v781 = vpack.c.b16 %v743, %v742
      %v782 = vpack.c.b16 %v745, %v744
      %v783 = vpack.c.b16 %v747, %v746
      %v784 = vpack.c.b16 %v749, %v748
      %v785 = vpack.c.b16 %v751, %v750
      %v786 = vpack.c.b16 %v753, %v752
      %v787 = vpack.c.b16 %v755, %v754
      %820 = vmatpush.bf16.msra.mxu0 %v763
      %821 = vmatpush.bf16.msra.mxu0 %v762
      %822 = vmatpush.bf16.msra.mxu0 %v761
      %823 = vmatpush.bf16.msra.mxu0 %v760
      %824 = vmatpush.bf16.msra.mxu0 %v759
      %825 = vmatpush.bf16.msra.mxu0 %v758
      %826 = vmatpush.bf16.msra.mxu0 %v757
      %827 = vmatpush.bf16.msra.mxu0 %v756
      %828 = vmatmul.bf16.gmra.mxu0 %v532
      %v829 = vpop.f32.mrf.mxu0
      %v830 = vadd.f32 0.0, %v829
      %v831 = vpop.f32.mrf.mxu0
      %v832 = vadd.f32 0.0, %v831
      %833 = vmatmul.bf16.gmra.mxu0 %v536
      %v834 = vpop.f32.mrf.mxu0
      %v835 = vadd.f32 0.0, %v834
      %v836 = vpop.f32.mrf.mxu0
      %v837 = vadd.f32 0.0, %v836
      %838 = vmatmul.bf16.gmra.mxu0 %v540
      %v839 = vpop.f32.mrf.mxu0
      %v840 = vadd.f32 0.0, %v839
      %v841 = vpop.f32.mrf.mxu0
      %v842 = vadd.f32 0.0, %v841
      %843 = vmatmul.bf16.gmra.mxu0 %v544
      %v844 = vpop.f32.mrf.mxu0
      %v845 = vadd.f32 0.0, %v844
      %v846 = vpop.f32.mrf.mxu0
      %v847 = vadd.f32 0.0, %v846
      %848 = vmatmul.bf16.gmra.mxu0 %v548
      %v849 = vpop.f32.mrf.mxu0
      %v850 = vadd.f32 0.0, %v849
      %v851 = vpop.f32.mrf.mxu0
      %v852 = vadd.f32 0.0, %v851
      %853 = vmatmul.bf16.gmra.mxu0 %v552
      %v854 = vpop.f32.mrf.mxu0
      %v855 = vadd.f32 0.0, %v854
      %v856 = vpop.f32.mrf.mxu0
      %v857 = vadd.f32 0.0, %v856
      %858 = vmatmul.bf16.gmra.mxu0 %v556
      %v859 = vpop.f32.mrf.mxu0
      %v860 = vadd.f32 0.0, %v859
      %v861 = vpop.f32.mrf.mxu0
      %v862 = vadd.f32 0.0, %v861
      %863 = vmatmul.bf16.gmra.mxu0 %v560
      %v864 = vpop.f32.mrf.mxu0
      %v865 = vadd.f32 0.0, %v864
      %v866 = vpop.f32.mrf.mxu0
      %v867 = vadd.f32 0.0, %v866
      %868 = vdwg.mxu0
      %869 = vmatpush.bf16.msra.mxu0 %v771
      %870 = vmatpush.bf16.msra.mxu0 %v770
      %871 = vmatpush.bf16.msra.mxu0 %v769
      %872 = vmatpush.bf16.msra.mxu0 %v768
      %873 = vmatpush.bf16.msra.mxu0 %v767
      %874 = vmatpush.bf16.msra.mxu0 %v766
      %875 = vmatpush.bf16.msra.mxu0 %v765
      %876 = vmatpush.bf16.msra.mxu0 %v764
      %877 = vmatmul.bf16.gmra.mxu0 %v533
      %v878 = vpop.f32.mrf.mxu0
      %v879 = vadd.f32 %v830, %v878
      %v880 = vpop.f32.mrf.mxu0
      %v881 = vadd.f32 %v832, %v880
      %882 = vmatmul.bf16.gmra.mxu0 %v537
      %v883 = vpop.f32.mrf.mxu0
      %v884 = vadd.f32 %v835, %v883
      %v885 = vpop.f32.mrf.mxu0
      %v886 = vadd.f32 %v837, %v885
      %887 = vmatmul.bf16.gmra.mxu0 %v541
      %v888 = vpop.f32.mrf.mxu0
      %v889 = vadd.f32 %v840, %v888
      %v890 = vpop.f32.mrf.mxu0
      %v891 = vadd.f32 %v842, %v890
      %892 = vmatmul.bf16.gmra.mxu0 %v545
      %v893 = vpop.f32.mrf.mxu0
      %v894 = vadd.f32 %v845, %v893
      %v895 = vpop.f32.mrf.mxu0
      %v896 = vadd.f32 %v847, %v895
      %897 = vmatmul.bf16.gmra.mxu0 %v549
      %v898 = vpop.f32.mrf.mxu0
      %v899 = vadd.f32 %v850, %v898
      %v900 = vpop.f32.mrf.mxu0
      %v901 = vadd.f32 %v852, %v900
      %902 = vmatmul.bf16.gmra.mxu0 %v553
      %v903 = vpop.f32.mrf.mxu0
      %v904 = vadd.f32 %v855, %v903
      %v905 = vpop.f32.mrf.mxu0
      %v906 = vadd.f32 %v857, %v905
      %907 = vmatmul.bf16.gmra.mxu0 %v557
      %v908 = vpop.f32.mrf.mxu0
      %v909 = vadd.f32 %v860, %v908
      %v910 = vpop.f32.mrf.mxu0
      %v911 = vadd.f32 %v862, %v910
      %912 = vmatmul.bf16.gmra.mxu0 %v561
      %v913 = vpop.f32.mrf.mxu0
      %v914 = vadd.f32 %v865, %v913
      %v915 = vpop.f32.mrf.mxu0
      %v916 = vadd.f32 %v867, %v915
      %917 = vdwg.mxu0
      %918 = vmatpush.bf16.msra.mxu0 %v779
      %919 = vmatpush.bf16.msra.mxu0 %v778
      %920 = vmatpush.bf16.msra.mxu0 %v777
      %921 = vmatpush.bf16.msra.mxu0 %v776
      %922 = vmatpush.bf16.msra.mxu0 %v775
      %923 = vmatpush.bf16.msra.mxu0 %v774
      %924 = vmatpush.bf16.msra.mxu0 %v773
      %925 = vmatpush.bf16.msra.mxu0 %v772
      %926 = vmatmul.bf16.gmra.mxu0 %v534
      %v927 = vpop.f32.mrf.mxu0
      %v928 = vadd.f32 %v879, %v927
      %v929 = vpop.f32.mrf.mxu0
      %v930 = vadd.f32 %v881, %v929
      %931 = vmatmul.bf16.gmra.mxu0 %v538
      %v932 = vpop.f32.mrf.mxu0
      %v933 = vadd.f32 %v884, %v932
      %v934 = vpop.f32.mrf.mxu0
      %v935 = vadd.f32 %v886, %v934
      %936 = vmatmul.bf16.gmra.mxu0 %v542
      %v937 = vpop.f32.mrf.mxu0
      %v938 = vadd.f32 %v889, %v937
      %v939 = vpop.f32.mrf.mxu0
      %v940 = vadd.f32 %v891, %v939
      %941 = vmatmul.bf16.gmra.mxu0 %v546
      %v942 = vpop.f32.mrf.mxu0
      %v943 = vadd.f32 %v894, %v942
      %v944 = vpop.f32.mrf.mxu0
      %v945 = vadd.f32 %v896, %v944
      %946 = vmatmul.bf16.gmra.mxu0 %v550
      %v947 = vpop.f32.mrf.mxu0
      %v948 = vadd.f32 %v899, %v947
      %v949 = vpop.f32.mrf.mxu0
      %v950 = vadd.f32 %v901, %v949
      %951 = vmatmul.bf16.gmra.mxu0 %v554
      %v952 = vpop.f32.mrf.mxu0
      %v953 = vadd.f32 %v904, %v952
      %v954 = vpop.f32.mrf.mxu0
      %v955 = vadd.f32 %v906, %v954
      %956 = vmatmul.bf16.gmra.mxu0 %v558
      %v957 = vpop.f32.mrf.mxu0
      %v958 = vadd.f32 %v909, %v957
      %v959 = vpop.f32.mrf.mxu0
      %v960 = vadd.f32 %v911, %v959
      %961 = vmatmul.bf16.gmra.mxu0 %v562
      %v962 = vpop.f32.mrf.mxu0
      %v963 = vadd.f32 %v914, %v962
      %v964 = vpop.f32.mrf.mxu0
      %v965 = vadd.f32 %v916, %v964
      %966 = vdwg.mxu0
      %967 = vmatpush.bf16.msra.mxu0 %v787
      %968 = vmatpush.bf16.msra.mxu0 %v786
      %969 = vmatpush.bf16.msra.mxu0 %v785
      %970 = vmatpush.bf16.msra.mxu0 %v784
      %971 = vmatpush.bf16.msra.mxu0 %v783
      %972 = vmatpush.bf16.msra.mxu0 %v782
      %973 = vmatpush.bf16.msra.mxu0 %v781
      %974 = vmatpush.bf16.msra.mxu0 %v780
      %975 = vmatmul.bf16.gmra.mxu0 %v535
      %v976 = vpop.f32.mrf.mxu0
      %v977 = vadd.f32 %v928, %v976
      %v978 = vpop.f32.mrf.mxu0
      %v979 = vadd.f32 %v930, %v978
      %980 = vmatmul.bf16.gmra.mxu0 %v539
      %v981 = vpop.f32.mrf.mxu0
      %v982 = vadd.f32 %v933, %v981
      %v983 = vpop.f32.mrf.mxu0
      %v984 = vadd.f32 %v935, %v983
      %985 = vmatmul.bf16.gmra.mxu0 %v543
      %v986 = vpop.f32.mrf.mxu0
      %v987 = vadd.f32 %v938, %v986
      %v988 = vpop.f32.mrf.mxu0
      %v989 = vadd.f32 %v940, %v988
      %990 = vmatmul.bf16.gmra.mxu0 %v547
      %v991 = vpop.f32.mrf.mxu0
      %v992 = vadd.f32 %v943, %v991
      %v993 = vpop.f32.mrf.mxu0
      %v994 = vadd.f32 %v945, %v993
      %995 = vmatmul.bf16.gmra.mxu0 %v551
      %v996 = vpop.f32.mrf.mxu0
      %v997 = vadd.f32 %v948, %v996
      %v998 = vpop.f32.mrf.mxu0
      %v999 = vadd.f32 %v950, %v998
      %1000 = vmatmul.bf16.gmra.mxu0 %v555
      %v1001 = vpop.f32.mrf.mxu0
      %v1002 = vadd.f32 %v953, %v1001
      %v1003 = vpop.f32.mrf.mxu0
      %v1004 = vadd.f32 %v955, %v1003
      %1005 = vmatmul.bf16.gmra.mxu0 %v559
      %v1006 = vpop.f32.mrf.mxu0
      %v1007 = vadd.f32 %v958, %v1006
      %v1008 = vpop.f32.mrf.mxu0
      %v1009 = vadd.f32 %v960, %v1008
      %1010 = vmatmul.bf16.gmra.mxu0 %v563
      %v1011 = vpop.f32.mrf.mxu0
      %v1012 = vadd.f32 %v963, %v1011
      %v1013 = vpop.f32.mrf.mxu0
      %v1014 = vadd.f32 %v965, %v1013
      %1015 = vdwg.mxu0
      %v1016 = vadd.f32 %v372, %v977
      %v1017 = vadd.f32 %v373, %v979
      %v1018 = vadd.f32 %v374, %v982
      %v1019 = vadd.f32 %v375, %v984
      %v1020 = vadd.f32 %v376, %v987
      %v1021 = vadd.f32 %v377, %v989
      %v1022 = vadd.f32 %v378, %v992
      %v1023 = vadd.f32 %v379, %v994
      %v1024 = vadd.f32 %v380, %v997
      %v1025 = vadd.f32 %v381, %v999
      %v1026 = vadd.f32 %v382, %v1002
      %v1027 = vadd.f32 %v383, %v1004
      %v1028 = vadd.f32 %v384, %v1007
      %v1029 = vadd.f32 %v385, %v1009
      %v1030 = vadd.f32 %v386, %v1012
      %v1031 = vadd.f32 %v387, %v1014
      %1032 = vst [vmem:[#allocation2] sm:$0xff] %v1016
      %1033 = vst [vmem:[#allocation2 + $0x8] sm:$0xff] %v1017
      %1034 = vst [vmem:[#allocation2 + $0x10] sm:$0xff] %v1018
      %1035 = vst [vmem:[#allocation2 + $0x18] sm:$0xff] %v1019
      %1036 = vst [vmem:[#allocation2 + $0x20] sm:$0xff] %v1020
      %1037 = vst [vmem:[#allocation2 + $0x28] sm:$0xff] %v1021
      %1038 = vst [vmem:[#allocation2 + $0x30] sm:$0xff] %v1022
      %1039 = vst [vmem:[#allocation2 + $0x38] sm:$0xff] %v1023
      %1040 = vst [vmem:[#allocation2 + $0x40] sm:$0xff] %v1024
      %1041 = vst [vmem:[#allocation2 + $0x48] sm:$0xff] %v1025
      %1042 = vst [vmem:[#allocation2 + $0x50] sm:$0xff] %v1026
      %1043 = vst [vmem:[#allocation2 + $0x58] sm:$0xff] %v1027
      %1044 = vst [vmem:[#allocation2 + $0x60] sm:$0xff] %v1028
      %1045 = vst [vmem:[#allocation2 + $0x68] sm:$0xff] %v1029
      %1046 = vst [vmem:[#allocation2 + $0x70] sm:$0xff] %v1030
      %1047 = vst [vmem:[#allocation2 + $0x78] sm:$0xff] %v1031
      // Predicated region
      $region49: #{graphsage_forward.5} parent=43 // pred_check
        %p1048 = pneg %p352
      $region50: #{graphsage_forward.5} parent=43 // pred_check_branch
        %1050 = sbr.rel (%p1048) target = $region52
      $region51: #{graphsage_forward.5} parent=43 // pred_region
        %v1051 = vld [vmem:[#allocation2] sm:$0xff]
        %v1052 = vld [vmem:[#allocation2 + $0x8] sm:$0xff]
        %v1053 = vld [vmem:[#allocation2 + $0x10] sm:$0xff]
        %v1054 = vld [vmem:[#allocation2 + $0x18] sm:$0xff]
        %v1055 = vld [vmem:[#allocation2 + $0x20] sm:$0xff]
        %v1056 = vld [vmem:[#allocation2 + $0x28] sm:$0xff]
        %v1057 = vld [vmem:[#allocation2 + $0x30] sm:$0xff]
        %v1058 = vld [vmem:[#allocation2 + $0x38] sm:$0xff]
        %v1059 = vld [vmem:[#allocation2 + $0x40] sm:$0xff]
        %v1060 = vld [vmem:[#allocation2 + $0x48] sm:$0xff]
        %v1061 = vld [vmem:[#allocation2 + $0x50] sm:$0xff]
        %v1062 = vld [vmem:[#allocation2 + $0x58] sm:$0xff]
        %v1063 = vld [vmem:[#allocation2 + $0x60] sm:$0xff]
        %v1064 = vld [vmem:[#allocation2 + $0x68] sm:$0xff]
        %v1065 = vld [vmem:[#allocation2 + $0x70] sm:$0xff]
        %v1066 = vld [vmem:[#allocation2 + $0x78] sm:$0xff]
        %v1067 = vld [vmem:[%s344] sm:$0xff]
        %v1068 = vld [vmem:[%s344 + $0x8] sm:$0xff]
        %v1069 = vld [vmem:[%s344 + $0x10] sm:$0xff]
        %v1070 = vld [vmem:[%s344 + $0x18] sm:$0xff]
        %v1071 = vld [vmem:[%s344 + $0x20] sm:$0xff]
        %v1072 = vld [vmem:[%s344 + $0x28] sm:$0xff]
        %v1073 = vld [vmem:[%s344 + $0x30] sm:$0xff]
        %v1074 = vld [vmem:[%s344 + $0x38] sm:$0xff]
        %v1075 = vld [vmem:[%s344 + $0x40] sm:$0xff]
        %v1076 = vld [vmem:[%s344 + $0x48] sm:$0xff]
        %v1077 = vld [vmem:[%s344 + $0x50] sm:$0xff]
        %v1078 = vld [vmem:[%s344 + $0x58] sm:$0xff]
        %v1079 = vld [vmem:[%s344 + $0x60] sm:$0xff]
        %v1080 = vld [vmem:[%s344 + $0x68] sm:$0xff]
        %v1081 = vld [vmem:[%s344 + $0x70] sm:$0xff]
        %v1082 = vld [vmem:[%s344 + $0x78] sm:$0xff]
        %1084 = vset.pattern.permute.xlu0 0
        %1085 = vperm.xlu0 %1084, %v1067
        %v1086 = vpop.permute.xlu0 %1085
        %1089 = vset.pattern.permute.xlu0 0
        %1090 = vperm.xlu0 %1089, %v1068
        %v1091 = vpop.permute.xlu0 %1090
        %1094 = vset.pattern.permute.xlu0 0
        %1095 = vperm.xlu0 %1094, %v1069
        %v1096 = vpop.permute.xlu0 %1095
        %1099 = vset.pattern.permute.xlu0 0
        %1100 = vperm.xlu0 %1099, %v1070
        %v1101 = vpop.permute.xlu0 %1100
        %1104 = vset.pattern.permute.xlu0 0
        %1105 = vperm.xlu0 %1104, %v1071
        %v1106 = vpop.permute.xlu0 %1105
        %1109 = vset.pattern.permute.xlu0 0
        %1110 = vperm.xlu0 %1109, %v1072
        %v1111 = vpop.permute.xlu0 %1110
        %1114 = vset.pattern.permute.xlu0 0
        %1115 = vperm.xlu0 %1114, %v1073
        %v1116 = vpop.permute.xlu0 %1115
        %1119 = vset.pattern.permute.xlu0 0
        %1120 = vperm.xlu0 %1119, %v1074
        %v1121 = vpop.permute.xlu0 %1120
        %1124 = vset.pattern.permute.xlu0 0
        %1125 = vperm.xlu0 %1124, %v1075
        %v1126 = vpop.permute.xlu0 %1125
        %1129 = vset.pattern.permute.xlu0 0
        %1130 = vperm.xlu0 %1129, %v1076
        %v1131 = vpop.permute.xlu0 %1130
        %1134 = vset.pattern.permute.xlu0 0
        %1135 = vperm.xlu0 %1134, %v1077
        %v1136 = vpop.permute.xlu0 %1135
        %1139 = vset.pattern.permute.xlu0 0
        %1140 = vperm.xlu0 %1139, %v1078
        %v1141 = vpop.permute.xlu0 %1140
        %1144 = vset.pattern.permute.xlu0 0
        %1145 = vperm.xlu0 %1144, %v1079
        %v1146 = vpop.permute.xlu0 %1145
        %1149 = vset.pattern.permute.xlu0 0
        %1150 = vperm.xlu0 %1149, %v1080
        %v1151 = vpop.permute.xlu0 %1150
        %1154 = vset.pattern.permute.xlu0 0
        %1155 = vperm.xlu0 %1154, %v1081
        %v1156 = vpop.permute.xlu0 %1155
        %1159 = vset.pattern.permute.xlu0 0
        %1160 = vperm.xlu0 %1159, %v1082
        %v1161 = vpop.permute.xlu0 %1160
        %v1163 = vmul.f32 %v1051, %v1086
        %v1164 = vmul.f32 %v1052, %v1091
        %v1165 = vmul.f32 %v1053, %v1096
        %v1166 = vmul.f32 %v1054, %v1101
        %v1167 = vmul.f32 %v1055, %v1106
        %v1168 = vmul.f32 %v1056, %v1111
        %v1169 = vmul.f32 %v1057, %v1116
        %v1170 = vmul.f32 %v1058, %v1121
        %v1171 = vmul.f32 %v1059, %v1126
        %v1172 = vmul.f32 %v1060, %v1131
        %v1173 = vmul.f32 %v1061, %v1136
        %v1174 = vmul.f32 %v1062, %v1141
        %v1175 = vmul.f32 %v1063, %v1146
        %v1176 = vmul.f32 %v1064, %v1151
        %v1177 = vmul.f32 %v1065, %v1156
        %v1178 = vmul.f32 %v1066, %v1161
        %v1179 = vld [vmem:[%s338] sm:$0xf]
        %v1180 = vld [vmem:[%s338 + $0x4] sm:$0xf]
        %v1181 = vld [vmem:[%s338 + $0x8] sm:$0xf]
        %v1182 = vld [vmem:[%s338 + $0xc] sm:$0xf]
        %v1183 = vld [vmem:[%s338 + $0x10] sm:$0xf]
        %v1184 = vld [vmem:[%s338 + $0x14] sm:$0xf]
        %v1185 = vld [vmem:[%s338 + $0x18] sm:$0xf]
        %v1186 = vld [vmem:[%s338 + $0x1c] sm:$0xf]
        %v1187 = vld [vmem:[%s338 + $0x20] sm:$0xf]
        %v1188 = vld [vmem:[%s338 + $0x24] sm:$0xf]
        %v1189 = vld [vmem:[%s338 + $0x28] sm:$0xf]
        %v1190 = vld [vmem:[%s338 + $0x2c] sm:$0xf]
        %v1191 = vld [vmem:[%s338 + $0x30] sm:$0xf]
        %v1192 = vld [vmem:[%s338 + $0x34] sm:$0xf]
        %v1193 = vld [vmem:[%s338 + $0x38] sm:$0xf]
        %v1194 = vld [vmem:[%s338 + $0x3c] sm:$0xf]
        %v1195 = vunpack.c.l.bf16 %v1179
        %v1196 = vunpack.c.l.bf16 %v1180
        %v1197 = vunpack.c.l.bf16 %v1181
        %v1198 = vunpack.c.l.bf16 %v1182
        %v1199 = vunpack.c.l.bf16 %v1183
        %v1200 = vunpack.c.l.bf16 %v1184
        %v1201 = vunpack.c.l.bf16 %v1185
        %v1202 = vunpack.c.l.bf16 %v1186
        %v1203 = vunpack.c.l.bf16 %v1187
        %v1204 = vunpack.c.l.bf16 %v1188
        %v1205 = vunpack.c.l.bf16 %v1189
        %v1206 = vunpack.c.l.bf16 %v1190
        %v1207 = vunpack.c.l.bf16 %v1191
        %v1208 = vunpack.c.l.bf16 %v1192
        %v1209 = vunpack.c.l.bf16 %v1193
        %v1210 = vunpack.c.l.bf16 %v1194
        %v1211 = vld [vmem:[%s4] sm:$0xff]
        %v1212 = vld [vmem:[%s4 + $0x8] sm:$0xff]
        %v1213 = vld [vmem:[%s4 + $0x10] sm:$0xff]
        %v1214 = vld [vmem:[%s4 + $0x18] sm:$0xff]
        %v1215 = vld [vmem:[%s4 + $0x20] sm:$0xff]
        %v1216 = vld [vmem:[%s4 + $0x28] sm:$0xff]
        %v1217 = vld [vmem:[%s4 + $0x30] sm:$0xff]
        %v1218 = vld [vmem:[%s4 + $0x38] sm:$0xff]
        %v1219 = vld [vmem:[%s4 + $0x40] sm:$0xff]
        %v1220 = vld [vmem:[%s4 + $0x48] sm:$0xff]
        %v1221 = vld [vmem:[%s4 + $0x50] sm:$0xff]
        %v1222 = vld [vmem:[%s4 + $0x58] sm:$0xff]
        %v1223 = vld [vmem:[%s4 + $0x60] sm:$0xff]
        %v1224 = vld [vmem:[%s4 + $0x68] sm:$0xff]
        %v1225 = vld [vmem:[%s4 + $0x70] sm:$0xff]
        %v1226 = vld [vmem:[%s4 + $0x78] sm:$0xff]
        %1227 = vmatpush.msra.mxu0 %v1226
        %1228 = vmatpush.msra.mxu0 %v1225
        %1229 = vmatpush.msra.mxu0 %v1224
        %1230 = vmatpush.msra.mxu0 %v1223
        %1231 = vmatpush.msra.mxu0 %v1222
        %1232 = vmatpush.msra.mxu0 %v1221
        %1233 = vmatpush.msra.mxu0 %v1220
        %1234 = vmatpush.msra.mxu0 %v1219
        %1235 = vmatpush.msra.mxu0 %v1218
        %1236 = vmatpush.msra.mxu0 %v1217
        %1237 = vmatpush.msra.mxu0 %v1216
        %1238 = vmatpush.msra.mxu0 %v1215
        %1239 = vmatpush.msra.mxu0 %v1214
        %1240 = vmatpush.msra.mxu0 %v1213
        %1241 = vmatpush.msra.mxu0 %v1212
        %1242 = vmatpush.msra.mxu0 %v1211
        %1243 = vmatmul.f32.gmra.mxu0 %v1195
        %v1244 = vpop.f32.mrf.mxu0
        %v1245 = vadd.f32 0.0, %v1244
        %1246 = vmatmul.f32.gmra.mxu0 %v1196
        %v1247 = vpop.f32.mrf.mxu0
        %v1248 = vadd.f32 0.0, %v1247
        %1249 = vmatmul.f32.gmra.mxu0 %v1197
        %v1250 = vpop.f32.mrf.mxu0
        %v1251 = vadd.f32 0.0, %v1250
        %1252 = vmatmul.f32.gmra.mxu0 %v1198
        %v1253 = vpop.f32.mrf.mxu0
        %v1254 = vadd.f32 0.0, %v1253
        %1255 = vmatmul.f32.gmra.mxu0 %v1199
        %v1256 = vpop.f32.mrf.mxu0
        %v1257 = vadd.f32 0.0, %v1256
        %1258 = vmatmul.f32.gmra.mxu0 %v1200
        %v1259 = vpop.f32.mrf.mxu0
        %v1260 = vadd.f32 0.0, %v1259
        %1261 = vmatmul.f32.gmra.mxu0 %v1201
        %v1262 = vpop.f32.mrf.mxu0
        %v1263 = vadd.f32 0.0, %v1262
        %1264 = vmatmul.f32.gmra.mxu0 %v1202
        %v1265 = vpop.f32.mrf.mxu0
        %v1266 = vadd.f32 0.0, %v1265
        %1267 = vmatmul.f32.gmra.mxu0 %v1203
        %v1268 = vpop.f32.mrf.mxu0
        %v1269 = vadd.f32 0.0, %v1268
        %1270 = vmatmul.f32.gmra.mxu0 %v1204
        %v1271 = vpop.f32.mrf.mxu0
        %v1272 = vadd.f32 0.0, %v1271
        %1273 = vmatmul.f32.gmra.mxu0 %v1205
        %v1274 = vpop.f32.mrf.mxu0
        %v1275 = vadd.f32 0.0, %v1274
        %1276 = vmatmul.f32.gmra.mxu0 %v1206
        %v1277 = vpop.f32.mrf.mxu0
        %v1278 = vadd.f32 0.0, %v1277
        %1279 = vmatmul.f32.gmra.mxu0 %v1207
        %v1280 = vpop.f32.mrf.mxu0
        %v1281 = vadd.f32 0.0, %v1280
        %1282 = vmatmul.f32.gmra.mxu0 %v1208
        %v1283 = vpop.f32.mrf.mxu0
        %v1284 = vadd.f32 0.0, %v1283
        %1285 = vmatmul.f32.gmra.mxu0 %v1209
        %v1286 = vpop.f32.mrf.mxu0
        %v1287 = vadd.f32 0.0, %v1286
        %1288 = vmatmul.f32.gmra.mxu0 %v1210
        %v1289 = vpop.f32.mrf.mxu0
        %v1290 = vadd.f32 0.0, %v1289
        %1291 = vdwg.mxu0
        %v1292 = vadd.f32 %v1163, %v1245
        %v1293 = vadd.f32 %v1164, %v1248
        %v1294 = vadd.f32 %v1165, %v1251
        %v1295 = vadd.f32 %v1166, %v1254
        %v1296 = vadd.f32 %v1167, %v1257
        %v1297 = vadd.f32 %v1168, %v1260
        %v1298 = vadd.f32 %v1169, %v1263
        %v1299 = vadd.f32 %v1170, %v1266
        %v1300 = vadd.f32 %v1171, %v1269
        %v1301 = vadd.f32 %v1172, %v1272
        %v1302 = vadd.f32 %v1173, %v1275
        %v1303 = vadd.f32 %v1174, %v1278
        %v1304 = vadd.f32 %v1175, %v1281
        %v1305 = vadd.f32 %v1176, %v1284
        %v1306 = vadd.f32 %v1177, %v1287
        %v1307 = vadd.f32 %v1178, %v1290
        %v1308 = vld [vmem:[%s5] sm:$0x1]
        %v1310 = vperm.slane %v1308, 0
        %v1312 = vadd.f32 %v1292, %v1310
        %v1313 = vadd.f32 %v1293, %v1310
        %v1314 = vadd.f32 %v1294, %v1310
        %v1315 = vadd.f32 %v1295, %v1310
        %v1316 = vadd.f32 %v1296, %v1310
        %v1317 = vadd.f32 %v1297, %v1310
        %v1318 = vadd.f32 %v1298, %v1310
        %v1319 = vadd.f32 %v1299, %v1310
        %v1320 = vadd.f32 %v1300, %v1310
        %v1321 = vadd.f32 %v1301, %v1310
        %v1322 = vadd.f32 %v1302, %v1310
        %v1323 = vadd.f32 %v1303, %v1310
        %v1324 = vadd.f32 %v1304, %v1310
        %v1325 = vadd.f32 %v1305, %v1310
        %v1326 = vadd.f32 %v1306, %v1310
        %v1327 = vadd.f32 %v1307, %v1310
        %1328 = vst [vmem:[%s350] sm:$0xff] %v1312
        %1329 = vst [vmem:[%s350 + $0x8] sm:$0xff] %v1313
        %1330 = vst [vmem:[%s350 + $0x10] sm:$0xff] %v1314
        %1331 = vst [vmem:[%s350 + $0x18] sm:$0xff] %v1315
        %1332 = vst [vmem:[%s350 + $0x20] sm:$0xff] %v1316
        %1333 = vst [vmem:[%s350 + $0x28] sm:$0xff] %v1317
        %1334 = vst [vmem:[%s350 + $0x30] sm:$0xff] %v1318
        %1335 = vst [vmem:[%s350 + $0x38] sm:$0xff] %v1319
        %1336 = vst [vmem:[%s350 + $0x40] sm:$0xff] %v1320
        %1337 = vst [vmem:[%s350 + $0x48] sm:$0xff] %v1321
        %1338 = vst [vmem:[%s350 + $0x50] sm:$0xff] %v1322
        %1339 = vst [vmem:[%s350 + $0x58] sm:$0xff] %v1323
        %1340 = vst [vmem:[%s350 + $0x60] sm:$0xff] %v1324
        %1341 = vst [vmem:[%s350 + $0x68] sm:$0xff] %v1325
        %1342 = vst [vmem:[%s350 + $0x70] sm:$0xff] %v1326
        %1343 = vst [vmem:[%s350 + $0x78] sm:$0xff] %v1327
      $region52: #{graphsage_forward.5} parent=43 // pred_fallthru
        _
      %s1344 = smul.u32 16, %s21
      %p1345 = scmp.lt.s32.totalorder %s1344, 63
      %s1346 = scalar_select %p1345, %s1344, 63
      %s1347 = smul.addr %s1346, 8
      %s1348 = scalar_lea.vmem %s6, %s1347
      // Predicated region
      $region53: #{graphsage_forward.5} parent=43 // pred_check
        %p1349 = pneg %p195
      $region54: #{graphsage_forward.5} parent=43 // pred_check_branch
        %1351 = sbr.rel (%p1349) target = $region56
      $region55: #{graphsage_forward.5} parent=43 // pred_region
        %s1352 = smul.u32 16, %s21
      $region56: #{graphsage_forward.5} parent=43 // pred_fallthru
        _
    $region44: #{graphsage_forward.5} parent=5 // pred_fallthru
      _
    %p1353 = scmp.le.s32.totalorder 2, %s12
    // Predicated region
    $region57: #{graphsage_forward.5} parent=5 // pred_check
      %p1354 = pneg %p1353
    $region58: #{graphsage_forward.5} parent=5 // pred_check_branch
      %1356 = sbr.rel (%p1354) target = $region60
    $region59: #{graphsage_forward.5} parent=5 // pred_region
      %s1357 = ssub.s32 %s12, 2
      // Predicated region
      $region61: #{graphsage_forward.5} parent=59 // pred_check
        %p1358 = pneg %p201
      $region62: #{graphsage_forward.5} parent=59 // pred_check_branch
        %1360 = sbr.rel (%p1358) target = $region64
      $region63: #{graphsage_forward.5} parent=59 // pred_region
        %s1361 = smul.u32 16, %s23
        %p1362 = scmp.lt.s32.totalorder %s1361, 63
        %s1363 = scalar_select %p1362, %s1361, 63
        %s1364 = smul.addr %s1363, 8
        %s1365 = scalar_lea.vmem %s6, %s1364
      $region64: #{graphsage_forward.5} parent=59 // pred_fallthru
        _
    $region60: #{graphsage_forward.5} parent=5 // pred_fallthru
      _
  $region6: #{graphsage_forward.5} parent=0 // loop_footer
    %s16 = sadd.s32 1, %s12
  $region7: #{graphsage_forward.5} parent=0 // loop_footer_branch
    %11 = sbr.rel target = $region3
  $region8: #{graphsage_forward.5} parent=0 // loop_exit
    _

</llo_original>
